<compile_context>
chip_gen: v7x
topology: tpu7x:2x2x1
jax: 0.10.0
libtpu: 0.0.40
codegen_flags: <defaults>
</compile_context>

<pallas_src>
import functools

import jax
import jax.numpy as jnp
from jax.experimental import pallas as pl
from jax.experimental.pallas import tpu as pltpu

# ---------------- static model geometry ----------------
C_IN, C1, C2, C3 = 1000, 32, 32, 3
K1, K2, K3 = 4, 2, 2
H_IN, W_IN = 8, 8
OH1, OW1 = H_IN + K1 - 1, W_IN + K1 - 1            # 11 x 11
OH2, OW2 = OH1 + K2 - 1, OW1 + K2 - 1              # 12 x 12
OH3, OW3 = OH2 * 2, OW2 * 2                        # 24 x 24

WC = 16                                            # unified canvas width (power of 2)
XH1 = OH1 + (K1 - 1) + 1                           # 15 canvas rows for layer-1 input
XLEN = XH1 * WC                                    # 240 flattened layer-1 input lanes
M1 = OH1 * WC                                      # 176 layer-1 output lanes (incl. pad cols)
Y1P_ROWS = OH2 + (K2 - 1) + 1                      # 14 canvas rows for padded layer-1 output
Y1P_LEN = Y1P_ROWS * WC                            # 224
M2 = OH2 * WC                                      # 192 layer-2 output lanes (incl. pad cols)
R3 = C3 * K3 * K3                                  # 12 rows of the layer-3 output (co, kh, kw)

NT1 = K1 * K1                                      # 16 layer-1 taps
G = 8                                              # taps per stacked LHS group -> 256 rows
NG = NT1 // G                                      # 2 group matmuls
NT2 = K2 * K2                                      # 4 layer-2 taps (stacked to 128 rows)


def _gelu_tanh(v):
    # exact elementwise chain from the PyTorch module (v2..v9 / v11..v18), in f32
    inner = (v + 0.044715 * (v * v * v)) * 0.7978845608028654
    return (0.5 * v) * (jnp.tanh(inner) + 1.0)


def _make_kernel(b_blk):
    def fused_convt_kernel(x_ref, w1s_ref, b1_ref, w2s_ref, b2_ref, w3t_ref, b3_ref,
                           o_ref, p1_ref, p2_ref, y1p_ref):
        # Re-zero the layer-2 input canvas each step (cheap; borders must be 0).
        # Not guarded by program_id==0: with a "parallel" grid axis each core has
        # its own scratch and only one core ever executes step 0.
        y1p_ref[...] = jnp.zeros_like(y1p_ref)

        # wrap-column mask: canvas columns >= OW1 are not real layer-1 outputs and
        # (after placement at offset WC+1) would land on layer-2 padding lanes.
        col = jax.lax.broadcasted_iota(jnp.int32, (1, M1), 1)
        mask1 = (jnp.bitwise_and(col, WC - 1) < OW1).astype(jnp.float32)

        for b in range(b_blk):                       # static unrolled batch block
            xb = x_ref[b]                            # (C_IN, XLEN) bf16 canvas

            # ---- layer 1: ConvT(1000->32, k=4, s=1) + tanh-GELU -----------------
            # Two tap-stacked matmuls (256,1000)x(1000,240) -> full MXU row tiles.
            for g in range(NG):
                p1_ref[g] = jnp.dot(w1s_ref[g], xb,
                                    preferred_element_type=jnp.float32)
            # shift-add epilogue: acc1[co, m] = sum_t P[t, co, m + off_t]
            acc1 = p1_ref[0, 0:C1, 0:M1]             # tap 0 has offset 0
            for t in range(1, NT1):
                g, tl = divmod(t, G)
                kh, kw = divmod(t, K1)
                off = kh * WC + kw
                acc1 = acc1 + p1_ref[g, tl * C1:(tl + 1) * C1, off:off + M1]
            acc1 = _gelu_tanh(acc1 + b1_ref[...]) * mask1

            # place y1[oh, ow] at canvas (oh+1, ow+1): flat offset = WC + 1
            y1p_ref[:, WC + 1:WC + 1 + M1] = acc1

            # ---- layer 2: ConvT(32->32, k=2, s=1) + tanh-GELU -------------------
            # single merged (128,32)x(32,224) bf16 matmul + 4 shift-adds
            p2_ref[...] = jnp.dot(w2s_ref[...],
                                  y1p_ref[...].astype(jnp.bfloat16),
                                  preferred_element_type=jnp.float32)
            acc2 = p2_ref[0:C2, 0:M2]                # tap 0 has offset 0
            for t in range(1, NT2):
                kh, kw = divmod(t, K2)
                off = kh * WC + kw
                acc2 = acc2 + p2_ref[t * C2:(t + 1) * C2, off:off + M2]
            acc2 = _gelu_tanh(acc2 + b2_ref[...])
            # NOTE: columns >= OW2 of acc2 are garbage; they propagate column-wise
            # through layer 3 and are sliced off in model_forward ([..., :OW2]).

            # ---- layer 3: ConvT(32->3, k=2, s=2): stride==kernel -> one matmul --
            o_ref[b] = (jnp.dot(w3t_ref[...], acc2.astype(jnp.bfloat16),
                                preferred_element_type=jnp.float32)
                        + b3_ref[...]).astype(o_ref.dtype)

    return fused_convt_kernel


def _fused_call(xflat, w1s, b1, w2s, b2, w3t, b3e, b_blk):
    n = xflat.shape[0]
    assert n % b_blk == 0
    return pl.pallas_call(
        _make_kernel(b_blk),
        out_shape=jax.ShapeDtypeStruct((n, R3, M2), jnp.float32),
        grid_spec=pltpu.PrefetchScalarGridSpec(
            num_scalar_prefetch=0,
            grid=(n // b_blk,),
            in_specs=[
                pl.BlockSpec((b_blk, C_IN, XLEN), lambda i: (i, 0, 0)),
                pl.BlockSpec((NG, G * C1, C_IN), lambda i: (0, 0, 0)),
                pl.BlockSpec((C1, 1), lambda i: (0, 0)),
                pl.BlockSpec((NT2 * C2, C1), lambda i: (0, 0)),
                pl.BlockSpec((C2, 1), lambda i: (0, 0)),
                pl.BlockSpec((R3, C2), lambda i: (0, 0)),
                pl.BlockSpec((R3, 1), lambda i: (0, 0)),
            ],
            out_specs=pl.BlockSpec((b_blk, R3, M2), lambda i: (i, 0, 0)),
            scratch_shapes=[
                pltpu.VMEM((NG, G * C1, XLEN), jnp.float32),   # layer-1 tap-stacked products
                pltpu.VMEM((NT2 * C2, Y1P_LEN), jnp.float32),  # layer-2 tap-stacked products
                pltpu.VMEM((C1, Y1P_LEN), jnp.float32),        # padded layer-1 output canvas
            ],
        ),
        compiler_params=pltpu.CompilerParams(
            dimension_semantics=("parallel",),
            vmem_limit_bytes=32 * 1024 * 1024,
        ),
    )(xflat, w1s, b1, w2s, b2, w3t, b3e)


def prepare_params(params):
    """One-time repack of PyTorch-layout weights into kernel layout."""
    w1, b1 = params["w1"], params["b1"]
    w2, b2 = params["w2"], params["b2"]
    w3, b3 = params["w3"], params["b3"]
    # conv-transpose == correlation with spatially flipped kernel.
    # Layer-1 taps stacked on the LHS row dim: (NG, G*C1, C_IN), tap t = kh*K1+kw.
    w1t = jnp.transpose(w1[:, :, ::-1, ::-1], (2, 3, 1, 0)).reshape(NT1, C1, C_IN)
    w1s = w1t.reshape(NG, G * C1, C_IN)
    # Layer-2 taps stacked: (NT2*C2, C1), tap t = kh*K2+kw.
    w2t = jnp.transpose(w2[:, :, ::-1, ::-1], (2, 3, 1, 0)).reshape(NT2, C2, C1)
    w2s = w2t.reshape(NT2 * C2, C1)
    # Layer 3: stride == kernel -> direct (co, kh, kw) x ci matrix, no flip.
    w3t = jnp.transpose(w3, (1, 2, 3, 0)).reshape(R3, C2)
    b3e = jnp.repeat(b3, K3 * K3).reshape(R3, 1)
    return {
        "w1s": w1s.astype(jnp.bfloat16),            # bf16 operands, f32 accumulate
        "b1": b1.reshape(C1, 1).astype(jnp.float32),
        "w2s": w2s.astype(jnp.bfloat16),
        "b2": b2.reshape(C2, 1).astype(jnp.float32),
        "w3t": w3t.astype(jnp.bfloat16),
        "b3e": b3e.astype(jnp.float32),
    }


def _pick_b_blk(n):
    for b in (8, 4, 2, 1):
        if n % b == 0:
            return b
    return 1


@jax.jit
def model_forward(kparams, x_nchw):
    n = x_nchw.shape[0]
    b_blk = _pick_b_blk(n)
    # layer-1 full padding (K1-1 = 3) placed in a (15, 16) canvas, flattened on lanes
    # TODO(synk): bf16 cast of x/w1 with K=1000 accumulation is a documented
    # precision tradeoff (loose 1e-1 tolerance); keep f32 if tighter accuracy needed.
    xp = jnp.pad(
        x_nchw.astype(jnp.bfloat16),
        ((0, 0), (0, 0),
         (K1 - 1, XH1 - H_IN - (K1 - 1)),
         (K1 - 1, WC - W_IN - (K1 - 1))))
    xflat = xp.reshape(n, C_IN, XLEN)
    y3 = _fused_call(xflat, kparams["w1s"], kparams["b1"], kparams["w2s"],
                     kparams["b2"], kparams["w3t"], kparams["b3e"], b_blk)
    # depth-to-space on the tiny (12, 192) result: rows = (co, kh, kw), cols = (i, canvas_j)
    y3 = y3.reshape(n, C3, K3, K3, OH2, WC)[..., :OW2]
    out = jnp.transpose(y3, (0, 1, 4, 2, 5, 3)).reshape(n, C3, OH3, OW3)
    return out


@jax.jit
def reference_forward(params, x):
    """Pure-XLA reference (ConvTranspose2d == dilated conv with flipped kernel)."""
    def convt(x, w, b, stride):
        k = w.shape[2]
        w_conv = jnp.transpose(w[:, :, ::-1, ::-1], (1, 0, 2, 3))   # (Cout, Cin, K, K)
        y = jax.lax.conv_general_dilated(
            x, w_conv, window_strides=(1, 1),
            padding=[(k - 1, k - 1), (k - 1, k - 1)],
            lhs_dilation=(stride, stride),
            dimension_numbers=("NCHW", "OIHW", "NCHW"),
            precision=jax.lax.Precision.HIGHEST)
        return y + b.reshape(1, -1, 1, 1)

    v9 = _gelu_tanh(convt(x, params["w1"], params["b1"], 1))
    v18 = _gelu_tanh(convt(v9, params["w2"], params["b2"], 1))
    return convt(v18, params["w3"], params["b3"], 2)


def init_params(key):
    def uniform(key, shape, fan):
        bound = 1.0 / jnp.sqrt(jnp.float32(fan))
        return jax.random.uniform(key, shape, jnp.float32, -bound, bound)

    ks = jax.random.split(key, 6)
    return {
        "w1": uniform(ks[0], (C_IN, C1, K1, K1), C1 * K1 * K1),
        "b1": uniform(ks[1], (C1,), C1 * K1 * K1),
        "w2": uniform(ks[2], (C1, C2, K2, K2), C2 * K2 * K2),
        "b2": uniform(ks[3], (C2,), C2 * K2 * K2),
        "w3": uniform(ks[4], (C2, C3, K3, K3), C3 * K3 * K3),
        "b3": uniform(ks[5], (C3,), C3 * K3 * K3),
    }


if __name__ == "__main__":
    key = jax.random.PRNGKey(0)
    k_param, k_x = jax.random.split(key)
    params = init_params(k_param)
    kparams = prepare_params(params)

    # forward() requires 1000 input channels; small spatial size.
    x1 = jax.random.normal(k_x, (1, C_IN, H_IN, W_IN), dtype=jnp.float32)

    out = jax.block_until_ready(model_forward(kparams, x1))

    expected = (1, 3, OH3, OW3)   # (1, 3, 24, 24): 8 -> 11 -> 12 -> 24
    assert out.shape == expected, (out.shape, expected)
    assert out.dtype == jnp.float32
    assert bool(jnp.all(jnp.isfinite(out)))

    # numerical check vs an independent XLA conv_transpose reference
    ref = jax.block_until_ready(reference_forward(params, x1))
    max_err = float(jnp.max(jnp.abs(out - ref)))
    assert max_err < 1e-1, f"mismatch vs XLA reference: max_err={max_err}"

    print("KERNEL_OK")
</pallas_src>

<mosaic_0001>
module attributes {stable_mosaic.version = 11 : i64} {
  func.func @fused_convt_kernel(%arg0: i32, %arg1: memref<1x1000x240xbf16, #tpu.memory_space<vmem>>, %arg2: memref<2x256x1000xbf16, #tpu.memory_space<vmem>>, %arg3: memref<32x1xf32, #tpu.memory_space<vmem>>, %arg4: memref<128x32xbf16, #tpu.memory_space<vmem>>, %arg5: memref<32x1xf32, #tpu.memory_space<vmem>>, %arg6: memref<12x32xbf16, #tpu.memory_space<vmem>>, %arg7: memref<12x1xf32, #tpu.memory_space<vmem>>, %arg8: memref<1x12x192xf32, #tpu.memory_space<vmem>>, %arg9: memref<2x256x240xf32, #tpu.memory_space<vmem>>, %arg10: memref<128x224xf32, #tpu.memory_space<vmem>>, %arg11: memref<32x224xf32, #tpu.memory_space<vmem>>) attributes {dimension_semantics = [#tpu.dimension_semantics<parallel>], iteration_bounds = array<i64: 1>, scalar_prefetch = 0 : i64, scratch_operands = 3 : i64, tpu.core_type = #tpu.core_type<tc>, window_params = [{transform_indices = @transform_0, window_bounds = array<i64: 1, 1000, 240>}, {pipeline_mode = #tpu.pipeline_mode<synchronous>, transform_indices = @transform_1, window_bounds = array<i64: 2, 256, 1000>}, {pipeline_mode = #tpu.pipeline_mode<synchronous>, transform_indices = @transform_2, window_bounds = array<i64: 32, 1>}, {pipeline_mode = #tpu.pipeline_mode<synchronous>, transform_indices = @transform_3, window_bounds = array<i64: 128, 32>}, {pipeline_mode = #tpu.pipeline_mode<synchronous>, transform_indices = @transform_4, window_bounds = array<i64: 32, 1>}, {pipeline_mode = #tpu.pipeline_mode<synchronous>, transform_indices = @transform_5, window_bounds = array<i64: 12, 32>}, {pipeline_mode = #tpu.pipeline_mode<synchronous>, transform_indices = @transform_6, window_bounds = array<i64: 12, 1>}, {transform_indices = @transform_7, window_bounds = array<i64: 1, 12, 192>}]} {
    %cst = arith.constant 0.000000e+00 : f32
    %0 = vector.broadcast %cst : f32 to vector<32x224xf32>
    %c0 = arith.constant 0 : index
    %c0_0 = arith.constant 0 : index
    %1 = vector.load %arg11[%c0, %c0_0] : memref<32x224xf32, #tpu.memory_space<vmem>>, vector<32x224xf32>
    tpu.vector_store %arg11[%c0, %c0_0], %0 {strides = array<i32>} : memref<32x224xf32, #tpu.memory_space<vmem>>, vector<32x224xf32>,
    %2 = tpu.iota {dimensions = array<i32: 1>} : vector<1x176xi32>
    %c15_i32 = arith.constant 15 : i32
    %3 = vector.broadcast %c15_i32 : i32 to vector<1x176xi32>
    %4 = arith.andi %2, %3 : vector<1x176xi32>
    %c11_i32 = arith.constant 11 : i32
    %5 = vector.broadcast %c11_i32 : i32 to vector<1x176xi32>
    %6 = arith.cmpi slt, %4, %5 : vector<1x176xi32>
    %7 = arith.extui %6 : vector<1x176xi1> to vector<1x176xi32>
    %8 = arith.sitofp %7 : vector<1x176xi32> to vector<1x176xf32>
    %c0_1 = arith.constant 0 : index
    %c0_2 = arith.constant 0 : index
    %c0_3 = arith.constant 0 : index
    %9 = vector.load %arg1[%c0_1, %c0_2, %c0_3] : memref<1x1000x240xbf16, #tpu.memory_space<vmem>>, vector<1x1000x240xbf16>
    %10 = vector.shape_cast %9 : vector<1x1000x240xbf16> to vector<1000x240xbf16>
    %c0_4 = arith.constant 0 : index
    %c0_5 = arith.constant 0 : index
    %c0_6 = arith.constant 0 : index
    %11 = vector.load %arg2[%c0_4, %c0_5, %c0_6] : memref<2x256x1000xbf16, #tpu.memory_space<vmem>>, vector<1x256x1000xbf16>
    %12 = vector.shape_cast %11 : vector<1x256x1000xbf16> to vector<256x1000xbf16>
    %cst_7 = arith.constant dense<0.000000e+00> : vector<256x240xf32>
    %13 = tpu.matmul %12, %10, %cst_7 {dimension_numbers = #tpu.dot_dimension_numbers<[1], [0], [0], [1], [0, 0, 1, 1], [], []>} : vector<256x1000xbf16>, vector<1000x240xbf16>, vector<256x240xf32> -> vector<256x240xf32>
    %c0_8 = arith.constant 0 : index
    %c0_9 = arith.constant 0 : index
    %c0_10 = arith.constant 0 : index
    %14 = vector.load %arg9[%c0_8, %c0_9, %c0_10] : memref<2x256x240xf32, #tpu.memory_space<vmem>>, vector<1x256x240xf32>
    %15 = vector.shape_cast %14 : vector<1x256x240xf32> to vector<256x240xf32>
    %16 = vector.shape_cast %13 : vector<256x240xf32> to vector<1x256x240xf32>
    tpu.vector_store %arg9[%c0_8, %c0_9, %c0_10], %16 {strides = array<i32>} : memref<2x256x240xf32, #tpu.memory_space<vmem>>, vector<1x256x240xf32>,
    %c1 = arith.constant 1 : index
    %c0_11 = arith.constant 0 : index
    %c0_12 = arith.constant 0 : index
    %17 = vector.load %arg2[%c1, %c0_11, %c0_12] : memref<2x256x1000xbf16, #tpu.memory_space<vmem>>, vector<1x256x1000xbf16>
    %18 = vector.shape_cast %17 : vector<1x256x1000xbf16> to vector<256x1000xbf16>
    %cst_13 = arith.constant dense<0.000000e+00> : vector<256x240xf32>
    %19 = tpu.matmul %18, %10, %cst_13 {dimension_numbers = #tpu.dot_dimension_numbers<[1], [0], [0], [1], [0, 0, 1, 1], [], []>} : vector<256x1000xbf16>, vector<1000x240xbf16>, vector<256x240xf32> -> vector<256x240xf32>
    %c1_14 = arith.constant 1 : index
    %c0_15 = arith.constant 0 : index
    %c0_16 = arith.constant 0 : index
    %20 = vector.load %arg9[%c1_14, %c0_15, %c0_16] : memref<2x256x240xf32, #tpu.memory_space<vmem>>, vector<1x256x240xf32>
    %21 = vector.shape_cast %20 : vector<1x256x240xf32> to vector<256x240xf32>
    %22 = vector.shape_cast %19 : vector<256x240xf32> to vector<1x256x240xf32>
    tpu.vector_store %arg9[%c1_14, %c0_15, %c0_16], %22 {strides = array<i32>} : memref<2x256x240xf32, #tpu.memory_space<vmem>>, vector<1x256x240xf32>,
    %c0_17 = arith.constant 0 : index
    %c0_18 = arith.constant 0 : index
    %c0_19 = arith.constant 0 : index
    %23 = vector.load %arg9[%c0_17, %c0_18, %c0_19] : memref<2x256x240xf32, #tpu.memory_space<vmem>>, vector<1x32x176xf32>
    %24 = vector.shape_cast %23 : vector<1x32x176xf32> to vector<32x176xf32>
    %c0_20 = arith.constant 0 : index
    %c32 = arith.constant 32 : index
    %c1_21 = arith.constant 1 : index
    %25 = vector.load %arg9[%c0_20, %c32, %c1_21] : memref<2x256x240xf32, #tpu.memory_space<vmem>>, vector<1x32x176xf32>
    %26 = vector.shape_cast %25 : vector<1x32x176xf32> to vector<32x176xf32>
    %27 = arith.addf %24, %26 : vector<32x176xf32>
    %c0_22 = arith.constant 0 : index
    %c64 = arith.constant 64 : index
    %c2 = arith.constant 2 : index
    %28 = vector.load %arg9[%c0_22, %c64, %c2] : memref<2x256x240xf32, #tpu.memory_space<vmem>>, vector<1x32x176xf32>
    %29 = vector.shape_cast %28 : vector<1x32x176xf32> to vector<32x176xf32>
    %30 = arith.addf %27, %29 : vector<32x176xf32>
    %c0_23 = arith.constant 0 : index
    %c96 = arith.constant 96 : index
    %c3 = arith.constant 3 : index
    %31 = vector.load %arg9[%c0_23, %c96, %c3] : memref<2x256x240xf32, #tpu.memory_space<vmem>>, vector<1x32x176xf32>
    %32 = vector.shape_cast %31 : vector<1x32x176xf32> to vector<32x176xf32>
    %33 = arith.addf %30, %32 : vector<32x176xf32>
    %c0_24 = arith.constant 0 : index
    %c128 = arith.constant 128 : index
    %c16 = arith.constant 16 : index
    %34 = vector.load %arg9[%c0_24, %c128, %c16] : memref<2x256x240xf32, #tpu.memory_space<vmem>>, vector<1x32x176xf32>
    %35 = vector.shape_cast %34 : vector<1x32x176xf32> to vector<32x176xf32>
    %36 = arith.addf %33, %35 : vector<32x176xf32>
    %c0_25 = arith.constant 0 : index
    %c160 = arith.constant 160 : index
    %c17 = arith.constant 17 : index
    %37 = vector.load %arg9[%c0_25, %c160, %c17] : memref<2x256x240xf32, #tpu.memory_space<vmem>>, vector<1x32x176xf32>
    %38 = vector.shape_cast %37 : vector<1x32x176xf32> to vector<32x176xf32>
    %39 = arith.addf %36, %38 : vector<32x176xf32>
    %c0_26 = arith.constant 0 : index
    %c192 = arith.constant 192 : index
    %c18 = arith.constant 18 : index
    %40 = vector.load %arg9[%c0_26, %c192, %c18] : memref<2x256x240xf32, #tpu.memory_space<vmem>>, vector<1x32x176xf32>
    %41 = vector.shape_cast %40 : vector<1x32x176xf32> to vector<32x176xf32>
    %42 = arith.addf %39, %41 : vector<32x176xf32>
    %c0_27 = arith.constant 0 : index
    %c224 = arith.constant 224 : index
    %c19 = arith.constant 19 : index
    %43 = vector.load %arg9[%c0_27, %c224, %c19] : memref<2x256x240xf32, #tpu.memory_space<vmem>>, vector<1x32x176xf32>
    %44 = vector.shape_cast %43 : vector<1x32x176xf32> to vector<32x176xf32>
    %45 = arith.addf %42, %44 : vector<32x176xf32>
    %c1_28 = arith.constant 1 : index
    %c0_29 = arith.constant 0 : index
    %c32_30 = arith.constant 32 : index
    %46 = vector.load %arg9[%c1_28, %c0_29, %c32_30] : memref<2x256x240xf32, #tpu.memory_space<vmem>>, vector<1x32x176xf32>
    %47 = vector.shape_cast %46 : vector<1x32x176xf32> to vector<32x176xf32>
    %48 = arith.addf %45, %47 : vector<32x176xf32>
    %c1_31 = arith.constant 1 : index
    %c32_32 = arith.constant 32 : index
    %c33 = arith.constant 33 : index
    %49 = vector.load %arg9[%c1_31, %c32_32, %c33] : memref<2x256x240xf32, #tpu.memory_space<vmem>>, vector<1x32x176xf32>
    %50 = vector.shape_cast %49 : vector<1x32x176xf32> to vector<32x176xf32>
    %51 = arith.addf %48, %50 : vector<32x176xf32>
    %c1_33 = arith.constant 1 : index
    %c64_34 = arith.constant 64 : index
    %c34 = arith.constant 34 : index
    %52 = vector.load %arg9[%c1_33, %c64_34, %c34] : memref<2x256x240xf32, #tpu.memory_space<vmem>>, vector<1x32x176xf32>
    %53 = vector.shape_cast %52 : vector<1x32x176xf32> to vector<32x176xf32>
    %54 = arith.addf %51, %53 : vector<32x176xf32>
    %c1_35 = arith.constant 1 : index
    %c96_36 = arith.constant 96 : index
    %c35 = arith.constant 35 : index
    %55 = vector.load %arg9[%c1_35, %c96_36, %c35] : memref<2x256x240xf32, #tpu.memory_space<vmem>>, vector<1x32x176xf32>
    %56 = vector.shape_cast %55 : vector<1x32x176xf32> to vector<32x176xf32>
    %57 = arith.addf %54, %56 : vector<32x176xf32>
    %c1_37 = arith.constant 1 : index
    %c128_38 = arith.constant 128 : index
    %c48 = arith.constant 48 : index
    %58 = vector.load %arg9[%c1_37, %c128_38, %c48] : memref<2x256x240xf32, #tpu.memory_space<vmem>>, vector<1x32x176xf32>
    %59 = vector.shape_cast %58 : vector<1x32x176xf32> to vector<32x176xf32>
    %60 = arith.addf %57, %59 : vector<32x176xf32>
    %c1_39 = arith.constant 1 : index
    %c160_40 = arith.constant 160 : index
    %c49 = arith.constant 49 : index
    %61 = vector.load %arg9[%c1_39, %c160_40, %c49] : memref<2x256x240xf32, #tpu.memory_space<vmem>>, vector<1x32x176xf32>
    %62 = vector.shape_cast %61 : vector<1x32x176xf32> to vector<32x176xf32>
    %63 = arith.addf %60, %62 : vector<32x176xf32>
    %c1_41 = arith.constant 1 : index
    %c192_42 = arith.constant 192 : index
    %c50 = arith.constant 50 : index
    %64 = vector.load %arg9[%c1_41, %c192_42, %c50] : memref<2x256x240xf32, #tpu.memory_space<vmem>>, vector<1x32x176xf32>
    %65 = vector.shape_cast %64 : vector<1x32x176xf32> to vector<32x176xf32>
    %66 = arith.addf %63, %65 : vector<32x176xf32>
    %c1_43 = arith.constant 1 : index
    %c224_44 = arith.constant 224 : index
    %c51 = arith.constant 51 : index
    %67 = vector.load %arg9[%c1_43, %c224_44, %c51] : memref<2x256x240xf32, #tpu.memory_space<vmem>>, vector<1x32x176xf32>
    %68 = vector.shape_cast %67 : vector<1x32x176xf32> to vector<32x176xf32>
    %69 = arith.addf %66, %68 : vector<32x176xf32>
    %c0_45 = arith.constant 0 : index
    %c0_46 = arith.constant 0 : index
    %70 = vector.load %arg3[%c0_45, %c0_46] : memref<32x1xf32, #tpu.memory_space<vmem>>, vector<32x1xf32>
    %71 = vector.broadcast %70 : vector<32x1xf32> to vector<32x176xf32>
    %72 = arith.addf %69, %71 : vector<32x176xf32>
    %73 = arith.mulf %72, %72 : vector<32x176xf32>
    %74 = arith.mulf %73, %72 : vector<32x176xf32>
    %cst_47 = arith.constant 4.471500e-02 : f32
    %75 = vector.broadcast %cst_47 : f32 to vector<32x176xf32>
    %76 = arith.mulf %75, %74 : vector<32x176xf32>
    %77 = arith.addf %72, %76 : vector<32x176xf32>
    %cst_48 = arith.constant 0.797884583 : f32
    %78 = vector.broadcast %cst_48 : f32 to vector<32x176xf32>
    %79 = arith.mulf %77, %78 : vector<32x176xf32>
    %cst_49 = arith.constant 5.000000e-01 : f32
    %80 = vector.broadcast %cst_49 : f32 to vector<32x176xf32>
    %81 = arith.mulf %80, %72 : vector<32x176xf32>
    %82 = math.tanh %79 : vector<32x176xf32>
    %cst_50 = arith.constant 1.000000e+00 : f32
    %83 = vector.broadcast %cst_50 : f32 to vector<32x176xf32>
    %84 = arith.addf %82, %83 : vector<32x176xf32>
    %85 = arith.mulf %81, %84 : vector<32x176xf32>
    %86 = vector.broadcast %8 : vector<1x176xf32> to vector<32x176xf32>
    %87 = arith.mulf %85, %86 : vector<32x176xf32>
    %c0_51 = arith.constant 0 : index
    %c17_52 = arith.constant 17 : index
    %88 = vector.load %arg11[%c0_51, %c17_52] : memref<32x224xf32, #tpu.memory_space<vmem>>, vector<32x176xf32>
    tpu.vector_store %arg11[%c0_51, %c17_52], %87 {strides = array<i32>} : memref<32x224xf32, #tpu.memory_space<vmem>>, vector<32x176xf32>,
    %c0_53 = arith.constant 0 : index
    %c0_54 = arith.constant 0 : index
    %89 = vector.load %arg4[%c0_53, %c0_54] : memref<128x32xbf16, #tpu.memory_space<vmem>>, vector<128x32xbf16>
    %c0_55 = arith.constant 0 : index
    %c0_56 = arith.constant 0 : index
    %90 = vector.load %arg11[%c0_55, %c0_56] : memref<32x224xf32, #tpu.memory_space<vmem>>, vector<32x224xf32>
    %91 = arith.truncf %90 : vector<32x224xf32> to vector<32x224xbf16>
    %cst_57 = arith.constant dense<0.000000e+00> : vector<128x224xf32>
    %92 = tpu.matmul %89, %91, %cst_57 {dimension_numbers = #tpu.dot_dimension_numbers<[1], [0], [0], [1], [0, 0, 1, 1], [], []>} : vector<128x32xbf16>, vector<32x224xbf16>, vector<128x224xf32> -> vector<128x224xf32>
    %c0_58 = arith.constant 0 : index
    %c0_59 = arith.constant 0 : index
    %93 = vector.load %arg10[%c0_58, %c0_59] : memref<128x224xf32, #tpu.memory_space<vmem>>, vector<128x224xf32>
    tpu.vector_store %arg10[%c0_58, %c0_59], %92 {strides = array<i32>} : memref<128x224xf32, #tpu.memory_space<vmem>>, vector<128x224xf32>,
    %c0_60 = arith.constant 0 : index
    %c0_61 = arith.constant 0 : index
    %94 = vector.load %arg10[%c0_60, %c0_61] : memref<128x224xf32, #tpu.memory_space<vmem>>, vector<32x192xf32>
    %c32_62 = arith.constant 32 : index
    %c1_63 = arith.constant 1 : index
    %95 = vector.load %arg10[%c32_62, %c1_63] : memref<128x224xf32, #tpu.memory_space<vmem>>, vector<32x192xf32>
    %96 = arith.addf %94, %95 : vector<32x192xf32>
    %c64_64 = arith.constant 64 : index
    %c16_65 = arith.constant 16 : index
    %97 = vector.load %arg10[%c64_64, %c16_65] : memref<128x224xf32, #tpu.memory_space<vmem>>, vector<32x192xf32>
    %98 = arith.addf %96, %97 : vector<32x192xf32>
    %c96_66 = arith.constant 96 : index
    %c17_67 = arith.constant 17 : index
    %99 = vector.load %arg10[%c96_66, %c17_67] : memref<128x224xf32, #tpu.memory_space<vmem>>, vector<32x192xf32>
    %100 = arith.addf %98, %99 : vector<32x192xf32>
    %c0_68 = arith.constant 0 : index
    %c0_69 = arith.constant 0 : index
    %101 = vector.load %arg5[%c0_68, %c0_69] : memref<32x1xf32, #tpu.memory_space<vmem>>, vector<32x1xf32>
    %102 = vector.broadcast %101 : vector<32x1xf32> to vector<32x192xf32>
    %103 = arith.addf %100, %102 : vector<32x192xf32>
    %104 = arith.mulf %103, %103 : vector<32x192xf32>
    %105 = arith.mulf %104, %103 : vector<32x192xf32>
    %cst_70 = arith.constant 4.471500e-02 : f32
    %106 = vector.broadcast %cst_70 : f32 to vector<32x192xf32>
    %107 = arith.mulf %106, %105 : vector<32x192xf32>
    %108 = arith.addf %103, %107 : vector<32x192xf32>
    %cst_71 = arith.constant 0.797884583 : f32
    %109 = vector.broadcast %cst_71 : f32 to vector<32x192xf32>
    %110 = arith.mulf %108, %109 : vector<32x192xf32>
    %cst_72 = arith.constant 5.000000e-01 : f32
    %111 = vector.broadcast %cst_72 : f32 to vector<32x192xf32>
    %112 = arith.mulf %111, %103 : vector<32x192xf32>
    %113 = math.tanh %110 : vector<32x192xf32>
    %cst_73 = arith.constant 1.000000e+00 : f32
    %114 = vector.broadcast %cst_73 : f32 to vector<32x192xf32>
    %115 = arith.addf %113, %114 : vector<32x192xf32>
    %116 = arith.mulf %112, %115 : vector<32x192xf32>
    %c0_74 = arith.constant 0 : index
    %c0_75 = arith.constant 0 : index
    %117 = vector.load %arg6[%c0_74, %c0_75] : memref<12x32xbf16, #tpu.memory_space<vmem>>, vector<12x32xbf16>
    %118 = arith.truncf %116 : vector<32x192xf32> to vector<32x192xbf16>
    %cst_76 = arith.constant dense<0.000000e+00> : vector<12x192xf32>
    %119 = tpu.matmul %117, %118, %cst_76 {dimension_numbers = #tpu.dot_dimension_numbers<[1], [0], [0], [1], [0, 0, 1, 1], [], []>} : vector<12x32xbf16>, vector<32x192xbf16>, vector<12x192xf32> -> vector<12x192xf32>
    %c0_77 = arith.constant 0 : index
    %c0_78 = arith.constant 0 : index
    %120 = vector.load %arg7[%c0_77, %c0_78] : memref<12x1xf32, #tpu.memory_space<vmem>>, vector<12x1xf32>
    %121 = vector.broadcast %120 : vector<12x1xf32> to vector<12x192xf32>
    %122 = arith.addf %119, %121 : vector<12x192xf32>
    %c0_79 = arith.constant 0 : index
    %c0_80 = arith.constant 0 : index
    %c0_81 = arith.constant 0 : index
    %123 = vector.load %arg8[%c0_79, %c0_80, %c0_81] : memref<1x12x192xf32, #tpu.memory_space<vmem>>, vector<1x12x192xf32>
    %124 = vector.shape_cast %123 : vector<1x12x192xf32> to vector<12x192xf32>
    %125 = vector.shape_cast %122 : vector<12x192xf32> to vector<1x12x192xf32>
    tpu.vector_store %arg8[%c0_79, %c0_80, %c0_81], %125 {strides = array<i32>} : memref<1x12x192xf32, #tpu.memory_space<vmem>>, vector<1x12x192xf32>,
    return
  }
  func.func @transform_0(%arg0: i32) -> (i32, i32, i32) {
    %c0_i32 = arith.constant 0 : i32
    %c0_i32_0 = arith.constant 0 : i32
    %c0_i32_1 = arith.constant 0 : i32
    return %arg0, %c0_i32, %c0_i32_0 : i32, i32, i32
  }
  func.func @transform_1(%arg0: i32) -> (i32, i32, i32) {
    %c0_i32 = arith.constant 0 : i32
    %c0_i32_0 = arith.constant 0 : i32
    %c0_i32_1 = arith.constant 0 : i32
    %c0_i32_2 = arith.constant 0 : i32
    return %c0_i32, %c0_i32_0, %c0_i32_1 : i32, i32, i32
  }
  func.func @transform_2(%arg0: i32) -> (i32, i32) {
    %c0_i32 = arith.constant 0 : i32
    %c0_i32_0 = arith.constant 0 : i32
    %c0_i32_1 = arith.constant 0 : i32
    return %c0_i32, %c0_i32_0 : i32, i32
  }
  func.func @transform_3(%arg0: i32) -> (i32, i32) {
    %c0_i32 = arith.constant 0 : i32
    %c0_i32_0 = arith.constant 0 : i32
    %c0_i32_1 = arith.constant 0 : i32
    return %c0_i32, %c0_i32_0 : i32, i32
  }
  func.func @transform_4(%arg0: i32) -> (i32, i32) {
    %c0_i32 = arith.constant 0 : i32
    %c0_i32_0 = arith.constant 0 : i32
    %c0_i32_1 = arith.constant 0 : i32
    return %c0_i32, %c0_i32_0 : i32, i32
  }
  func.func @transform_5(%arg0: i32) -> (i32, i32) {
    %c0_i32 = arith.constant 0 : i32
    %c0_i32_0 = arith.constant 0 : i32
    %c0_i32_1 = arith.constant 0 : i32
    return %c0_i32, %c0_i32_0 : i32, i32
  }
  func.func @transform_6(%arg0: i32) -> (i32, i32) {
    %c0_i32 = arith.constant 0 : i32
    %c0_i32_0 = arith.constant 0 : i32
    %c0_i32_1 = arith.constant 0 : i32
    return %c0_i32, %c0_i32_0 : i32, i32
  }
  func.func @transform_7(%arg0: i32) -> (i32, i32, i32) {
    %c0_i32 = arith.constant 0 : i32
    %c0_i32_0 = arith.constant 0 : i32
    %c0_i32_1 = arith.constant 0 : i32
    return %arg0, %c0_i32, %c0_i32_0 : i32, i32, i32
  }
}

</mosaic_0001>

<llo_original>
// kernel: model_forward.1
$region0: #{model_forward.1}
  #allocation0 [shape = 'u32[]', space=smem, size = 0x4, offset = 0x4, fixed_abs, tag = 'smem constant byte address 0x4 - core index']
  #allocation1 [shape = 'u32[144,128]{1,0:T(1,128)}', space=vmem, size = 0x12000, scoped, tag = 'internal scratch']
  #allocation2 [shape = 'f32[2,256,240]{2,1,0:T(8,128)}', space=vmem, size = 0x80000, scoped, tag = 'scratch operand']
  #allocation3 [shape = 'f32[128,224]{1,0:T(8,128)}', space=vmem, size = 0x20000, scoped, tag = 'scratch operand']
  #allocation4 [shape = 'f32[32,224]{1,0:T(8,128)}', space=vmem, size = 0x8000, scoped, tag = 'scratch operand']
  %s0 = inlined_call_operand.vmem [shape: bf16[1,1000,240], index: 0, kind: input, shape index: {}]
  %s1 = inlined_call_operand.vmem [shape: bf16[2,256,1000], index: 1, kind: input, shape index: {}]
  %s2 = inlined_call_operand.vmem [shape: f32[32,1], index: 2, kind: input, shape index: {}]
  %s3 = inlined_call_operand.vmem [shape: bf16[128,32], index: 3, kind: input, shape index: {}]
  %s4 = inlined_call_operand.vmem [shape: f32[32,1], index: 4, kind: input, shape index: {}]
  %s5 = inlined_call_operand.vmem [shape: bf16[12,32], index: 5, kind: input, shape index: {}]
  %s6 = inlined_call_operand.vmem [shape: f32[12,1], index: 6, kind: input, shape index: {}]
  %s7 = inlined_call_operand.vmem [shape: f32[1,12,192], index: 7, kind: output, shape index: {}]
  %s8 = sld [smem:[#allocation0]]
  $region38: #{model_forward.1} parent=0
    _
  %s10 = ssub.s32 1, %s8
  %s11 = scalar_select 0, %s10, %s8
  // Predicated region
  $region2: #{model_forward.1} parent=0 // pred_check
    _
  $region3: #{model_forward.1} parent=0 // pred_check_branch
    %13 = sbr.rel (0) target = $region5
  $region4: #{model_forward.1} parent=0 // pred_region
    _
  $region5: #{model_forward.1} parent=0 // pred_fallthru
    _
  // Predicated region
  $region6: #{model_forward.1} parent=0 // pred_check
    _
  $region7: #{model_forward.1} parent=0 // pred_check_branch
    %15 = sbr.rel (0) target = $region9
  $region8: #{model_forward.1} parent=0 // pred_region
    _
  $region9: #{model_forward.1} parent=0 // pred_fallthru
    _
  // Predicated region
  $region10: #{model_forward.1} parent=0 // pred_check
    _
  $region11: #{model_forward.1} parent=0 // pred_check_branch
    %17 = sbr.rel (0) target = $region13
  $region12: #{model_forward.1} parent=0 // pred_region
    _
  $region13: #{model_forward.1} parent=0 // pred_fallthru
    _
  // Predicated region
  $region14: #{model_forward.1} parent=0 // pred_check
    _
  $region15: #{model_forward.1} parent=0 // pred_check_branch
    %19 = sbr.rel (0) target = $region17
  $region16: #{model_forward.1} parent=0 // pred_region
    _
  $region17: #{model_forward.1} parent=0 // pred_fallthru
    _
  // Predicated region
  $region18: #{model_forward.1} parent=0 // pred_check
    _
  $region19: #{model_forward.1} parent=0 // pred_check_branch
    %21 = sbr.rel (0) target = $region21
  $region20: #{model_forward.1} parent=0 // pred_region
    _
  $region21: #{model_forward.1} parent=0 // pred_fallthru
    _
  // Predicated region
  $region22: #{model_forward.1} parent=0 // pred_check
    _
  $region23: #{model_forward.1} parent=0 // pred_check_branch
    %23 = sbr.rel (0) target = $region25
  $region24: #{model_forward.1} parent=0 // pred_region
    _
  $region25: #{model_forward.1} parent=0 // pred_fallthru
    _
  // Predicated region
  $region26: #{model_forward.1} parent=0 // pred_check
    _
  $region27: #{model_forward.1} parent=0 // pred_check_branch
    %25 = sbr.rel (0) target = $region29
  $region28: #{model_forward.1} parent=0 // pred_region
    _
  $region29: #{model_forward.1} parent=0 // pred_fallthru
    _
  %27 = vst [vmem:[#allocation4] sm:$0xff] 0.0
  %vm28 = vcmask 785408
  %29 = vst.msk [vmem:[#allocation4 + $0x8] sm:$0xff] %vm28, 0.0
  %30 = vst [vmem:[#allocation4 + $0x10] sm:$0xff] 0.0
  %31 = vst.msk [vmem:[#allocation4 + $0x18] sm:$0xff] %vm28, 0.0
  %32 = vst [vmem:[#allocation4 + $0x20] sm:$0xff] 0.0
  %33 = vst.msk [vmem:[#allocation4 + $0x28] sm:$0xff] %vm28, 0.0
  %34 = vst [vmem:[#allocation4 + $0x30] sm:$0xff] 0.0
  %35 = vst.msk [vmem:[#allocation4 + $0x38] sm:$0xff] %vm28, 0.0
  %v36 = vlaneseq
  %v37 = vand.u32 %v36, 127
  %v38 = vadd.s32 %v37, 128
  %v39 = vand.u32 %v37, 15
  %v40 = vand.u32 %v38, 15
  %vm41 = vcmp.lt.s32.totalorder %v39, 11
  %vm42 = vcmp.lt.s32.totalorder %v40, 11
  %v43 = vsel %vm41, 1, 0
  %v44 = vsel %vm42, 1, 0
  %v45 = vcvt.s32.f32 %v43
  %v46 = vcvt.s32.f32 %v44
  %v47 = vld [vmem:[%s0] sm:$0xff]
  %v48 = vld [vmem:[%s0 + $0x8] sm:$0xff]
  %v49 = vld [vmem:[%s0 + $0x10] sm:$0xff]
  %v50 = vld [vmem:[%s0 + $0x18] sm:$0xff]
  %v51 = vld [vmem:[%s0 + $0x20] sm:$0xff]
  %v52 = vld [vmem:[%s0 + $0x28] sm:$0xff]
  %v53 = vld [vmem:[%s0 + $0x30] sm:$0xff]
  %v54 = vld [vmem:[%s0 + $0x38] sm:$0xff]
  %v55 = vld [vmem:[%s0 + $0x40] sm:$0xff]
  %v56 = vld [vmem:[%s0 + $0x48] sm:$0xff]
  %v57 = vld [vmem:[%s0 + $0x50] sm:$0xff]
  %v58 = vld [vmem:[%s0 + $0x58] sm:$0xff]
  %v59 = vld [vmem:[%s0 + $0x60] sm:$0xff]
  %v60 = vld [vmem:[%s0 + $0x68] sm:$0xff]
  %v61 = vld [vmem:[%s0 + $0x70] sm:$0xff]
  %v62 = vld [vmem:[%s0 + $0x78] sm:$0xff]
  %v63 = vld [vmem:[%s0 + $0x80] sm:$0xff]
  %v64 = vld [vmem:[%s0 + $0x88] sm:$0xff]
  %v65 = vld [vmem:[%s0 + $0x90] sm:$0xff]
  %v66 = vld [vmem:[%s0 + $0x98] sm:$0xff]
  %v67 = vld [vmem:[%s0 + $0xa0] sm:$0xff]
  %v68 = vld [vmem:[%s0 + $0xa8] sm:$0xff]
  %v69 = vld [vmem:[%s0 + $0xb0] sm:$0xff]
  %v70 = vld [vmem:[%s0 + $0xb8] sm:$0xff]
  %v71 = vld [vmem:[%s0 + $0xc0] sm:$0xff]
  %v72 = vld [vmem:[%s0 + $0xc8] sm:$0xff]
  %v73 = vld [vmem:[%s0 + $0xd0] sm:$0xff]
  %v74 = vld [vmem:[%s0 + $0xd8] sm:$0xff]
  %v75 = vld [vmem:[%s0 + $0xe0] sm:$0xff]
  %v76 = vld [vmem:[%s0 + $0xe8] sm:$0xff]
  %v77 = vld [vmem:[%s0 + $0xf0] sm:$0xff]
  %v78 = vld [vmem:[%s0 + $0xf8] sm:$0xff]
  %v79 = vld [vmem:[%s0 + $0x100] sm:$0xff]
  %v80 = vld [vmem:[%s0 + $0x108] sm:$0xff]
  %v81 = vld [vmem:[%s0 + $0x110] sm:$0xff]
  %v82 = vld [vmem:[%s0 + $0x118] sm:$0xff]
  %v83 = vld [vmem:[%s0 + $0x120] sm:$0xff]
  %v84 = vld [vmem:[%s0 + $0x128] sm:$0xff]
  %v85 = vld [vmem:[%s0 + $0x130] sm:$0xff]
  %v86 = vld [vmem:[%s0 + $0x138] sm:$0xff]
  %v87 = vld [vmem:[%s0 + $0x140] sm:$0xff]
  %v88 = vld [vmem:[%s0 + $0x148] sm:$0xff]
  %v89 = vld [vmem:[%s0 + $0x150] sm:$0xff]
  %v90 = vld [vmem:[%s0 + $0x158] sm:$0xff]
  %v91 = vld [vmem:[%s0 + $0x160] sm:$0xff]
  %v92 = vld [vmem:[%s0 + $0x168] sm:$0xff]
  %v93 = vld [vmem:[%s0 + $0x170] sm:$0xff]
  %v94 = vld [vmem:[%s0 + $0x178] sm:$0xff]
  %v95 = vld [vmem:[%s0 + $0x180] sm:$0xff]
  %v96 = vld [vmem:[%s0 + $0x188] sm:$0xff]
  %v97 = vld [vmem:[%s0 + $0x190] sm:$0xff]
  %v98 = vld [vmem:[%s0 + $0x198] sm:$0xff]
  %v99 = vld [vmem:[%s0 + $0x1a0] sm:$0xff]
  %v100 = vld [vmem:[%s0 + $0x1a8] sm:$0xff]
  %v101 = vld [vmem:[%s0 + $0x1b0] sm:$0xff]
  %v102 = vld [vmem:[%s0 + $0x1b8] sm:$0xff]
  %v103 = vld [vmem:[%s0 + $0x1c0] sm:$0xff]
  %v104 = vld [vmem:[%s0 + $0x1c8] sm:$0xff]
  %v105 = vld [vmem:[%s0 + $0x1d0] sm:$0xff]
  %v106 = vld [vmem:[%s0 + $0x1d8] sm:$0xff]
  %v107 = vld [vmem:[%s0 + $0x1e0] sm:$0xff]
  %v108 = vld [vmem:[%s0 + $0x1e8] sm:$0xff]
  %v109 = vld [vmem:[%s0 + $0x1f0] sm:$0xff]
  %v110 = vld [vmem:[%s0 + $0x1f8] sm:$0xff]
  %v111 = vld [vmem:[%s0 + $0x200] sm:$0xff]
  %v112 = vld [vmem:[%s0 + $0x208] sm:$0xff]
  %v113 = vld [vmem:[%s0 + $0x210] sm:$0xff]
  %v114 = vld [vmem:[%s0 + $0x218] sm:$0xff]
  %v115 = vld [vmem:[%s0 + $0x220] sm:$0xff]
  %v116 = vld [vmem:[%s0 + $0x228] sm:$0xff]
  %v117 = vld [vmem:[%s0 + $0x230] sm:$0xff]
  %v118 = vld [vmem:[%s0 + $0x238] sm:$0xff]
  %v119 = vld [vmem:[%s0 + $0x240] sm:$0xff]
  %v120 = vld [vmem:[%s0 + $0x248] sm:$0xff]
  %v121 = vld [vmem:[%s0 + $0x250] sm:$0xff]
  %v122 = vld [vmem:[%s0 + $0x258] sm:$0xff]
  %v123 = vld [vmem:[%s0 + $0x260] sm:$0xff]
  %v124 = vld [vmem:[%s0 + $0x268] sm:$0xff]
  %v125 = vld [vmem:[%s0 + $0x270] sm:$0xff]
  %v126 = vld [vmem:[%s0 + $0x278] sm:$0xff]
  %v127 = vld [vmem:[%s0 + $0x280] sm:$0xff]
  %v128 = vld [vmem:[%s0 + $0x288] sm:$0xff]
  %v129 = vld [vmem:[%s0 + $0x290] sm:$0xff]
  %v130 = vld [vmem:[%s0 + $0x298] sm:$0xff]
  %v131 = vld [vmem:[%s0 + $0x2a0] sm:$0xff]
  %v132 = vld [vmem:[%s0 + $0x2a8] sm:$0xff]
  %v133 = vld [vmem:[%s0 + $0x2b0] sm:$0xff]
  %v134 = vld [vmem:[%s0 + $0x2b8] sm:$0xff]
  %v135 = vld [vmem:[%s0 + $0x2c0] sm:$0xff]
  %v136 = vld [vmem:[%s0 + $0x2c8] sm:$0xff]
  %v137 = vld [vmem:[%s0 + $0x2d0] sm:$0xff]
  %v138 = vld [vmem:[%s0 + $0x2d8] sm:$0xff]
  %v139 = vld [vmem:[%s0 + $0x2e0] sm:$0xff]
  %v140 = vld [vmem:[%s0 + $0x2e8] sm:$0xff]
  %v141 = vld [vmem:[%s0 + $0x2f0] sm:$0xff]
  %v142 = vld [vmem:[%s0 + $0x2f8] sm:$0xff]
  %v143 = vld [vmem:[%s0 + $0x300] sm:$0xff]
  %v144 = vld [vmem:[%s0 + $0x308] sm:$0xff]
  %v145 = vld [vmem:[%s0 + $0x310] sm:$0xff]
  %v146 = vld [vmem:[%s0 + $0x318] sm:$0xff]
  %v147 = vld [vmem:[%s0 + $0x320] sm:$0xff]
  %v148 = vld [vmem:[%s0 + $0x328] sm:$0xff]
  %v149 = vld [vmem:[%s0 + $0x330] sm:$0xff]
  %v150 = vld [vmem:[%s0 + $0x338] sm:$0xff]
  %v151 = vld [vmem:[%s0 + $0x340] sm:$0xff]
  %v152 = vld [vmem:[%s0 + $0x348] sm:$0xff]
  %v153 = vld [vmem:[%s0 + $0x350] sm:$0xff]
  %v154 = vld [vmem:[%s0 + $0x358] sm:$0xff]
  %v155 = vld [vmem:[%s0 + $0x360] sm:$0xff]
  %v156 = vld [vmem:[%s0 + $0x368] sm:$0xff]
  %v157 = vld [vmem:[%s0 + $0x370] sm:$0xff]
  %v158 = vld [vmem:[%s0 + $0x378] sm:$0xff]
  %v159 = vld [vmem:[%s0 + $0x380] sm:$0xff]
  %v160 = vld [vmem:[%s0 + $0x388] sm:$0xff]
  %v161 = vld [vmem:[%s0 + $0x390] sm:$0xff]
  %v162 = vld [vmem:[%s0 + $0x398] sm:$0xff]
  %v163 = vld [vmem:[%s0 + $0x3a0] sm:$0xff]
  %v164 = vld [vmem:[%s0 + $0x3a8] sm:$0xff]
  %v165 = vld [vmem:[%s0 + $0x3b0] sm:$0xff]
  %v166 = vld [vmem:[%s0 + $0x3b8] sm:$0xff]
  %v167 = vld [vmem:[%s0 + $0x3c0] sm:$0xff]
  %v168 = vld [vmem:[%s0 + $0x3c8] sm:$0xff]
  %v169 = vld [vmem:[%s0 + $0x3d0] sm:$0xff]
  %v170 = vld [vmem:[%s0 + $0x3d8] sm:$0xff]
  %v171 = vld [vmem:[%s0 + $0x3e0] sm:$0xff]
  %v172 = vld [vmem:[%s1] sm:$0xff]
  %v173 = vld [vmem:[%s1 + $0x8] sm:$0xff]
  %v174 = vld [vmem:[%s1 + $0x10] sm:$0xff]
  %v175 = vld [vmem:[%s1 + $0x18] sm:$0xff]
  %v176 = vld [vmem:[%s1 + $0x20] sm:$0xff]
  %v177 = vld [vmem:[%s1 + $0x28] sm:$0xff]
  %v178 = vld [vmem:[%s1 + $0x30] sm:$0xff]
  %v179 = vld [vmem:[%s1 + $0x38] sm:$0xff]
  %v180 = vld [vmem:[%s1 + $0x40] sm:$0xff]
  %v181 = vld [vmem:[%s1 + $0x48] sm:$0xff]
  %v182 = vld [vmem:[%s1 + $0x50] sm:$0xff]
  %v183 = vld [vmem:[%s1 + $0x58] sm:$0xff]
  %v184 = vld [vmem:[%s1 + $0x60] sm:$0xff]
  %v185 = vld [vmem:[%s1 + $0x68] sm:$0xff]
  %v186 = vld [vmem:[%s1 + $0x70] sm:$0xff]
  %v187 = vld [vmem:[%s1 + $0x78] sm:$0xff]
  %v188 = vld [vmem:[%s1 + $0x80] sm:$0xff]
  %v189 = vld [vmem:[%s1 + $0x88] sm:$0xff]
  %v190 = vld [vmem:[%s1 + $0x90] sm:$0xff]
  %v191 = vld [vmem:[%s1 + $0x98] sm:$0xff]
  %v192 = vld [vmem:[%s1 + $0xa0] sm:$0xff]
  %v193 = vld [vmem:[%s1 + $0xa8] sm:$0xff]
  %v194 = vld [vmem:[%s1 + $0xb0] sm:$0xff]
  %v195 = vld [vmem:[%s1 + $0xb8] sm:$0xff]
  %v196 = vld [vmem:[%s1 + $0xc0] sm:$0xff]
  %v197 = vld [vmem:[%s1 + $0xc8] sm:$0xff]
  %v198 = vld [vmem:[%s1 + $0xd0] sm:$0xff]
  %v199 = vld [vmem:[%s1 + $0xd8] sm:$0xff]
  %v200 = vld [vmem:[%s1 + $0xe0] sm:$0xff]
  %v201 = vld [vmem:[%s1 + $0xe8] sm:$0xff]
  %v202 = vld [vmem:[%s1 + $0xf0] sm:$0xff]
  %v203 = vld [vmem:[%s1 + $0xf8] sm:$0xff]
  %v204 = vld [vmem:[%s1 + $0x100] sm:$0xff]
  %v205 = vld [vmem:[%s1 + $0x108] sm:$0xff]
  %v206 = vld [vmem:[%s1 + $0x110] sm:$0xff]
  %v207 = vld [vmem:[%s1 + $0x118] sm:$0xff]
  %v208 = vld [vmem:[%s1 + $0x120] sm:$0xff]
  %v209 = vld [vmem:[%s1 + $0x128] sm:$0xff]
  %v210 = vld [vmem:[%s1 + $0x130] sm:$0xff]
  %v211 = vld [vmem:[%s1 + $0x138] sm:$0xff]
  %v212 = vld [vmem:[%s1 + $0x140] sm:$0xff]
  %v213 = vld [vmem:[%s1 + $0x148] sm:$0xff]
  %v214 = vld [vmem:[%s1 + $0x150] sm:$0xff]
  %v215 = vld [vmem:[%s1 + $0x158] sm:$0xff]
  %v216 = vld [vmem:[%s1 + $0x160] sm:$0xff]
  %v217 = vld [vmem:[%s1 + $0x168] sm:$0xff]
  %v218 = vld [vmem:[%s1 + $0x170] sm:$0xff]
  %v219 = vld [vmem:[%s1 + $0x178] sm:$0xff]
  %v220 = vld [vmem:[%s1 + $0x180] sm:$0xff]
  %v221 = vld [vmem:[%s1 + $0x188] sm:$0xff]
  %v222 = vld [vmem:[%s1 + $0x190] sm:$0xff]
  %v223 = vld [vmem:[%s1 + $0x198] sm:$0xff]
  %v224 = vld [vmem:[%s1 + $0x1a0] sm:$0xff]
  %v225 = vld [vmem:[%s1 + $0x1a8] sm:$0xff]
  %v226 = vld [vmem:[%s1 + $0x1b0] sm:$0xff]
  %v227 = vld [vmem:[%s1 + $0x1b8] sm:$0xff]
  %v228 = vld [vmem:[%s1 + $0x1c0] sm:$0xff]
  %v229 = vld [vmem:[%s1 + $0x1c8] sm:$0xff]
  %v230 = vld [vmem:[%s1 + $0x1d0] sm:$0xff]
  %v231 = vld [vmem:[%s1 + $0x1d8] sm:$0xff]
  %v232 = vld [vmem:[%s1 + $0x1e0] sm:$0xff]
  %v233 = vld [vmem:[%s1 + $0x1e8] sm:$0xff]
  %v234 = vld [vmem:[%s1 + $0x1f0] sm:$0xff]
  %v235 = vld [vmem:[%s1 + $0x1f8] sm:$0xff]
  %v236 = vld [vmem:[%s1 + $0x200] sm:$0xff]
  %v237 = vld [vmem:[%s1 + $0x208] sm:$0xff]
  %v238 = vld [vmem:[%s1 + $0x210] sm:$0xff]
  %v239 = vld [vmem:[%s1 + $0x218] sm:$0xff]
  %v240 = vld [vmem:[%s1 + $0x220] sm:$0xff]
  %v241 = vld [vmem:[%s1 + $0x228] sm:$0xff]
  %v242 = vld [vmem:[%s1 + $0x230] sm:$0xff]
  %v243 = vld [vmem:[%s1 + $0x238] sm:$0xff]
  %v244 = vld [vmem:[%s1 + $0x240] sm:$0xff]
  %v245 = vld [vmem:[%s1 + $0x248] sm:$0xff]
  %v246 = vld [vmem:[%s1 + $0x250] sm:$0xff]
  %v247 = vld [vmem:[%s1 + $0x258] sm:$0xff]
  %v248 = vld [vmem:[%s1 + $0x260] sm:$0xff]
  %v249 = vld [vmem:[%s1 + $0x268] sm:$0xff]
  %v250 = vld [vmem:[%s1 + $0x270] sm:$0xff]
  %v251 = vld [vmem:[%s1 + $0x278] sm:$0xff]
  %v252 = vld [vmem:[%s1 + $0x280] sm:$0xff]
  %v253 = vld [vmem:[%s1 + $0x288] sm:$0xff]
  %v254 = vld [vmem:[%s1 + $0x290] sm:$0xff]
  %v255 = vld [vmem:[%s1 + $0x298] sm:$0xff]
  %v256 = vld [vmem:[%s1 + $0x2a0] sm:$0xff]
  %v257 = vld [vmem:[%s1 + $0x2a8] sm:$0xff]
  %v258 = vld [vmem:[%s1 + $0x2b0] sm:$0xff]
  %v259 = vld [vmem:[%s1 + $0x2b8] sm:$0xff]
  %v260 = vld [vmem:[%s1 + $0x2c0] sm:$0xff]
  %v261 = vld [vmem:[%s1 + $0x2c8] sm:$0xff]
  %v262 = vld [vmem:[%s1 + $0x2d0] sm:$0xff]
  %v263 = vld [vmem:[%s1 + $0x2d8] sm:$0xff]
  %v264 = vld [vmem:[%s1 + $0x2e0] sm:$0xff]
  %v265 = vld [vmem:[%s1 + $0x2e8] sm:$0xff]
  %v266 = vld [vmem:[%s1 + $0x2f0] sm:$0xff]
  %v267 = vld [vmem:[%s1 + $0x2f8] sm:$0xff]
  %v268 = vld [vmem:[%s1 + $0x300] sm:$0xff]
  %v269 = vld [vmem:[%s1 + $0x308] sm:$0xff]
  %v270 = vld [vmem:[%s1 + $0x310] sm:$0xff]
  %v271 = vld [vmem:[%s1 + $0x318] sm:$0xff]
  %v272 = vld [vmem:[%s1 + $0x320] sm:$0xff]
  %v273 = vld [vmem:[%s1 + $0x328] sm:$0xff]
  %v274 = vld [vmem:[%s1 + $0x330] sm:$0xff]
  %v275 = vld [vmem:[%s1 + $0x338] sm:$0xff]
  %v276 = vld [vmem:[%s1 + $0x340] sm:$0xff]
  %v277 = vld [vmem:[%s1 + $0x348] sm:$0xff]
  %v278 = vld [vmem:[%s1 + $0x350] sm:$0xff]
  %v279 = vld [vmem:[%s1 + $0x358] sm:$0xff]
  %v280 = vld [vmem:[%s1 + $0x360] sm:$0xff]
  %v281 = vld [vmem:[%s1 + $0x368] sm:$0xff]
  %v282 = vld [vmem:[%s1 + $0x370] sm:$0xff]
  %v283 = vld [vmem:[%s1 + $0x378] sm:$0xff]
  %v284 = vld [vmem:[%s1 + $0x380] sm:$0xff]
  %v285 = vld [vmem:[%s1 + $0x388] sm:$0xff]
  %v286 = vld [vmem:[%s1 + $0x390] sm:$0xff]
  %v287 = vld [vmem:[%s1 + $0x398] sm:$0xff]
  %v288 = vld [vmem:[%s1 + $0x3a0] sm:$0xff]
  %v289 = vld [vmem:[%s1 + $0x3a8] sm:$0xff]
  %v290 = vld [vmem:[%s1 + $0x3b0] sm:$0xff]
  %v291 = vld [vmem:[%s1 + $0x3b8] sm:$0xff]
  %v292 = vld [vmem:[%s1 + $0x3c0] sm:$0xff]
  %v293 = vld [vmem:[%s1 + $0x3c8] sm:$0xff]
  %v294 = vld [vmem:[%s1 + $0x3d0] sm:$0xff]
  %v295 = vld [vmem:[%s1 + $0x3d8] sm:$0xff]
  %v296 = vld [vmem:[%s1 + $0x3e0] sm:$0xff]
  %v297 = vld [vmem:[%s1 + $0x3e8] sm:$0xff]
  %v298 = vld [vmem:[%s1 + $0x3f0] sm:$0xff]
  %v299 = vld [vmem:[%s1 + $0x3f8] sm:$0xff]
  %v428 = vunpack.c.l.b16 %v172
  %v429 = vunpack.c.h.b16 %v172
  %v430 = vunpack.c.l.b16 %v173
  %v431 = vunpack.c.h.b16 %v173
  %v432 = vunpack.c.l.b16 %v174
  %v433 = vunpack.c.h.b16 %v174
  %v434 = vunpack.c.l.b16 %v175
  %v435 = vunpack.c.h.b16 %v175
  %v436 = vunpack.c.l.b16 %v176
  %v437 = vunpack.c.h.b16 %v176
  %v438 = vunpack.c.l.b16 %v177
  %v439 = vunpack.c.h.b16 %v177
  %v440 = vunpack.c.l.b16 %v178
  %v441 = vunpack.c.h.b16 %v178
  %v442 = vunpack.c.l.b16 %v179
  %v443 = vunpack.c.h.b16 %v179
  %v444 = vunpack.c.l.b16 %v180
  %v445 = vunpack.c.h.b16 %v180
  %v446 = vunpack.c.l.b16 %v181
  %v447 = vunpack.c.h.b16 %v181
  %v448 = vunpack.c.l.b16 %v182
  %v449 = vunpack.c.h.b16 %v182
  %v450 = vunpack.c.l.b16 %v183
  %v451 = vunpack.c.h.b16 %v183
  %v452 = vunpack.c.l.b16 %v184
  %v453 = vunpack.c.h.b16 %v184
  %v454 = vunpack.c.l.b16 %v185
  %v455 = vunpack.c.h.b16 %v185
  %v456 = vunpack.c.l.b16 %v186
  %v457 = vunpack.c.h.b16 %v186
  %v458 = vunpack.c.l.b16 %v187
  %v459 = vunpack.c.h.b16 %v187
  %v460 = vunpack.c.l.b16 %v188
  %v461 = vunpack.c.h.b16 %v188
  %v462 = vunpack.c.l.b16 %v189
  %v463 = vunpack.c.h.b16 %v189
  %v464 = vunpack.c.l.b16 %v190
  %v465 = vunpack.c.h.b16 %v190
  %v466 = vunpack.c.l.b16 %v191
  %v467 = vunpack.c.h.b16 %v191
  %v468 = vunpack.c.l.b16 %v192
  %v469 = vunpack.c.h.b16 %v192
  %v470 = vunpack.c.l.b16 %v193
  %v471 = vunpack.c.h.b16 %v193
  %v472 = vunpack.c.l.b16 %v194
  %v473 = vunpack.c.h.b16 %v194
  %v474 = vunpack.c.l.b16 %v195
  %v475 = vunpack.c.h.b16 %v195
  %v476 = vunpack.c.l.b16 %v196
  %v477 = vunpack.c.h.b16 %v196
  %v478 = vunpack.c.l.b16 %v197
  %v479 = vunpack.c.h.b16 %v197
  %v480 = vunpack.c.l.b16 %v198
  %v481 = vunpack.c.h.b16 %v198
  %v482 = vunpack.c.l.b16 %v199
  %v483 = vunpack.c.h.b16 %v199
  %v484 = vunpack.c.l.b16 %v200
  %v485 = vunpack.c.h.b16 %v200
  %v486 = vunpack.c.l.b16 %v201
  %v487 = vunpack.c.h.b16 %v201
  %v488 = vunpack.c.l.b16 %v202
  %v489 = vunpack.c.h.b16 %v202
  %v490 = vunpack.c.l.b16 %v203
  %v491 = vunpack.c.h.b16 %v203
  %v492 = vunpack.c.l.b16 %v204
  %v493 = vunpack.c.h.b16 %v204
  %v494 = vunpack.c.l.b16 %v205
  %v495 = vunpack.c.h.b16 %v205
  %v496 = vunpack.c.l.b16 %v206
  %v497 = vunpack.c.h.b16 %v206
  %v498 = vunpack.c.l.b16 %v207
  %v499 = vunpack.c.h.b16 %v207
  %v500 = vunpack.c.l.b16 %v208
  %v501 = vunpack.c.h.b16 %v208
  %v502 = vunpack.c.l.b16 %v209
  %v503 = vunpack.c.h.b16 %v209
  %v504 = vunpack.c.l.b16 %v210
  %v505 = vunpack.c.h.b16 %v210
  %v506 = vunpack.c.l.b16 %v211
  %v507 = vunpack.c.h.b16 %v211
  %v508 = vunpack.c.l.b16 %v212
  %v509 = vunpack.c.h.b16 %v212
  %v510 = vunpack.c.l.b16 %v213
  %v511 = vunpack.c.h.b16 %v213
  %v512 = vunpack.c.l.b16 %v214
  %v513 = vunpack.c.h.b16 %v214
  %v514 = vunpack.c.l.b16 %v215
  %v515 = vunpack.c.h.b16 %v215
  %v516 = vunpack.c.l.b16 %v216
  %v517 = vunpack.c.h.b16 %v216
  %v518 = vunpack.c.l.b16 %v217
  %v519 = vunpack.c.h.b16 %v217
  %v520 = vunpack.c.l.b16 %v218
  %v521 = vunpack.c.h.b16 %v218
  %v522 = vunpack.c.l.b16 %v219
  %v523 = vunpack.c.h.b16 %v219
  %v524 = vunpack.c.l.b16 %v220
  %v525 = vunpack.c.h.b16 %v220
  %v526 = vunpack.c.l.b16 %v221
  %v527 = vunpack.c.h.b16 %v221
  %v528 = vunpack.c.l.b16 %v222
  %v529 = vunpack.c.h.b16 %v222
  %v530 = vunpack.c.l.b16 %v223
  %v531 = vunpack.c.h.b16 %v223
  %v532 = vunpack.c.l.b16 %v224
  %v533 = vunpack.c.h.b16 %v224
  %v534 = vunpack.c.l.b16 %v225
  %v535 = vunpack.c.h.b16 %v225
  %v536 = vunpack.c.l.b16 %v226
  %v537 = vunpack.c.h.b16 %v226
  %v538 = vunpack.c.l.b16 %v227
  %v539 = vunpack.c.h.b16 %v227
  %v540 = vunpack.c.l.b16 %v228
  %v541 = vunpack.c.h.b16 %v228
  %v542 = vunpack.c.l.b16 %v229
  %v543 = vunpack.c.h.b16 %v229
  %v544 = vunpack.c.l.b16 %v230
  %v545 = vunpack.c.h.b16 %v230
  %v546 = vunpack.c.l.b16 %v231
  %v547 = vunpack.c.h.b16 %v231
  %v548 = vunpack.c.l.b16 %v232
  %v549 = vunpack.c.h.b16 %v232
  %v550 = vunpack.c.l.b16 %v233
  %v551 = vunpack.c.h.b16 %v233
  %v552 = vunpack.c.l.b16 %v234
  %v553 = vunpack.c.h.b16 %v234
  %v554 = vunpack.c.l.b16 %v235
  %v555 = vunpack.c.h.b16 %v235
  %v556 = vunpack.c.l.b16 %v236
  %v557 = vunpack.c.h.b16 %v236
  %v558 = vunpack.c.l.b16 %v237
  %v559 = vunpack.c.h.b16 %v237
  %v560 = vunpack.c.l.b16 %v238
  %v561 = vunpack.c.h.b16 %v238
  %v562 = vunpack.c.l.b16 %v239
  %v563 = vunpack.c.h.b16 %v239
  %v564 = vunpack.c.l.b16 %v240
  %v565 = vunpack.c.h.b16 %v240
  %v566 = vunpack.c.l.b16 %v241
  %v567 = vunpack.c.h.b16 %v241
  %v568 = vunpack.c.l.b16 %v242
  %v569 = vunpack.c.h.b16 %v242
  %v570 = vunpack.c.l.b16 %v243
  %v571 = vunpack.c.h.b16 %v243
  %v572 = vunpack.c.l.b16 %v244
  %v573 = vunpack.c.h.b16 %v244
  %v574 = vunpack.c.l.b16 %v245
  %v575 = vunpack.c.h.b16 %v245
  %v576 = vunpack.c.l.b16 %v246
  %v577 = vunpack.c.h.b16 %v246
  %v578 = vunpack.c.l.b16 %v247
  %v579 = vunpack.c.h.b16 %v247
  %v580 = vunpack.c.l.b16 %v248
  %v581 = vunpack.c.h.b16 %v248
  %v582 = vunpack.c.l.b16 %v249
  %v583 = vunpack.c.h.b16 %v249
  %v584 = vunpack.c.l.b16 %v250
  %v585 = vunpack.c.h.b16 %v250
  %v586 = vunpack.c.l.b16 %v251
  %v587 = vunpack.c.h.b16 %v251
  %v588 = vunpack.c.l.b16 %v252
  %v589 = vunpack.c.h.b16 %v252
  %v590 = vunpack.c.l.b16 %v253
  %v591 = vunpack.c.h.b16 %v253
  %v592 = vunpack.c.l.b16 %v254
  %v593 = vunpack.c.h.b16 %v254
  %v594 = vunpack.c.l.b16 %v255
  %v595 = vunpack.c.h.b16 %v255
  %v596 = vunpack.c.l.b16 %v256
  %v597 = vunpack.c.h.b16 %v256
  %v598 = vunpack.c.l.b16 %v257
  %v599 = vunpack.c.h.b16 %v257
  %v600 = vunpack.c.l.b16 %v258
  %v601 = vunpack.c.h.b16 %v258
  %v602 = vunpack.c.l.b16 %v259
  %v603 = vunpack.c.h.b16 %v259
  %v604 = vunpack.c.l.b16 %v260
  %v605 = vunpack.c.h.b16 %v260
  %v606 = vunpack.c.l.b16 %v261
  %v607 = vunpack.c.h.b16 %v261
  %v608 = vunpack.c.l.b16 %v262
  %v609 = vunpack.c.h.b16 %v262
  %v610 = vunpack.c.l.b16 %v263
  %v611 = vunpack.c.h.b16 %v263
  %v612 = vunpack.c.l.b16 %v264
  %v613 = vunpack.c.h.b16 %v264
  %v614 = vunpack.c.l.b16 %v265
  %v615 = vunpack.c.h.b16 %v265
  %v616 = vunpack.c.l.b16 %v266
  %v617 = vunpack.c.h.b16 %v266
  %v618 = vunpack.c.l.b16 %v267
  %v619 = vunpack.c.h.b16 %v267
  %v620 = vunpack.c.l.b16 %v268
  %v621 = vunpack.c.h.b16 %v268
  %v622 = vunpack.c.l.b16 %v269
  %v623 = vunpack.c.h.b16 %v269
  %v624 = vunpack.c.l.b16 %v270
  %v625 = vunpack.c.h.b16 %v270
  %v626 = vunpack.c.l.b16 %v271
  %v627 = vunpack.c.h.b16 %v271
  %v628 = vunpack.c.l.b16 %v272
  %v629 = vunpack.c.h.b16 %v272
  %v630 = vunpack.c.l.b16 %v273
  %v631 = vunpack.c.h.b16 %v273
  %v632 = vunpack.c.l.b16 %v274
  %v633 = vunpack.c.h.b16 %v274
  %v634 = vunpack.c.l.b16 %v275
  %v635 = vunpack.c.h.b16 %v275
  %v636 = vunpack.c.l.b16 %v276
  %v637 = vunpack.c.h.b16 %v276
  %v638 = vunpack.c.l.b16 %v277
  %v639 = vunpack.c.h.b16 %v277
  %v640 = vunpack.c.l.b16 %v278
  %v641 = vunpack.c.h.b16 %v278
  %v642 = vunpack.c.l.b16 %v279
  %v643 = vunpack.c.h.b16 %v279
  %v644 = vunpack.c.l.b16 %v280
  %v645 = vunpack.c.h.b16 %v280
  %v646 = vunpack.c.l.b16 %v281
  %v647 = vunpack.c.h.b16 %v281
  %v648 = vunpack.c.l.b16 %v282
  %v649 = vunpack.c.h.b16 %v282
  %v650 = vunpack.c.l.b16 %v283
  %v651 = vunpack.c.h.b16 %v283
  %v652 = vunpack.c.l.b16 %v284
  %v653 = vunpack.c.h.b16 %v284
  %v654 = vunpack.c.l.b16 %v285
  %v655 = vunpack.c.h.b16 %v285
  %v656 = vunpack.c.l.b16 %v286
  %v657 = vunpack.c.h.b16 %v286
  %v658 = vunpack.c.l.b16 %v287
  %v659 = vunpack.c.h.b16 %v287
  %v660 = vunpack.c.l.b16 %v288
  %v661 = vunpack.c.h.b16 %v288
  %v662 = vunpack.c.l.b16 %v289
  %v663 = vunpack.c.h.b16 %v289
  %v664 = vunpack.c.l.b16 %v290
  %v665 = vunpack.c.h.b16 %v290
  %v666 = vunpack.c.l.b16 %v291
  %v667 = vunpack.c.h.b16 %v291
  %v668 = vunpack.c.l.b16 %v292
  %v669 = vunpack.c.h.b16 %v292
  %v670 = vunpack.c.l.b16 %v293
  %v671 = vunpack.c.h.b16 %v293
  %v672 = vunpack.c.l.b16 %v294
  %v673 = vunpack.c.h.b16 %v294
  %v674 = vunpack.c.l.b16 %v295
  %v675 = vunpack.c.h.b16 %v295
  %v676 = vunpack.c.l.b16 %v296
  %v677 = vunpack.c.h.b16 %v296
  %v678 = vunpack.c.l.b16 %v297
  %v679 = vunpack.c.h.b16 %v297
  %v680 = vunpack.c.l.b16 %v298
  %v681 = vunpack.c.h.b16 %v298
  %v682 = vunpack.c.l.b16 %v299
  %v683 = vunpack.c.h.b16 %v299
  %v684 = vpack.c.b16 %v436, %v428
  %v685 = vpack.c.b16 %v437, %v429
  %v686 = vpack.c.b16 %v438, %v430
  %v687 = vpack.c.b16 %v439, %v431
  %v688 = vpack.c.b16 %v440, %v432
  %v689 = vpack.c.b16 %v441, %v433
  %v690 = vpack.c.b16 %v442, %v434
  %v691 = vpack.c.b16 %v443, %v435
  %v692 = vpack.c.b16 %v452, %v444
  %v693 = vpack.c.b16 %v453, %v445
  %v694 = vpack.c.b16 %v454, %v446
  %v695 = vpack.c.b16 %v455, %v447
  %v696 = vpack.c.b16 %v456, %v448
  %v697 = vpack.c.b16 %v457, %v449
  %v698 = vpack.c.b16 %v458, %v450
  %v699 = vpack.c.b16 %v459, %v451
  %v700 = vpack.c.b16 %v468, %v460
  %v701 = vpack.c.b16 %v469, %v461
  %v702 = vpack.c.b16 %v470, %v462
  %v703 = vpack.c.b16 %v471, %v463
  %v704 = vpack.c.b16 %v472, %v464
  %v705 = vpack.c.b16 %v473, %v465
  %v706 = vpack.c.b16 %v474, %v466
  %v707 = vpack.c.b16 %v475, %v467
  %v708 = vpack.c.b16 %v484, %v476
  %v709 = vpack.c.b16 %v485, %v477
  %v710 = vpack.c.b16 %v486, %v478
  %v711 = vpack.c.b16 %v487, %v479
  %v712 = vpack.c.b16 %v488, %v480
  %v713 = vpack.c.b16 %v489, %v481
  %v714 = vpack.c.b16 %v490, %v482
  %v715 = vpack.c.b16 %v491, %v483
  %v716 = vpack.c.b16 %v500, %v492
  %v717 = vpack.c.b16 %v501, %v493
  %v718 = vpack.c.b16 %v502, %v494
  %v719 = vpack.c.b16 %v503, %v495
  %v720 = vpack.c.b16 %v504, %v496
  %v721 = vpack.c.b16 %v505, %v497
  %v722 = vpack.c.b16 %v506, %v498
  %v723 = vpack.c.b16 %v507, %v499
  %v724 = vpack.c.b16 %v516, %v508
  %v725 = vpack.c.b16 %v517, %v509
  %v726 = vpack.c.b16 %v518, %v510
  %v727 = vpack.c.b16 %v519, %v511
  %v728 = vpack.c.b16 %v520, %v512
  %v729 = vpack.c.b16 %v521, %v513
  %v730 = vpack.c.b16 %v522, %v514
  %v731 = vpack.c.b16 %v523, %v515
  %v732 = vpack.c.b16 %v532, %v524
  %v733 = vpack.c.b16 %v533, %v525
  %v734 = vpack.c.b16 %v534, %v526
  %v735 = vpack.c.b16 %v535, %v527
  %v736 = vpack.c.b16 %v536, %v528
  %v737 = vpack.c.b16 %v537, %v529
  %v738 = vpack.c.b16 %v538, %v530
  %v739 = vpack.c.b16 %v539, %v531
  %v740 = vpack.c.b16 %v548, %v540
  %v741 = vpack.c.b16 %v549, %v541
  %v742 = vpack.c.b16 %v550, %v542
  %v743 = vpack.c.b16 %v551, %v543
  %v744 = vpack.c.b16 %v552, %v544
  %v745 = vpack.c.b16 %v553, %v545
  %v746 = vpack.c.b16 %v554, %v546
  %v747 = vpack.c.b16 %v555, %v547
  %v748 = vpack.c.b16 %v564, %v556
  %v749 = vpack.c.b16 %v565, %v557
  %v750 = vpack.c.b16 %v566, %v558
  %v751 = vpack.c.b16 %v567, %v559
  %v752 = vpack.c.b16 %v568, %v560
  %v753 = vpack.c.b16 %v569, %v561
  %v754 = vpack.c.b16 %v570, %v562
  %v755 = vpack.c.b16 %v571, %v563
  %v756 = vpack.c.b16 %v580, %v572
  %v757 = vpack.c.b16 %v581, %v573
  %v758 = vpack.c.b16 %v582, %v574
  %v759 = vpack.c.b16 %v583, %v575
  %v760 = vpack.c.b16 %v584, %v576
  %v761 = vpack.c.b16 %v585, %v577
  %v762 = vpack.c.b16 %v586, %v578
  %v763 = vpack.c.b16 %v587, %v579
  %v764 = vpack.c.b16 %v596, %v588
  %v765 = vpack.c.b16 %v597, %v589
  %v766 = vpack.c.b16 %v598, %v590
  %v767 = vpack.c.b16 %v599, %v591
  %v768 = vpack.c.b16 %v600, %v592
  %v769 = vpack.c.b16 %v601, %v593
  %v770 = vpack.c.b16 %v602, %v594
  %v771 = vpack.c.b16 %v603, %v595
  %v772 = vpack.c.b16 %v612, %v604
  %v773 = vpack.c.b16 %v613, %v605
  %v774 = vpack.c.b16 %v614, %v606
  %v775 = vpack.c.b16 %v615, %v607
  %v776 = vpack.c.b16 %v616, %v608
  %v777 = vpack.c.b16 %v617, %v609
  %v778 = vpack.c.b16 %v618, %v610
  %v779 = vpack.c.b16 %v619, %v611
  %v780 = vpack.c.b16 %v628, %v620
  %v781 = vpack.c.b16 %v629, %v621
  %v782 = vpack.c.b16 %v630, %v622
  %v783 = vpack.c.b16 %v631, %v623
  %v784 = vpack.c.b16 %v632, %v624
  %v785 = vpack.c.b16 %v633, %v625
  %v786 = vpack.c.b16 %v634, %v626
  %v787 = vpack.c.b16 %v635, %v627
  %v788 = vpack.c.b16 %v644, %v636
  %v789 = vpack.c.b16 %v645, %v637
  %v790 = vpack.c.b16 %v646, %v638
  %v791 = vpack.c.b16 %v647, %v639
  %v792 = vpack.c.b16 %v648, %v640
  %v793 = vpack.c.b16 %v649, %v641
  %v794 = vpack.c.b16 %v650, %v642
  %v795 = vpack.c.b16 %v651, %v643
  %v796 = vpack.c.b16 %v660, %v652
  %v797 = vpack.c.b16 %v661, %v653
  %v798 = vpack.c.b16 %v662, %v654
  %v799 = vpack.c.b16 %v663, %v655
  %v800 = vpack.c.b16 %v664, %v656
  %v801 = vpack.c.b16 %v665, %v657
  %v802 = vpack.c.b16 %v666, %v658
  %v803 = vpack.c.b16 %v667, %v659
  %v804 = vpack.c.b16 %v676, %v668
  %v805 = vpack.c.b16 %v677, %v669
  %v806 = vpack.c.b16 %v678, %v670
  %v807 = vpack.c.b16 %v679, %v671
  %v808 = vpack.c.b16 %v680, %v672
  %v809 = vpack.c.b16 %v681, %v673
  %v810 = vpack.c.b16 %v682, %v674
  %v811 = vpack.c.b16 %v683, %v675
  %v1049 = vunpack.c.l.b16 %v47
  %v1050 = vunpack.c.h.b16 %v47
  %v1051 = vunpack.c.l.b16 %v48
  %v1052 = vunpack.c.h.b16 %v48
  %v1053 = vunpack.c.l.b16 %v49
  %v1054 = vunpack.c.h.b16 %v49
  %v1055 = vunpack.c.l.b16 %v50
  %v1056 = vunpack.c.h.b16 %v50
  %v1057 = vunpack.c.l.b16 %v51
  %v1058 = vunpack.c.h.b16 %v51
  %v1059 = vunpack.c.l.b16 %v52
  %v1060 = vunpack.c.h.b16 %v52
  %v1061 = vunpack.c.l.b16 %v53
  %v1062 = vunpack.c.h.b16 %v53
  %v1063 = vunpack.c.l.b16 %v54
  %v1064 = vunpack.c.h.b16 %v54
  %v1065 = vunpack.c.l.b16 %v55
  %v1066 = vunpack.c.h.b16 %v55
  %v1067 = vunpack.c.l.b16 %v56
  %v1068 = vunpack.c.h.b16 %v56
  %v1069 = vunpack.c.l.b16 %v57
  %v1070 = vunpack.c.h.b16 %v57
  %v1071 = vunpack.c.l.b16 %v58
  %v1072 = vunpack.c.h.b16 %v58
  %v1073 = vunpack.c.l.b16 %v59
  %v1074 = vunpack.c.h.b16 %v59
  %v1075 = vunpack.c.l.b16 %v60
  %v1076 = vunpack.c.h.b16 %v60
  %v1077 = vunpack.c.l.b16 %v61
  %v1078 = vunpack.c.h.b16 %v61
  %v1079 = vunpack.c.l.b16 %v62
  %v1080 = vunpack.c.h.b16 %v62
  %v1081 = vunpack.c.l.b16 %v63
  %v1082 = vunpack.c.h.b16 %v63
  %v1083 = vunpack.c.l.b16 %v64
  %v1084 = vunpack.c.h.b16 %v64
  %v1085 = vunpack.c.l.b16 %v65
  %v1086 = vunpack.c.h.b16 %v65
  %v1087 = vunpack.c.l.b16 %v66
  %v1088 = vunpack.c.h.b16 %v66
  %v1089 = vunpack.c.l.b16 %v67
  %v1090 = vunpack.c.h.b16 %v67
  %v1091 = vunpack.c.l.b16 %v68
  %v1092 = vunpack.c.h.b16 %v68
  %v1093 = vunpack.c.l.b16 %v69
  %v1094 = vunpack.c.h.b16 %v69
  %v1095 = vunpack.c.l.b16 %v70
  %v1096 = vunpack.c.h.b16 %v70
  %v1097 = vunpack.c.l.b16 %v71
  %v1098 = vunpack.c.h.b16 %v71
  %v1099 = vunpack.c.l.b16 %v72
  %v1100 = vunpack.c.h.b16 %v72
  %v1101 = vunpack.c.l.b16 %v73
  %v1102 = vunpack.c.h.b16 %v73
  %v1103 = vunpack.c.l.b16 %v74
  %v1104 = vunpack.c.h.b16 %v74
  %v1105 = vunpack.c.l.b16 %v75
  %v1106 = vunpack.c.h.b16 %v75
  %v1107 = vunpack.c.l.b16 %v76
  %v1108 = vunpack.c.h.b16 %v76
  %v1109 = vunpack.c.l.b16 %v77
  %v1110 = vunpack.c.h.b16 %v77
  %v1111 = vunpack.c.l.b16 %v78
  %v1112 = vunpack.c.h.b16 %v78
  %v1113 = vunpack.c.l.b16 %v79
  %v1114 = vunpack.c.h.b16 %v79
  %v1115 = vunpack.c.l.b16 %v80
  %v1116 = vunpack.c.h.b16 %v80
  %v1117 = vunpack.c.l.b16 %v81
  %v1118 = vunpack.c.h.b16 %v81
  %v1119 = vunpack.c.l.b16 %v82
  %v1120 = vunpack.c.h.b16 %v82
  %v1121 = vunpack.c.l.b16 %v83
  %v1122 = vunpack.c.h.b16 %v83
  %v1123 = vunpack.c.l.b16 %v84
  %v1124 = vunpack.c.h.b16 %v84
  %v1125 = vunpack.c.l.b16 %v85
  %v1126 = vunpack.c.h.b16 %v85
  %v1127 = vunpack.c.l.b16 %v86
  %v1128 = vunpack.c.h.b16 %v86
  %v1129 = vunpack.c.l.b16 %v87
  %v1130 = vunpack.c.h.b16 %v87
  %v1131 = vunpack.c.l.b16 %v88
  %v1132 = vunpack.c.h.b16 %v88
  %v1133 = vunpack.c.l.b16 %v89
  %v1134 = vunpack.c.h.b16 %v89
  %v1135 = vunpack.c.l.b16 %v90
  %v1136 = vunpack.c.h.b16 %v90
  %v1137 = vunpack.c.l.b16 %v91
  %v1138 = vunpack.c.h.b16 %v91
  %v1139 = vunpack.c.l.b16 %v92
  %v1140 = vunpack.c.h.b16 %v92
  %v1141 = vunpack.c.l.b16 %v93
  %v1142 = vunpack.c.h.b16 %v93
  %v1143 = vunpack.c.l.b16 %v94
  %v1144 = vunpack.c.h.b16 %v94
  %v1145 = vunpack.c.l.b16 %v95
  %v1146 = vunpack.c.h.b16 %v95
  %v1147 = vunpack.c.l.b16 %v96
  %v1148 = vunpack.c.h.b16 %v96
  %v1149 = vunpack.c.l.b16 %v97
  %v1150 = vunpack.c.h.b16 %v97
  %v1151 = vunpack.c.l.b16 %v98
  %v1152 = vunpack.c.h.b16 %v98
  %v1153 = vunpack.c.l.b16 %v99
  %v1154 = vunpack.c.h.b16 %v99
  %v1155 = vunpack.c.l.b16 %v100
  %v1156 = vunpack.c.h.b16 %v100
  %v1157 = vunpack.c.l.b16 %v101
  %v1158 = vunpack.c.h.b16 %v101
  %v1159 = vunpack.c.l.b16 %v102
  %v1160 = vunpack.c.h.b16 %v102
  %v1161 = vunpack.c.l.b16 %v103
  %v1162 = vunpack.c.h.b16 %v103
  %v1163 = vunpack.c.l.b16 %v104
  %v1164 = vunpack.c.h.b16 %v104
  %v1165 = vunpack.c.l.b16 %v105
  %v1166 = vunpack.c.h.b16 %v105
  %v1167 = vunpack.c.l.b16 %v106
  %v1168 = vunpack.c.h.b16 %v106
  %v1169 = vunpack.c.l.b16 %v107
  %v1170 = vunpack.c.h.b16 %v107
  %v1171 = vunpack.c.l.b16 %v108
  %v1172 = vunpack.c.h.b16 %v108
  %v1173 = vunpack.c.l.b16 %v109
  %v1174 = vunpack.c.h.b16 %v109
  %v1175 = vunpack.c.l.b16 %v110
  %v1176 = vunpack.c.h.b16 %v110
  %v1177 = vunpack.c.l.b16 %v111
  %v1178 = vunpack.c.h.b16 %v111
  %v1179 = vunpack.c.l.b16 %v112
  %v1180 = vunpack.c.h.b16 %v112
  %v1181 = vunpack.c.l.b16 %v113
  %v1182 = vunpack.c.h.b16 %v113
  %v1183 = vunpack.c.l.b16 %v114
  %v1184 = vunpack.c.h.b16 %v114
  %v1185 = vunpack.c.l.b16 %v115
  %v1186 = vunpack.c.h.b16 %v115
  %v1187 = vunpack.c.l.b16 %v116
  %v1188 = vunpack.c.h.b16 %v116
  %v1189 = vunpack.c.l.b16 %v117
  %v1190 = vunpack.c.h.b16 %v117
  %v1191 = vunpack.c.l.b16 %v118
  %v1192 = vunpack.c.h.b16 %v118
  %v1193 = vunpack.c.l.b16 %v119
  %v1194 = vunpack.c.h.b16 %v119
  %v1195 = vunpack.c.l.b16 %v120
  %v1196 = vunpack.c.h.b16 %v120
  %v1197 = vunpack.c.l.b16 %v121
  %v1198 = vunpack.c.h.b16 %v121
  %v1199 = vunpack.c.l.b16 %v122
  %v1200 = vunpack.c.h.b16 %v122
  %v1201 = vunpack.c.l.b16 %v123
  %v1202 = vunpack.c.h.b16 %v123
  %v1203 = vunpack.c.l.b16 %v124
  %v1204 = vunpack.c.h.b16 %v124
  %v1205 = vunpack.c.l.b16 %v125
  %v1206 = vunpack.c.h.b16 %v125
  %v1207 = vunpack.c.l.b16 %v126
  %v1208 = vunpack.c.h.b16 %v126
  %v1209 = vunpack.c.l.b16 %v127
  %v1210 = vunpack.c.h.b16 %v127
  %v1211 = vunpack.c.l.b16 %v128
  %v1212 = vunpack.c.h.b16 %v128
  %v1213 = vunpack.c.l.b16 %v129
  %v1214 = vunpack.c.h.b16 %v129
  %v1215 = vunpack.c.l.b16 %v130
  %v1216 = vunpack.c.h.b16 %v130
  %v1217 = vunpack.c.l.b16 %v131
  %v1218 = vunpack.c.h.b16 %v131
  %v1219 = vunpack.c.l.b16 %v132
  %v1220 = vunpack.c.h.b16 %v132
  %v1221 = vunpack.c.l.b16 %v133
  %v1222 = vunpack.c.h.b16 %v133
  %v1223 = vunpack.c.l.b16 %v134
  %v1224 = vunpack.c.h.b16 %v134
  %v1225 = vunpack.c.l.b16 %v135
  %v1226 = vunpack.c.h.b16 %v135
  %v1227 = vunpack.c.l.b16 %v136
  %v1228 = vunpack.c.h.b16 %v136
  %v1229 = vunpack.c.l.b16 %v137
  %v1230 = vunpack.c.h.b16 %v137
  %v1231 = vunpack.c.l.b16 %v138
  %v1232 = vunpack.c.h.b16 %v138
  %v1233 = vunpack.c.l.b16 %v139
  %v1234 = vunpack.c.h.b16 %v139
  %v1235 = vunpack.c.l.b16 %v140
  %v1236 = vunpack.c.h.b16 %v140
  %v1237 = vunpack.c.l.b16 %v141
  %v1238 = vunpack.c.h.b16 %v141
  %v1239 = vunpack.c.l.b16 %v142
  %v1240 = vunpack.c.h.b16 %v142
  %v1241 = vunpack.c.l.b16 %v143
  %v1242 = vunpack.c.h.b16 %v143
  %v1243 = vunpack.c.l.b16 %v144
  %v1244 = vunpack.c.h.b16 %v144
  %v1245 = vunpack.c.l.b16 %v145
  %v1246 = vunpack.c.h.b16 %v145
  %v1247 = vunpack.c.l.b16 %v146
  %v1248 = vunpack.c.h.b16 %v146
  %v1249 = vunpack.c.l.b16 %v147
  %v1250 = vunpack.c.h.b16 %v147
  %v1251 = vunpack.c.l.b16 %v148
  %v1252 = vunpack.c.h.b16 %v148
  %v1253 = vunpack.c.l.b16 %v149
  %v1254 = vunpack.c.h.b16 %v149
  %v1255 = vunpack.c.l.b16 %v150
  %v1256 = vunpack.c.h.b16 %v150
  %v1257 = vunpack.c.l.b16 %v151
  %v1258 = vunpack.c.h.b16 %v151
  %v1259 = vunpack.c.l.b16 %v152
  %v1260 = vunpack.c.h.b16 %v152
  %v1261 = vunpack.c.l.b16 %v153
  %v1262 = vunpack.c.h.b16 %v153
  %v1263 = vunpack.c.l.b16 %v154
  %v1264 = vunpack.c.h.b16 %v154
  %v1265 = vunpack.c.l.b16 %v155
  %v1266 = vunpack.c.h.b16 %v155
  %v1267 = vunpack.c.l.b16 %v156
  %v1268 = vunpack.c.h.b16 %v156
  %v1269 = vunpack.c.l.b16 %v157
  %v1270 = vunpack.c.h.b16 %v157
  %v1271 = vunpack.c.l.b16 %v158
  %v1272 = vunpack.c.h.b16 %v158
  %v1273 = vunpack.c.l.b16 %v159
  %v1274 = vunpack.c.h.b16 %v159
  %v1275 = vunpack.c.l.b16 %v160
  %v1276 = vunpack.c.h.b16 %v160
  %v1277 = vunpack.c.l.b16 %v161
  %v1278 = vunpack.c.h.b16 %v161
  %v1279 = vunpack.c.l.b16 %v162
  %v1280 = vunpack.c.h.b16 %v162
  %v1281 = vunpack.c.l.b16 %v163
  %v1282 = vunpack.c.h.b16 %v163
  %v1283 = vunpack.c.l.b16 %v164
  %v1284 = vunpack.c.h.b16 %v164
  %v1285 = vunpack.c.l.b16 %v165
  %v1286 = vunpack.c.h.b16 %v165
  %v1287 = vunpack.c.l.b16 %v166
  %v1288 = vunpack.c.h.b16 %v166
  %v1289 = vunpack.c.l.b16 %v167
  %v1290 = vunpack.c.h.b16 %v167
  %v1291 = vunpack.c.l.b16 %v168
  %v1292 = vunpack.c.h.b16 %v168
  %v1293 = vunpack.c.l.b16 %v169
  %v1294 = vunpack.c.h.b16 %v169
  %v1295 = vunpack.c.l.b16 %v170
  %v1296 = vunpack.c.h.b16 %v170
  %v1297 = vunpack.c.l.b16 %v171
  %v1298 = vunpack.c.h.b16 %v171
  %v1299 = vpack.c.b16 %v1051, %v1049
  %v1300 = vpack.c.b16 %v1052, %v1050
  %v1301 = vpack.c.b16 %v1055, %v1053
  %v1302 = vpack.c.b16 %v1056, %v1054
  %v1303 = vpack.c.b16 %v1059, %v1057
  %v1304 = vpack.c.b16 %v1060, %v1058
  %v1305 = vpack.c.b16 %v1063, %v1061
  %v1306 = vpack.c.b16 %v1064, %v1062
  %v1307 = vpack.c.b16 %v1067, %v1065
  %v1308 = vpack.c.b16 %v1068, %v1066
  %v1309 = vpack.c.b16 %v1071, %v1069
  %v1310 = vpack.c.b16 %v1072, %v1070
  %v1311 = vpack.c.b16 %v1075, %v1073
  %v1312 = vpack.c.b16 %v1076, %v1074
  %v1313 = vpack.c.b16 %v1079, %v1077
  %v1314 = vpack.c.b16 %v1080, %v1078
  %v1315 = vpack.c.b16 %v1083, %v1081
  %v1316 = vpack.c.b16 %v1084, %v1082
  %v1317 = vpack.c.b16 %v1087, %v1085
  %v1318 = vpack.c.b16 %v1088, %v1086
  %v1319 = vpack.c.b16 %v1091, %v1089
  %v1320 = vpack.c.b16 %v1092, %v1090
  %v1321 = vpack.c.b16 %v1095, %v1093
  %v1322 = vpack.c.b16 %v1096, %v1094
  %v1323 = vpack.c.b16 %v1099, %v1097
  %v1324 = vpack.c.b16 %v1100, %v1098
  %v1325 = vpack.c.b16 %v1103, %v1101
  %v1326 = vpack.c.b16 %v1104, %v1102
  %v1327 = vpack.c.b16 %v1107, %v1105
  %v1328 = vpack.c.b16 %v1108, %v1106
  %v1329 = vpack.c.b16 %v1111, %v1109
  %v1330 = vpack.c.b16 %v1112, %v1110
  %v1331 = vpack.c.b16 %v1115, %v1113
  %v1332 = vpack.c.b16 %v1116, %v1114
  %v1333 = vpack.c.b16 %v1119, %v1117
  %v1334 = vpack.c.b16 %v1120, %v1118
  %v1335 = vpack.c.b16 %v1123, %v1121
  %v1336 = vpack.c.b16 %v1124, %v1122
  %v1337 = vpack.c.b16 %v1127, %v1125
  %v1338 = vpack.c.b16 %v1128, %v1126
  %v1339 = vpack.c.b16 %v1131, %v1129
  %v1340 = vpack.c.b16 %v1132, %v1130
  %v1341 = vpack.c.b16 %v1135, %v1133
  %v1342 = vpack.c.b16 %v1136, %v1134
  %v1343 = vpack.c.b16 %v1139, %v1137
  %v1344 = vpack.c.b16 %v1140, %v1138
  %v1345 = vpack.c.b16 %v1143, %v1141
  %v1346 = vpack.c.b16 %v1144, %v1142
  %v1347 = vpack.c.b16 %v1147, %v1145
  %v1348 = vpack.c.b16 %v1148, %v1146
  %v1349 = vpack.c.b16 %v1151, %v1149
  %v1350 = vpack.c.b16 %v1152, %v1150
  %v1351 = vpack.c.b16 %v1155, %v1153
  %v1352 = vpack.c.b16 %v1156, %v1154
  %v1353 = vpack.c.b16 %v1159, %v1157
  %v1354 = vpack.c.b16 %v1160, %v1158
  %v1355 = vpack.c.b16 %v1163, %v1161
  %v1356 = vpack.c.b16 %v1164, %v1162
  %v1357 = vpack.c.b16 %v1167, %v1165
  %v1358 = vpack.c.b16 %v1168, %v1166
  %v1359 = vpack.c.b16 %v1171, %v1169
  %v1360 = vpack.c.b16 %v1172, %v1170
  %v1361 = vpack.c.b16 %v1175, %v1173
  %v1362 = vpack.c.b16 %v1176, %v1174
  %v1363 = vpack.c.b16 %v1179, %v1177
  %v1364 = vpack.c.b16 %v1180, %v1178
  %v1365 = vpack.c.b16 %v1183, %v1181
  %v1366 = vpack.c.b16 %v1184, %v1182
  %v1367 = vpack.c.b16 %v1187, %v1185
  %v1368 = vpack.c.b16 %v1188, %v1186
  %v1369 = vpack.c.b16 %v1191, %v1189
  %v1370 = vpack.c.b16 %v1192, %v1190
  %v1371 = vpack.c.b16 %v1195, %v1193
  %v1372 = vpack.c.b16 %v1196, %v1194
  %v1373 = vpack.c.b16 %v1199, %v1197
  %v1374 = vpack.c.b16 %v1200, %v1198
  %v1375 = vpack.c.b16 %v1203, %v1201
  %v1376 = vpack.c.b16 %v1204, %v1202
  %v1377 = vpack.c.b16 %v1207, %v1205
  %v1378 = vpack.c.b16 %v1208, %v1206
  %v1379 = vpack.c.b16 %v1211, %v1209
  %v1380 = vpack.c.b16 %v1212, %v1210
  %v1381 = vpack.c.b16 %v1215, %v1213
  %v1382 = vpack.c.b16 %v1216, %v1214
  %v1383 = vpack.c.b16 %v1219, %v1217
  %v1384 = vpack.c.b16 %v1220, %v1218
  %v1385 = vpack.c.b16 %v1223, %v1221
  %v1386 = vpack.c.b16 %v1224, %v1222
  %v1387 = vpack.c.b16 %v1227, %v1225
  %v1388 = vpack.c.b16 %v1228, %v1226
  %v1389 = vpack.c.b16 %v1231, %v1229
  %v1390 = vpack.c.b16 %v1232, %v1230
  %v1391 = vpack.c.b16 %v1235, %v1233
  %v1392 = vpack.c.b16 %v1236, %v1234
  %v1393 = vpack.c.b16 %v1239, %v1237
  %v1394 = vpack.c.b16 %v1240, %v1238
  %v1395 = vpack.c.b16 %v1243, %v1241
  %v1396 = vpack.c.b16 %v1244, %v1242
  %v1397 = vpack.c.b16 %v1247, %v1245
  %v1398 = vpack.c.b16 %v1248, %v1246
  %v1399 = vpack.c.b16 %v1251, %v1249
  %v1400 = vpack.c.b16 %v1252, %v1250
  %v1401 = vpack.c.b16 %v1255, %v1253
  %v1402 = vpack.c.b16 %v1256, %v1254
  %v1403 = vpack.c.b16 %v1259, %v1257
  %v1404 = vpack.c.b16 %v1260, %v1258
  %v1405 = vpack.c.b16 %v1263, %v1261
  %v1406 = vpack.c.b16 %v1264, %v1262
  %v1407 = vpack.c.b16 %v1267, %v1265
  %v1408 = vpack.c.b16 %v1268, %v1266
  %v1409 = vpack.c.b16 %v1271, %v1269
  %v1410 = vpack.c.b16 %v1272, %v1270
  %v1411 = vpack.c.b16 %v1275, %v1273
  %v1412 = vpack.c.b16 %v1276, %v1274
  %v1413 = vpack.c.b16 %v1279, %v1277
  %v1414 = vpack.c.b16 %v1280, %v1278
  %v1415 = vpack.c.b16 %v1283, %v1281
  %v1416 = vpack.c.b16 %v1284, %v1282
  %v1417 = vpack.c.b16 %v1287, %v1285
  %v1418 = vpack.c.b16 %v1288, %v1286
  %v1419 = vpack.c.b16 %v1291, %v1289
  %v1420 = vpack.c.b16 %v1292, %v1290
  %v1421 = vpack.c.b16 %v1295, %v1293
  %v1422 = vpack.c.b16 %v1296, %v1294
  %v1423 = vpack.c.b16 %v1297, %v1297
  %v1424 = vpack.c.b16 %v1298, %v1298
  %vm1549 = vcmask 850944
  %v1551 = vsel %vm1549, %v691, 0
  %v1554 = vsel %vm1549, %v699, 0
  %v1557 = vsel %vm1549, %v707, 0
  %v1560 = vsel %vm1549, %v715, 0
  %v1563 = vsel %vm1549, %v723, 0
  %v1566 = vsel %vm1549, %v731, 0
  %v1569 = vsel %vm1549, %v739, 0
  %v1572 = vsel %vm1549, %v747, 0
  %v1575 = vsel %vm1549, %v755, 0
  %v1578 = vsel %vm1549, %v763, 0
  %v1581 = vsel %vm1549, %v771, 0
  %v1584 = vsel %vm1549, %v779, 0
  %v1587 = vsel %vm1549, %v787, 0
  %v1590 = vsel %vm1549, %v795, 0
  %v1593 = vsel %vm1549, %v803, 0
  %v1596 = vsel %vm1549, %v811, 0
  %vm1598 = vcmask 1043456
  %v1600 = vsel %vm1598, %v1423, 0
  %v1603 = vsel %vm1598, %v1424, 0
  %1605 = vmatprep.subr.bf16.mxu0 %v1300
  %1606 = vmatpush1.bf16.msra.mxu0 %v1299
  %1607 = vmatprep.subr.bf16.mxu0 %v1302
  %1608 = vmatpush1.bf16.msra.mxu0 %v1301
  %1609 = vmatprep.subr.bf16.mxu0 %v1304
  %1610 = vmatpush1.bf16.msra.mxu0 %v1303
  %1611 = vmatprep.subr.bf16.mxu0 %v1306
  %1612 = vmatpush1.bf16.msra.mxu0 %v1305
  %1613 = vmatprep.subr.bf16.mxu0 %v1308
  %1614 = vmatpush1.bf16.msra.mxu0 %v1307
  %1615 = vmatprep.subr.bf16.mxu0 %v1310
  %1616 = vmatpush1.bf16.msra.mxu0 %v1309
  %1617 = vmatprep.subr.bf16.mxu0 %v1312
  %1618 = vmatpush1.bf16.msra.mxu0 %v1311
  %1619 = vmatprep.subr.bf16.mxu0 %v1314
  %1620 = vmatpush1.bf16.msra.mxu0 %v1313
  %1621 = vmatprep.subr.bf16.mxu0 %v1316
  %1622 = vmatpush1.bf16.msra.mxu0 %v1315
  %1623 = vmatprep.subr.bf16.mxu0 %v1318
  %1624 = vmatpush1.bf16.msra.mxu0 %v1317
  %1625 = vmatprep.subr.bf16.mxu0 %v1320
  %1626 = vmatpush1.bf16.msra.mxu0 %v1319
  %1627 = vmatprep.subr.bf16.mxu0 %v1322
  %1628 = vmatpush1.bf16.msra.mxu0 %v1321
  %1629 = vmatprep.subr.bf16.mxu0 %v1324
  %1630 = vmatpush1.bf16.msra.mxu0 %v1323
  %1631 = vmatprep.subr.bf16.mxu0 %v1326
  %1632 = vmatpush1.bf16.msra.mxu0 %v1325
  %1633 = vmatprep.subr.bf16.mxu0 %v1328
  %1634 = vmatpush1.bf16.msra.mxu0 %v1327
  %1635 = vmatprep.subr.bf16.mxu0 %v1330
  %1636 = vmatpush1.bf16.msra.mxu0 %v1329
  %1637 = vmatprep.mubr.bf16.mxu0 %v685
  %1638 = vmatmul.mubr.bf16.gmra.mrb[0].mxu0 %v684
  %v1639 = vpop.f32.mrb[0].mxu0
  %v1640 = vadd.f32 0.0, %v1639
  %v1641 = vpop.f32.mrb[0].mxu0
  %v1642 = vadd.f32 0.0, %v1641
  %v1643 = vpop.f32.mrb[0].mxu0
  %v1644 = vadd.f32 0.0, %v1643
  %v1645 = vpop.f32.mrb[0].mxu0
  %v1646 = vadd.f32 0.0, %v1645
  %1647 = vmatprep.mubr.bf16.mxu0 %v693
  %1648 = vmatmul.mubr.bf16.gmra.mrb[0].mxu0 %v692
  %v1649 = vpop.f32.mrb[0].mxu0
  %v1650 = vadd.f32 0.0, %v1649
  %v1651 = vpop.f32.mrb[0].mxu0
  %v1652 = vadd.f32 0.0, %v1651
  %v1653 = vpop.f32.mrb[0].mxu0
  %v1654 = vadd.f32 0.0, %v1653
  %v1655 = vpop.f32.mrb[0].mxu0
  %v1656 = vadd.f32 0.0, %v1655
  %1657 = vmatprep.mubr.bf16.mxu0 %v701
  %1658 = vmatmul.mubr.bf16.gmra.mrb[0].mxu0 %v700
  %v1659 = vpop.f32.mrb[0].mxu0
  %v1660 = vadd.f32 0.0, %v1659
  %v1661 = vpop.f32.mrb[0].mxu0
  %v1662 = vadd.f32 0.0, %v1661
  %v1663 = vpop.f32.mrb[0].mxu0
  %v1664 = vadd.f32 0.0, %v1663
  %v1665 = vpop.f32.mrb[0].mxu0
  %v1666 = vadd.f32 0.0, %v1665
  %1667 = vmatprep.mubr.bf16.mxu0 %v709
  %1668 = vmatmul.mubr.bf16.gmra.mrb[0].mxu0 %v708
  %v1669 = vpop.f32.mrb[0].mxu0
  %v1670 = vadd.f32 0.0, %v1669
  %v1671 = vpop.f32.mrb[0].mxu0
  %v1672 = vadd.f32 0.0, %v1671
  %v1673 = vpop.f32.mrb[0].mxu0
  %v1674 = vadd.f32 0.0, %v1673
  %v1675 = vpop.f32.mrb[0].mxu0
  %v1676 = vadd.f32 0.0, %v1675
  %1677 = vmatprep.mubr.bf16.mxu0 %v717
  %1678 = vmatmul.mubr.bf16.gmra.mrb[0].mxu0 %v716
  %v1679 = vpop.f32.mrb[0].mxu0
  %v1680 = vadd.f32 0.0, %v1679
  %v1681 = vpop.f32.mrb[0].mxu0
  %v1682 = vadd.f32 0.0, %v1681
  %v1683 = vpop.f32.mrb[0].mxu0
  %v1684 = vadd.f32 0.0, %v1683
  %v1685 = vpop.f32.mrb[0].mxu0
  %v1686 = vadd.f32 0.0, %v1685
  %1687 = vmatprep.mubr.bf16.mxu0 %v725
  %1688 = vmatmul.mubr.bf16.gmra.mrb[0].mxu0 %v724
  %v1689 = vpop.f32.mrb[0].mxu0
  %v1690 = vadd.f32 0.0, %v1689
  %v1691 = vpop.f32.mrb[0].mxu0
  %v1692 = vadd.f32 0.0, %v1691
  %v1693 = vpop.f32.mrb[0].mxu0
  %v1694 = vadd.f32 0.0, %v1693
  %v1695 = vpop.f32.mrb[0].mxu0
  %v1696 = vadd.f32 0.0, %v1695
  %1697 = vmatprep.mubr.bf16.mxu0 %v733
  %1698 = vmatmul.mubr.bf16.gmra.mrb[0].mxu0 %v732
  %v1699 = vpop.f32.mrb[0].mxu0
  %v1700 = vadd.f32 0.0, %v1699
  %v1701 = vpop.f32.mrb[0].mxu0
  %v1702 = vadd.f32 0.0, %v1701
  %v1703 = vpop.f32.mrb[0].mxu0
  %v1704 = vadd.f32 0.0, %v1703
  %v1705 = vpop.f32.mrb[0].mxu0
  %v1706 = vadd.f32 0.0, %v1705
  %1707 = vmatprep.mubr.bf16.mxu0 %v741
  %1708 = vmatmul.mubr.bf16.gmra.mrb[0].mxu0 %v740
  %v1709 = vpop.f32.mrb[0].mxu0
  %v1710 = vadd.f32 0.0, %v1709
  %v1711 = vpop.f32.mrb[0].mxu0
  %v1712 = vadd.f32 0.0, %v1711
  %v1713 = vpop.f32.mrb[0].mxu0
  %v1714 = vadd.f32 0.0, %v1713
  %v1715 = vpop.f32.mrb[0].mxu0
  %v1716 = vadd.f32 0.0, %v1715
  %1717 = vmatprep.mubr.bf16.mxu0 %v749
  %1718 = vmatmul.mubr.bf16.gmra.mrb[0].mxu0 %v748
  %v1719 = vpop.f32.mrb[0].mxu0
  %v1720 = vadd.f32 0.0, %v1719
  %v1721 = vpop.f32.mrb[0].mxu0
  %v1722 = vadd.f32 0.0, %v1721
  %v1723 = vpop.f32.mrb[0].mxu0
  %v1724 = vadd.f32 0.0, %v1723
  %v1725 = vpop.f32.mrb[0].mxu0
  %v1726 = vadd.f32 0.0, %v1725
  %1727 = vmatprep.mubr.bf16.mxu0 %v757
  %1728 = vmatmul.mubr.bf16.gmra.mrb[0].mxu0 %v756
  %v1729 = vpop.f32.mrb[0].mxu0
  %v1730 = vadd.f32 0.0, %v1729
  %v1731 = vpop.f32.mrb[0].mxu0
  %v1732 = vadd.f32 0.0, %v1731
  %v1733 = vpop.f32.mrb[0].mxu0
  %v1734 = vadd.f32 0.0, %v1733
  %v1735 = vpop.f32.mrb[0].mxu0
  %v1736 = vadd.f32 0.0, %v1735
  %1737 = vmatprep.mubr.bf16.mxu0 %v765
  %1738 = vmatmul.mubr.bf16.gmra.mrb[0].mxu0 %v764
  %v1739 = vpop.f32.mrb[0].mxu0
  %v1740 = vadd.f32 0.0, %v1739
  %v1741 = vpop.f32.mrb[0].mxu0
  %v1742 = vadd.f32 0.0, %v1741
  %v1743 = vpop.f32.mrb[0].mxu0
  %v1744 = vadd.f32 0.0, %v1743
  %v1745 = vpop.f32.mrb[0].mxu0
  %v1746 = vadd.f32 0.0, %v1745
  %1747 = vmatprep.mubr.bf16.mxu0 %v773
  %1748 = vmatmul.mubr.bf16.gmra.mrb[0].mxu0 %v772
  %v1749 = vpop.f32.mrb[0].mxu0
  %v1750 = vadd.f32 0.0, %v1749
  %v1751 = vpop.f32.mrb[0].mxu0
  %v1752 = vadd.f32 0.0, %v1751
  %v1753 = vpop.f32.mrb[0].mxu0
  %v1754 = vadd.f32 0.0, %v1753
  %v1755 = vpop.f32.mrb[0].mxu0
  %v1756 = vadd.f32 0.0, %v1755
  %1757 = vmatprep.mubr.bf16.mxu0 %v781
  %1758 = vmatmul.mubr.bf16.gmra.mrb[0].mxu0 %v780
  %v1759 = vpop.f32.mrb[0].mxu0
  %v1760 = vadd.f32 0.0, %v1759
  %v1761 = vpop.f32.mrb[0].mxu0
  %v1762 = vadd.f32 0.0, %v1761
  %v1763 = vpop.f32.mrb[0].mxu0
  %v1764 = vadd.f32 0.0, %v1763
  %v1765 = vpop.f32.mrb[0].mxu0
  %v1766 = vadd.f32 0.0, %v1765
  %1767 = vmatprep.mubr.bf16.mxu0 %v789
  %1768 = vmatmul.mubr.bf16.gmra.mrb[0].mxu0 %v788
  %v1769 = vpop.f32.mrb[0].mxu0
  %v1770 = vadd.f32 0.0, %v1769
  %v1771 = vpop.f32.mrb[0].mxu0
  %v1772 = vadd.f32 0.0, %v1771
  %v1773 = vpop.f32.mrb[0].mxu0
  %v1774 = vadd.f32 0.0, %v1773
  %v1775 = vpop.f32.mrb[0].mxu0
  %v1776 = vadd.f32 0.0, %v1775
  %1777 = vmatprep.mubr.bf16.mxu0 %v797
  %1778 = vmatmul.mubr.bf16.gmra.mrb[0].mxu0 %v796
  %v1779 = vpop.f32.mrb[0].mxu0
  %v1780 = vadd.f32 0.0, %v1779
  %v1781 = vpop.f32.mrb[0].mxu0
  %v1782 = vadd.f32 0.0, %v1781
  %v1783 = vpop.f32.mrb[0].mxu0
  %v1784 = vadd.f32 0.0, %v1783
  %v1785 = vpop.f32.mrb[0].mxu0
  %v1786 = vadd.f32 0.0, %v1785
  %1787 = vmatprep.mubr.bf16.mxu0 %v805
  %1788 = vmatmul.mubr.bf16.gmra.mrb[0].mxu0 %v804
  %v1789 = vpop.f32.mrb[0].mxu0
  %v1790 = vadd.f32 0.0, %v1789
  %v1791 = vpop.f32.mrb[0].mxu0
  %v1792 = vadd.f32 0.0, %v1791
  %v1793 = vpop.f32.mrb[0].mxu0
  %v1794 = vadd.f32 0.0, %v1793
  %v1795 = vpop.f32.mrb[0].mxu0
  %v1796 = vadd.f32 0.0, %v1795
  %1797 = vdwg.mxu0
  %1798 = vmatprep.subr.bf16.mxu0 %v1332
  %1799 = vmatpush1.bf16.msra.mxu0 %v1331
  %1800 = vmatprep.subr.bf16.mxu0 %v1334
  %1801 = vmatpush1.bf16.msra.mxu0 %v1333
  %1802 = vmatprep.subr.bf16.mxu0 %v1336
  %1803 = vmatpush1.bf16.msra.mxu0 %v1335
  %1804 = vmatprep.subr.bf16.mxu0 %v1338
  %1805 = vmatpush1.bf16.msra.mxu0 %v1337
  %1806 = vmatprep.subr.bf16.mxu0 %v1340
  %1807 = vmatpush1.bf16.msra.mxu0 %v1339
  %1808 = vmatprep.subr.bf16.mxu0 %v1342
  %1809 = vmatpush1.bf16.msra.mxu0 %v1341
  %1810 = vmatprep.subr.bf16.mxu0 %v1344
  %1811 = vmatpush1.bf16.msra.mxu0 %v1343
  %1812 = vmatprep.subr.bf16.mxu0 %v1346
  %1813 = vmatpush1.bf16.msra.mxu0 %v1345
  %1814 = vmatprep.subr.bf16.mxu0 %v1348
  %1815 = vmatpush1.bf16.msra.mxu0 %v1347
  %1816 = vmatprep.subr.bf16.mxu0 %v1350
  %1817 = vmatpush1.bf16.msra.mxu0 %v1349
  %1818 = vmatprep.subr.bf16.mxu0 %v1352
  %1819 = vmatpush1.bf16.msra.mxu0 %v1351
  %1820 = vmatprep.subr.bf16.mxu0 %v1354
  %1821 = vmatpush1.bf16.msra.mxu0 %v1353
  %1822 = vmatprep.subr.bf16.mxu0 %v1356
  %1823 = vmatpush1.bf16.msra.mxu0 %v1355
  %1824 = vmatprep.subr.bf16.mxu0 %v1358
  %1825 = vmatpush1.bf16.msra.mxu0 %v1357
  %1826 = vmatprep.subr.bf16.mxu0 %v1360
  %1827 = vmatpush1.bf16.msra.mxu0 %v1359
  %1828 = vmatprep.subr.bf16.mxu0 %v1362
  %1829 = vmatpush1.bf16.msra.mxu0 %v1361
  %1830 = vmatprep.mubr.bf16.mxu0 %v687
  %1831 = vmatmul.mubr.bf16.gmra.mrb[0].mxu0 %v686
  %v1832 = vpop.f32.mrb[0].mxu0
  %v1833 = vadd.f32 %v1640, %v1832
  %v1834 = vpop.f32.mrb[0].mxu0
  %v1835 = vadd.f32 %v1642, %v1834
  %v1836 = vpop.f32.mrb[0].mxu0
  %v1837 = vadd.f32 %v1644, %v1836
  %v1838 = vpop.f32.mrb[0].mxu0
  %v1839 = vadd.f32 %v1646, %v1838
  %1840 = vmatprep.mubr.bf16.mxu0 %v695
  %1841 = vmatmul.mubr.bf16.gmra.mrb[0].mxu0 %v694
  %v1842 = vpop.f32.mrb[0].mxu0
  %v1843 = vadd.f32 %v1650, %v1842
  %v1844 = vpop.f32.mrb[0].mxu0
  %v1845 = vadd.f32 %v1652, %v1844
  %v1846 = vpop.f32.mrb[0].mxu0
  %v1847 = vadd.f32 %v1654, %v1846
  %v1848 = vpop.f32.mrb[0].mxu0
  %v1849 = vadd.f32 %v1656, %v1848
  %1850 = vmatprep.mubr.bf16.mxu0 %v703
  %1851 = vmatmul.mubr.bf16.gmra.mrb[0].mxu0 %v702
  %v1852 = vpop.f32.mrb[0].mxu0
  %v1853 = vadd.f32 %v1660, %v1852
  %v1854 = vpop.f32.mrb[0].mxu0
  %v1855 = vadd.f32 %v1662, %v1854
  %v1856 = vpop.f32.mrb[0].mxu0
  %v1857 = vadd.f32 %v1664, %v1856
  %v1858 = vpop.f32.mrb[0].mxu0
  %v1859 = vadd.f32 %v1666, %v1858
  %1860 = vmatprep.mubr.bf16.mxu0 %v711
  %1861 = vmatmul.mubr.bf16.gmra.mrb[0].mxu0 %v710
  %v1862 = vpop.f32.mrb[0].mxu0
  %v1863 = vadd.f32 %v1670, %v1862
  %v1864 = vpop.f32.mrb[0].mxu0
  %v1865 = vadd.f32 %v1672, %v1864
  %v1866 = vpop.f32.mrb[0].mxu0
  %v1867 = vadd.f32 %v1674, %v1866
  %v1868 = vpop.f32.mrb[0].mxu0
  %v1869 = vadd.f32 %v1676, %v1868
  %1870 = vmatprep.mubr.bf16.mxu0 %v719
  %1871 = vmatmul.mubr.bf16.gmra.mrb[0].mxu0 %v718
  %v1872 = vpop.f32.mrb[0].mxu0
  %v1873 = vadd.f32 %v1680, %v1872
  %v1874 = vpop.f32.mrb[0].mxu0
  %v1875 = vadd.f32 %v1682, %v1874
  %v1876 = vpop.f32.mrb[0].mxu0
  %v1877 = vadd.f32 %v1684, %v1876
  %v1878 = vpop.f32.mrb[0].mxu0
  %v1879 = vadd.f32 %v1686, %v1878
  %1880 = vmatprep.mubr.bf16.mxu0 %v727
  %1881 = vmatmul.mubr.bf16.gmra.mrb[0].mxu0 %v726
  %v1882 = vpop.f32.mrb[0].mxu0
  %v1883 = vadd.f32 %v1690, %v1882
  %v1884 = vpop.f32.mrb[0].mxu0
  %v1885 = vadd.f32 %v1692, %v1884
  %v1886 = vpop.f32.mrb[0].mxu0
  %v1887 = vadd.f32 %v1694, %v1886
  %v1888 = vpop.f32.mrb[0].mxu0
  %v1889 = vadd.f32 %v1696, %v1888
  %1890 = vmatprep.mubr.bf16.mxu0 %v735
  %1891 = vmatmul.mubr.bf16.gmra.mrb[0].mxu0 %v734
  %v1892 = vpop.f32.mrb[0].mxu0
  %v1893 = vadd.f32 %v1700, %v1892
  %v1894 = vpop.f32.mrb[0].mxu0
  %v1895 = vadd.f32 %v1702, %v1894
  %v1896 = vpop.f32.mrb[0].mxu0
  %v1897 = vadd.f32 %v1704, %v1896
  %v1898 = vpop.f32.mrb[0].mxu0
  %v1899 = vadd.f32 %v1706, %v1898
  %1900 = vmatprep.mubr.bf16.mxu0 %v743
  %1901 = vmatmul.mubr.bf16.gmra.mrb[0].mxu0 %v742
  %v1902 = vpop.f32.mrb[0].mxu0
  %v1903 = vadd.f32 %v1710, %v1902
  %v1904 = vpop.f32.mrb[0].mxu0
  %v1905 = vadd.f32 %v1712, %v1904
  %v1906 = vpop.f32.mrb[0].mxu0
  %v1907 = vadd.f32 %v1714, %v1906
  %v1908 = vpop.f32.mrb[0].mxu0
  %v1909 = vadd.f32 %v1716, %v1908
  %1910 = vmatprep.mubr.bf16.mxu0 %v751
  %1911 = vmatmul.mubr.bf16.gmra.mrb[0].mxu0 %v750
  %v1912 = vpop.f32.mrb[0].mxu0
  %v1913 = vadd.f32 %v1720, %v1912
  %v1914 = vpop.f32.mrb[0].mxu0
  %v1915 = vadd.f32 %v1722, %v1914
  %v1916 = vpop.f32.mrb[0].mxu0
  %v1917 = vadd.f32 %v1724, %v1916
  %v1918 = vpop.f32.mrb[0].mxu0
  %v1919 = vadd.f32 %v1726, %v1918
  %1920 = vmatprep.mubr.bf16.mxu0 %v759
  %1921 = vmatmul.mubr.bf16.gmra.mrb[0].mxu0 %v758
  %v1922 = vpop.f32.mrb[0].mxu0
  %v1923 = vadd.f32 %v1730, %v1922
  %v1924 = vpop.f32.mrb[0].mxu0
  %v1925 = vadd.f32 %v1732, %v1924
  %v1926 = vpop.f32.mrb[0].mxu0
  %v1927 = vadd.f32 %v1734, %v1926
  %v1928 = vpop.f32.mrb[0].mxu0
  %v1929 = vadd.f32 %v1736, %v1928
  %1930 = vmatprep.mubr.bf16.mxu0 %v767
  %1931 = vmatmul.mubr.bf16.gmra.mrb[0].mxu0 %v766
  %v1932 = vpop.f32.mrb[0].mxu0
  %v1933 = vadd.f32 %v1740, %v1932
  %v1934 = vpop.f32.mrb[0].mxu0
  %v1935 = vadd.f32 %v1742, %v1934
  %v1936 = vpop.f32.mrb[0].mxu0
  %v1937 = vadd.f32 %v1744, %v1936
  %v1938 = vpop.f32.mrb[0].mxu0
  %v1939 = vadd.f32 %v1746, %v1938
  %1940 = vmatprep.mubr.bf16.mxu0 %v775
  %1941 = vmatmul.mubr.bf16.gmra.mrb[0].mxu0 %v774
  %v1942 = vpop.f32.mrb[0].mxu0
  %v1943 = vadd.f32 %v1750, %v1942
  %v1944 = vpop.f32.mrb[0].mxu0
  %v1945 = vadd.f32 %v1752, %v1944
  %v1946 = vpop.f32.mrb[0].mxu0
  %v1947 = vadd.f32 %v1754, %v1946
  %v1948 = vpop.f32.mrb[0].mxu0
  %v1949 = vadd.f32 %v1756, %v1948
  %1950 = vmatprep.mubr.bf16.mxu0 %v783
  %1951 = vmatmul.mubr.bf16.gmra.mrb[0].mxu0 %v782
  %v1952 = vpop.f32.mrb[0].mxu0
  %v1953 = vadd.f32 %v1760, %v1952
  %v1954 = vpop.f32.mrb[0].mxu0
  %v1955 = vadd.f32 %v1762, %v1954
  %v1956 = vpop.f32.mrb[0].mxu0
  %v1957 = vadd.f32 %v1764, %v1956
  %v1958 = vpop.f32.mrb[0].mxu0
  %v1959 = vadd.f32 %v1766, %v1958
  %1960 = vmatprep.mubr.bf16.mxu0 %v791
  %1961 = vmatmul.mubr.bf16.gmra.mrb[0].mxu0 %v790
  %v1962 = vpop.f32.mrb[0].mxu0
  %v1963 = vadd.f32 %v1770, %v1962
  %v1964 = vpop.f32.mrb[0].mxu0
  %v1965 = vadd.f32 %v1772, %v1964
  %v1966 = vpop.f32.mrb[0].mxu0
  %v1967 = vadd.f32 %v1774, %v1966
  %v1968 = vpop.f32.mrb[0].mxu0
  %v1969 = vadd.f32 %v1776, %v1968
  %1970 = vmatprep.mubr.bf16.mxu0 %v799
  %1971 = vmatmul.mubr.bf16.gmra.mrb[0].mxu0 %v798
  %v1972 = vpop.f32.mrb[0].mxu0
  %v1973 = vadd.f32 %v1780, %v1972
  %v1974 = vpop.f32.mrb[0].mxu0
  %v1975 = vadd.f32 %v1782, %v1974
  %v1976 = vpop.f32.mrb[0].mxu0
  %v1977 = vadd.f32 %v1784, %v1976
  %v1978 = vpop.f32.mrb[0].mxu0
  %v1979 = vadd.f32 %v1786, %v1978
  %1980 = vmatprep.mubr.bf16.mxu0 %v807
  %1981 = vmatmul.mubr.bf16.gmra.mrb[0].mxu0 %v806
  %v1982 = vpop.f32.mrb[0].mxu0
  %v1983 = vadd.f32 %v1790, %v1982
  %v1984 = vpop.f32.mrb[0].mxu0
  %v1985 = vadd.f32 %v1792, %v1984
  %v1986 = vpop.f32.mrb[0].mxu0
  %v1987 = vadd.f32 %v1794, %v1986
  %v1988 = vpop.f32.mrb[0].mxu0
  %v1989 = vadd.f32 %v1796, %v1988
  %1990 = vdwg.mxu0
  %1991 = vmatprep.subr.bf16.mxu0 %v1364
  %1992 = vmatpush1.bf16.msra.mxu0 %v1363
  %1993 = vmatprep.subr.bf16.mxu0 %v1366
  %1994 = vmatpush1.bf16.msra.mxu0 %v1365
  %1995 = vmatprep.subr.bf16.mxu0 %v1368
  %1996 = vmatpush1.bf16.msra.mxu0 %v1367
  %1997 = vmatprep.subr.bf16.mxu0 %v1370
  %1998 = vmatpush1.bf16.msra.mxu0 %v1369
  %1999 = vmatprep.subr.bf16.mxu0 %v1372
  %2000 = vmatpush1.bf16.msra.mxu0 %v1371
  %2001 = vmatprep.subr.bf16.mxu0 %v1374
  %2002 = vmatpush1.bf16.msra.mxu0 %v1373
  %2003 = vmatprep.subr.bf16.mxu0 %v1376
  %2004 = vmatpush1.bf16.msra.mxu0 %v1375
  %2005 = vmatprep.subr.bf16.mxu0 %v1378
  %2006 = vmatpush1.bf16.msra.mxu0 %v1377
  %2007 = vmatprep.subr.bf16.mxu0 %v1380
  %2008 = vmatpush1.bf16.msra.mxu0 %v1379
  %2009 = vmatprep.subr.bf16.mxu0 %v1382
  %2010 = vmatpush1.bf16.msra.mxu0 %v1381
  %2011 = vmatprep.subr.bf16.mxu0 %v1384
  %2012 = vmatpush1.bf16.msra.mxu0 %v1383
  %2013 = vmatprep.subr.bf16.mxu0 %v1386
  %2014 = vmatpush1.bf16.msra.mxu0 %v1385
  %2015 = vmatprep.subr.bf16.mxu0 %v1388
  %2016 = vmatpush1.bf16.msra.mxu0 %v1387
  %2017 = vmatprep.subr.bf16.mxu0 %v1390
  %2018 = vmatpush1.bf16.msra.mxu0 %v1389
  %2019 = vmatprep.subr.bf16.mxu0 %v1392
  %2020 = vmatpush1.bf16.msra.mxu0 %v1391
  %2021 = vmatprep.subr.bf16.mxu0 %v1394
  %2022 = vmatpush1.bf16.msra.mxu0 %v1393
  %2023 = vmatprep.mubr.bf16.mxu0 %v689
  %2024 = vmatmul.mubr.bf16.gmra.mrb[0].mxu0 %v688
  %v2025 = vpop.f32.mrb[0].mxu0
  %v2026 = vadd.f32 %v1833, %v2025
  %v2027 = vpop.f32.mrb[0].mxu0
  %v2028 = vadd.f32 %v1835, %v2027
  %v2029 = vpop.f32.mrb[0].mxu0
  %v2030 = vadd.f32 %v1837, %v2029
  %v2031 = vpop.f32.mrb[0].mxu0
  %v2032 = vadd.f32 %v1839, %v2031
  %2033 = vmatprep.mubr.bf16.mxu0 %v697
  %2034 = vmatmul.mubr.bf16.gmra.mrb[0].mxu0 %v696
  %v2035 = vpop.f32.mrb[0].mxu0
  %v2036 = vadd.f32 %v1843, %v2035
  %v2037 = vpop.f32.mrb[0].mxu0
  %v2038 = vadd.f32 %v1845, %v2037
  %v2039 = vpop.f32.mrb[0].mxu0
  %v2040 = vadd.f32 %v1847, %v2039
  %v2041 = vpop.f32.mrb[0].mxu0
  %v2042 = vadd.f32 %v1849, %v2041
  %2043 = vmatprep.mubr.bf16.mxu0 %v705
  %2044 = vmatmul.mubr.bf16.gmra.mrb[0].mxu0 %v704
  %v2045 = vpop.f32.mrb[0].mxu0
  %v2046 = vadd.f32 %v1853, %v2045
  %v2047 = vpop.f32.mrb[0].mxu0
  %v2048 = vadd.f32 %v1855, %v2047
  %v2049 = vpop.f32.mrb[0].mxu0
  %v2050 = vadd.f32 %v1857, %v2049
  %v2051 = vpop.f32.mrb[0].mxu0
  %v2052 = vadd.f32 %v1859, %v2051
  %2053 = vmatprep.mubr.bf16.mxu0 %v713
  %2054 = vmatmul.mubr.bf16.gmra.mrb[0].mxu0 %v712
  %v2055 = vpop.f32.mrb[0].mxu0
  %v2056 = vadd.f32 %v1863, %v2055
  %v2057 = vpop.f32.mrb[0].mxu0
  %v2058 = vadd.f32 %v1865, %v2057
  %v2059 = vpop.f32.mrb[0].mxu0
  %v2060 = vadd.f32 %v1867, %v2059
  %v2061 = vpop.f32.mrb[0].mxu0
  %v2062 = vadd.f32 %v1869, %v2061
  %2063 = vmatprep.mubr.bf16.mxu0 %v721
  %2064 = vmatmul.mubr.bf16.gmra.mrb[0].mxu0 %v720
  %v2065 = vpop.f32.mrb[0].mxu0
  %v2066 = vadd.f32 %v1873, %v2065
  %v2067 = vpop.f32.mrb[0].mxu0
  %v2068 = vadd.f32 %v1875, %v2067
  %v2069 = vpop.f32.mrb[0].mxu0
  %v2070 = vadd.f32 %v1877, %v2069
  %v2071 = vpop.f32.mrb[0].mxu0
  %v2072 = vadd.f32 %v1879, %v2071
  %2073 = vmatprep.mubr.bf16.mxu0 %v729
  %2074 = vmatmul.mubr.bf16.gmra.mrb[0].mxu0 %v728
  %v2075 = vpop.f32.mrb[0].mxu0
  %v2076 = vadd.f32 %v1883, %v2075
  %v2077 = vpop.f32.mrb[0].mxu0
  %v2078 = vadd.f32 %v1885, %v2077
  %v2079 = vpop.f32.mrb[0].mxu0
  %v2080 = vadd.f32 %v1887, %v2079
  %v2081 = vpop.f32.mrb[0].mxu0
  %v2082 = vadd.f32 %v1889, %v2081
  %2083 = vmatprep.mubr.bf16.mxu0 %v737
  %2084 = vmatmul.mubr.bf16.gmra.mrb[0].mxu0 %v736
  %v2085 = vpop.f32.mrb[0].mxu0
  %v2086 = vadd.f32 %v1893, %v2085
  %v2087 = vpop.f32.mrb[0].mxu0
  %v2088 = vadd.f32 %v1895, %v2087
  %v2089 = vpop.f32.mrb[0].mxu0
  %v2090 = vadd.f32 %v1897, %v2089
  %v2091 = vpop.f32.mrb[0].mxu0
  %v2092 = vadd.f32 %v1899, %v2091
  %2093 = vmatprep.mubr.bf16.mxu0 %v745
  %2094 = vmatmul.mubr.bf16.gmra.mrb[0].mxu0 %v744
  %v2095 = vpop.f32.mrb[0].mxu0
  %v2096 = vadd.f32 %v1903, %v2095
  %v2097 = vpop.f32.mrb[0].mxu0
  %v2098 = vadd.f32 %v1905, %v2097
  %v2099 = vpop.f32.mrb[0].mxu0
  %v2100 = vadd.f32 %v1907, %v2099
  %v2101 = vpop.f32.mrb[0].mxu0
  %v2102 = vadd.f32 %v1909, %v2101
  %2103 = vmatprep.mubr.bf16.mxu0 %v753
  %2104 = vmatmul.mubr.bf16.gmra.mrb[0].mxu0 %v752
  %v2105 = vpop.f32.mrb[0].mxu0
  %v2106 = vadd.f32 %v1913, %v2105
  %v2107 = vpop.f32.mrb[0].mxu0
  %v2108 = vadd.f32 %v1915, %v2107
  %v2109 = vpop.f32.mrb[0].mxu0
  %v2110 = vadd.f32 %v1917, %v2109
  %v2111 = vpop.f32.mrb[0].mxu0
  %v2112 = vadd.f32 %v1919, %v2111
  %2113 = vmatprep.mubr.bf16.mxu0 %v761
  %2114 = vmatmul.mubr.bf16.gmra.mrb[0].mxu0 %v760
  %v2115 = vpop.f32.mrb[0].mxu0
  %v2116 = vadd.f32 %v1923, %v2115
  %v2117 = vpop.f32.mrb[0].mxu0
  %v2118 = vadd.f32 %v1925, %v2117
  %v2119 = vpop.f32.mrb[0].mxu0
  %v2120 = vadd.f32 %v1927, %v2119
  %v2121 = vpop.f32.mrb[0].mxu0
  %v2122 = vadd.f32 %v1929, %v2121
  %2123 = vmatprep.mubr.bf16.mxu0 %v769
  %2124 = vmatmul.mubr.bf16.gmra.mrb[0].mxu0 %v768
  %v2125 = vpop.f32.mrb[0].mxu0
  %v2126 = vadd.f32 %v1933, %v2125
  %v2127 = vpop.f32.mrb[0].mxu0
  %v2128 = vadd.f32 %v1935, %v2127
  %v2129 = vpop.f32.mrb[0].mxu0
  %v2130 = vadd.f32 %v1937, %v2129
  %v2131 = vpop.f32.mrb[0].mxu0
  %v2132 = vadd.f32 %v1939, %v2131
  %2133 = vmatprep.mubr.bf16.mxu0 %v777
  %2134 = vmatmul.mubr.bf16.gmra.mrb[0].mxu0 %v776
  %v2135 = vpop.f32.mrb[0].mxu0
  %v2136 = vadd.f32 %v1943, %v2135
  %v2137 = vpop.f32.mrb[0].mxu0
  %v2138 = vadd.f32 %v1945, %v2137
  %v2139 = vpop.f32.mrb[0].mxu0
  %v2140 = vadd.f32 %v1947, %v2139
  %v2141 = vpop.f32.mrb[0].mxu0
  %v2142 = vadd.f32 %v1949, %v2141
  %2143 = vmatprep.mubr.bf16.mxu0 %v785
  %2144 = vmatmul.mubr.bf16.gmra.mrb[0].mxu0 %v784
  %v2145 = vpop.f32.mrb[0].mxu0
  %v2146 = vadd.f32 %v1953, %v2145
  %v2147 = vpop.f32.mrb[0].mxu0
  %v2148 = vadd.f32 %v1955, %v2147
  %v2149 = vpop.f32.mrb[0].mxu0
  %v2150 = vadd.f32 %v1957, %v2149
  %v2151 = vpop.f32.mrb[0].mxu0
  %v2152 = vadd.f32 %v1959, %v2151
  %2153 = vmatprep.mubr.bf16.mxu0 %v793
  %2154 = vmatmul.mubr.bf16.gmra.mrb[0].mxu0 %v792
  %v2155 = vpop.f32.mrb[0].mxu0
  %v2156 = vadd.f32 %v1963, %v2155
  %v2157 = vpop.f32.mrb[0].mxu0
  %v2158 = vadd.f32 %v1965, %v2157
  %v2159 = vpop.f32.mrb[0].mxu0
  %v2160 = vadd.f32 %v1967, %v2159
  %v2161 = vpop.f32.mrb[0].mxu0
  %v2162 = vadd.f32 %v1969, %v2161
  %2163 = vmatprep.mubr.bf16.mxu0 %v801
  %2164 = vmatmul.mubr.bf16.gmra.mrb[0].mxu0 %v800
  %v2165 = vpop.f32.mrb[0].mxu0
  %v2166 = vadd.f32 %v1973, %v2165
  %v2167 = vpop.f32.mrb[0].mxu0
  %v2168 = vadd.f32 %v1975, %v2167
  %v2169 = vpop.f32.mrb[0].mxu0
  %v2170 = vadd.f32 %v1977, %v2169
  %v2171 = vpop.f32.mrb[0].mxu0
  %v2172 = vadd.f32 %v1979, %v2171
  %2173 = vmatprep.mubr.bf16.mxu0 %v809
  %2174 = vmatmul.mubr.bf16.gmra.mrb[0].mxu0 %v808
  %v2175 = vpop.f32.mrb[0].mxu0
  %v2176 = vadd.f32 %v1983, %v2175
  %v2177 = vpop.f32.mrb[0].mxu0
  %v2178 = vadd.f32 %v1985, %v2177
  %v2179 = vpop.f32.mrb[0].mxu0
  %v2180 = vadd.f32 %v1987, %v2179
  %v2181 = vpop.f32.mrb[0].mxu0
  %v2182 = vadd.f32 %v1989, %v2181
  %2183 = vdwg.mxu0
  %2184 = vmatprep.subr.bf16.mxu0 %v1396
  %2185 = vmatpush1.bf16.msra.mxu0 %v1395
  %2186 = vmatprep.subr.bf16.mxu0 %v1398
  %2187 = vmatpush1.bf16.msra.mxu0 %v1397
  %2188 = vmatprep.subr.bf16.mxu0 %v1400
  %2189 = vmatpush1.bf16.msra.mxu0 %v1399
  %2190 = vmatprep.subr.bf16.mxu0 %v1402
  %2191 = vmatpush1.bf16.msra.mxu0 %v1401
  %2192 = vmatprep.subr.bf16.mxu0 %v1404
  %2193 = vmatpush1.bf16.msra.mxu0 %v1403
  %2194 = vmatprep.subr.bf16.mxu0 %v1406
  %2195 = vmatpush1.bf16.msra.mxu0 %v1405
  %2196 = vmatprep.subr.bf16.mxu0 %v1408
  %2197 = vmatpush1.bf16.msra.mxu0 %v1407
  %2198 = vmatprep.subr.bf16.mxu0 %v1410
  %2199 = vmatpush1.bf16.msra.mxu0 %v1409
  %2200 = vmatprep.subr.bf16.mxu0 %v1412
  %2201 = vmatpush1.bf16.msra.mxu0 %v1411
  %2202 = vmatprep.subr.bf16.mxu0 %v1414
  %2203 = vmatpush1.bf16.msra.mxu0 %v1413
  %2204 = vmatprep.subr.bf16.mxu0 %v1416
  %2205 = vmatpush1.bf16.msra.mxu0 %v1415
  %2206 = vmatprep.subr.bf16.mxu0 %v1418
  %2207 = vmatpush1.bf16.msra.mxu0 %v1417
  %2208 = vmatprep.subr.bf16.mxu0 %v1420
  %2209 = vmatpush1.bf16.msra.mxu0 %v1419
  %2210 = vmatprep.subr.bf16.mxu0 %v1422
  %2211 = vmatpush1.bf16.msra.mxu0 %v1421
  %2212 = vmatprep.subr.bf16.mxu0 %v1603
  %2213 = vmatpush1.bf16.msra.mxu0 %v1600
  %2214 = vmatprep.subr.bf16.mxu0 0
  %2215 = vmatpush1.bf16.msra.mxu0 0
  %2216 = vmatprep.mubr.bf16.mxu0 %v1551
  %2217 = vmatmul.mubr.bf16.gmra.mrb[0].mxu0 %v690
  %v2218 = vpop.f32.mrb[0].mxu0
  %v2219 = vadd.f32 %v2026, %v2218
  %v2220 = vpop.f32.mrb[0].mxu0
  %v2221 = vadd.f32 %v2028, %v2220
  %v2222 = vpop.f32.mrb[0].mxu0
  %v2223 = vadd.f32 %v2030, %v2222
  %v2224 = vpop.f32.mrb[0].mxu0
  %v2225 = vadd.f32 %v2032, %v2224
  %2226 = vmatprep.mubr.bf16.mxu0 %v1554
  %2227 = vmatmul.mubr.bf16.gmra.mrb[0].mxu0 %v698
  %v2228 = vpop.f32.mrb[0].mxu0
  %v2229 = vadd.f32 %v2036, %v2228
  %v2230 = vpop.f32.mrb[0].mxu0
  %v2231 = vadd.f32 %v2038, %v2230
  %v2232 = vpop.f32.mrb[0].mxu0
  %v2233 = vadd.f32 %v2040, %v2232
  %v2234 = vpop.f32.mrb[0].mxu0
  %v2235 = vadd.f32 %v2042, %v2234
  %2236 = vmatprep.mubr.bf16.mxu0 %v1557
  %2237 = vmatmul.mubr.bf16.gmra.mrb[0].mxu0 %v706
  %v2238 = vpop.f32.mrb[0].mxu0
  %v2239 = vadd.f32 %v2046, %v2238
  %v2240 = vpop.f32.mrb[0].mxu0
  %v2241 = vadd.f32 %v2048, %v2240
  %v2242 = vpop.f32.mrb[0].mxu0
  %v2243 = vadd.f32 %v2050, %v2242
  %v2244 = vpop.f32.mrb[0].mxu0
  %v2245 = vadd.f32 %v2052, %v2244
  %2246 = vmatprep.mubr.bf16.mxu0 %v1560
  %2247 = vmatmul.mubr.bf16.gmra.mrb[0].mxu0 %v714
  %v2248 = vpop.f32.mrb[0].mxu0
  %v2249 = vadd.f32 %v2056, %v2248
  %v2250 = vpop.f32.mrb[0].mxu0
  %v2251 = vadd.f32 %v2058, %v2250
  %v2252 = vpop.f32.mrb[0].mxu0
  %v2253 = vadd.f32 %v2060, %v2252
  %v2254 = vpop.f32.mrb[0].mxu0
  %v2255 = vadd.f32 %v2062, %v2254
  %2256 = vmatprep.mubr.bf16.mxu0 %v1563
  %2257 = vmatmul.mubr.bf16.gmra.mrb[0].mxu0 %v722
  %v2258 = vpop.f32.mrb[0].mxu0
  %v2259 = vadd.f32 %v2066, %v2258
  %v2260 = vpop.f32.mrb[0].mxu0
  %v2261 = vadd.f32 %v2068, %v2260
  %v2262 = vpop.f32.mrb[0].mxu0
  %v2263 = vadd.f32 %v2070, %v2262
  %v2264 = vpop.f32.mrb[0].mxu0
  %v2265 = vadd.f32 %v2072, %v2264
  %2266 = vmatprep.mubr.bf16.mxu0 %v1566
  %2267 = vmatmul.mubr.bf16.gmra.mrb[0].mxu0 %v730
  %v2268 = vpop.f32.mrb[0].mxu0
  %v2269 = vadd.f32 %v2076, %v2268
  %v2270 = vpop.f32.mrb[0].mxu0
  %v2271 = vadd.f32 %v2078, %v2270
  %v2272 = vpop.f32.mrb[0].mxu0
  %v2273 = vadd.f32 %v2080, %v2272
  %v2274 = vpop.f32.mrb[0].mxu0
  %v2275 = vadd.f32 %v2082, %v2274
  %2276 = vmatprep.mubr.bf16.mxu0 %v1569
  %2277 = vmatmul.mubr.bf16.gmra.mrb[0].mxu0 %v738
  %v2278 = vpop.f32.mrb[0].mxu0
  %v2279 = vadd.f32 %v2086, %v2278
  %v2280 = vpop.f32.mrb[0].mxu0
  %v2281 = vadd.f32 %v2088, %v2280
  %v2282 = vpop.f32.mrb[0].mxu0
  %v2283 = vadd.f32 %v2090, %v2282
  %v2284 = vpop.f32.mrb[0].mxu0
  %v2285 = vadd.f32 %v2092, %v2284
  %2286 = vmatprep.mubr.bf16.mxu0 %v1572
  %2287 = vmatmul.mubr.bf16.gmra.mrb[0].mxu0 %v746
  %v2288 = vpop.f32.mrb[0].mxu0
  %v2289 = vadd.f32 %v2096, %v2288
  %v2290 = vpop.f32.mrb[0].mxu0
  %v2291 = vadd.f32 %v2098, %v2290
  %v2292 = vpop.f32.mrb[0].mxu0
  %v2293 = vadd.f32 %v2100, %v2292
  %v2294 = vpop.f32.mrb[0].mxu0
  %v2295 = vadd.f32 %v2102, %v2294
  %2296 = vmatprep.mubr.bf16.mxu0 %v1575
  %2297 = vmatmul.mubr.bf16.gmra.mrb[0].mxu0 %v754
  %v2298 = vpop.f32.mrb[0].mxu0
  %v2299 = vadd.f32 %v2106, %v2298
  %v2300 = vpop.f32.mrb[0].mxu0
  %v2301 = vadd.f32 %v2108, %v2300
  %v2302 = vpop.f32.mrb[0].mxu0
  %v2303 = vadd.f32 %v2110, %v2302
  %v2304 = vpop.f32.mrb[0].mxu0
  %v2305 = vadd.f32 %v2112, %v2304
  %2306 = vmatprep.mubr.bf16.mxu0 %v1578
  %2307 = vmatmul.mubr.bf16.gmra.mrb[0].mxu0 %v762
  %v2308 = vpop.f32.mrb[0].mxu0
  %v2309 = vadd.f32 %v2116, %v2308
  %v2310 = vpop.f32.mrb[0].mxu0
  %v2311 = vadd.f32 %v2118, %v2310
  %v2312 = vpop.f32.mrb[0].mxu0
  %v2313 = vadd.f32 %v2120, %v2312
  %v2314 = vpop.f32.mrb[0].mxu0
  %v2315 = vadd.f32 %v2122, %v2314
  %2316 = vmatprep.mubr.bf16.mxu0 %v1581
  %2317 = vmatmul.mubr.bf16.gmra.mrb[0].mxu0 %v770
  %v2318 = vpop.f32.mrb[0].mxu0
  %v2319 = vadd.f32 %v2126, %v2318
  %v2320 = vpop.f32.mrb[0].mxu0
  %v2321 = vadd.f32 %v2128, %v2320
  %v2322 = vpop.f32.mrb[0].mxu0
  %v2323 = vadd.f32 %v2130, %v2322
  %v2324 = vpop.f32.mrb[0].mxu0
  %v2325 = vadd.f32 %v2132, %v2324
  %2326 = vmatprep.mubr.bf16.mxu0 %v1584
  %2327 = vmatmul.mubr.bf16.gmra.mrb[0].mxu0 %v778
  %v2328 = vpop.f32.mrb[0].mxu0
  %v2329 = vadd.f32 %v2136, %v2328
  %v2330 = vpop.f32.mrb[0].mxu0
  %v2331 = vadd.f32 %v2138, %v2330
  %v2332 = vpop.f32.mrb[0].mxu0
  %v2333 = vadd.f32 %v2140, %v2332
  %v2334 = vpop.f32.mrb[0].mxu0
  %v2335 = vadd.f32 %v2142, %v2334
  %2336 = vmatprep.mubr.bf16.mxu0 %v1587
  %2337 = vmatmul.mubr.bf16.gmra.mrb[0].mxu0 %v786
  %v2338 = vpop.f32.mrb[0].mxu0
  %v2339 = vadd.f32 %v2146, %v2338
  %v2340 = vpop.f32.mrb[0].mxu0
  %v2341 = vadd.f32 %v2148, %v2340
  %v2342 = vpop.f32.mrb[0].mxu0
  %v2343 = vadd.f32 %v2150, %v2342
  %v2344 = vpop.f32.mrb[0].mxu0
  %v2345 = vadd.f32 %v2152, %v2344
  %2346 = vmatprep.mubr.bf16.mxu0 %v1590
  %2347 = vmatmul.mubr.bf16.gmra.mrb[0].mxu0 %v794
  %v2348 = vpop.f32.mrb[0].mxu0
  %v2349 = vadd.f32 %v2156, %v2348
  %v2350 = vpop.f32.mrb[0].mxu0
  %v2351 = vadd.f32 %v2158, %v2350
  %v2352 = vpop.f32.mrb[0].mxu0
  %v2353 = vadd.f32 %v2160, %v2352
  %v2354 = vpop.f32.mrb[0].mxu0
  %v2355 = vadd.f32 %v2162, %v2354
  %2356 = vmatprep.mubr.bf16.mxu0 %v1593
  %2357 = vmatmul.mubr.bf16.gmra.mrb[0].mxu0 %v802
  %v2358 = vpop.f32.mrb[0].mxu0
  %v2359 = vadd.f32 %v2166, %v2358
  %v2360 = vpop.f32.mrb[0].mxu0
  %v2361 = vadd.f32 %v2168, %v2360
  %v2362 = vpop.f32.mrb[0].mxu0
  %v2363 = vadd.f32 %v2170, %v2362
  %v2364 = vpop.f32.mrb[0].mxu0
  %v2365 = vadd.f32 %v2172, %v2364
  %2366 = vmatprep.mubr.bf16.mxu0 %v1596
  %2367 = vmatmul.mubr.bf16.gmra.mrb[0].mxu0 %v810
  %v2368 = vpop.f32.mrb[0].mxu0
  %v2369 = vadd.f32 %v2176, %v2368
  %v2370 = vpop.f32.mrb[0].mxu0
  %v2371 = vadd.f32 %v2178, %v2370
  %v2372 = vpop.f32.mrb[0].mxu0
  %v2373 = vadd.f32 %v2180, %v2372
  %v2374 = vpop.f32.mrb[0].mxu0
  %v2375 = vadd.f32 %v2182, %v2374
  %2376 = vdwg.mxu0
  %2377 = vst [vmem:[#allocation2] sm:$0xff] %v2219
  %vm2378 = vcmask 916480
  %2379 = vst.msk [vmem:[#allocation2 + $0x8] sm:$0xff] %vm2378, %v2221
  %2380 = vst [vmem:[#allocation2 + $0x10] sm:$0xff] %v2223
  %2381 = vst.msk [vmem:[#allocation2 + $0x18] sm:$0xff] %vm2378, %v2225
  %2382 = vst [vmem:[#allocation2 + $0x20] sm:$0xff] %v2229
  %2383 = vst.msk [vmem:[#allocation2 + $0x28] sm:$0xff] %vm2378, %v2231
  %2384 = vst [vmem:[#allocation2 + $0x30] sm:$0xff] %v2233
  %2385 = vst.msk [vmem:[#allocation2 + $0x38] sm:$0xff] %vm2378, %v2235
  %2386 = vst [vmem:[#allocation2 + $0x40] sm:$0xff] %v2239
  %2387 = vst.msk [vmem:[#allocation2 + $0x48] sm:$0xff] %vm2378, %v2241
  %2388 = vst [vmem:[#allocation2 + $0x50] sm:$0xff] %v2243
  %2389 = vst.msk [vmem:[#allocation2 + $0x58] sm:$0xff] %vm2378, %v2245
  %2390 = vst [vmem:[#allocation2 + $0x60] sm:$0xff] %v2249
  %2391 = vst.msk [vmem:[#allocation2 + $0x68] sm:$0xff] %vm2378, %v2251
  %2392 = vst [vmem:[#allocation2 + $0x70] sm:$0xff] %v2253
  %2393 = vst.msk [vmem:[#allocation2 + $0x78] sm:$0xff] %vm2378, %v2255
  %2394 = vst [vmem:[#allocation2 + $0x80] sm:$0xff] %v2259
  %2395 = vst.msk [vmem:[#allocation2 + $0x88] sm:$0xff] %vm2378, %v2261
  %2396 = vst [vmem:[#allocation2 + $0x90] sm:$0xff] %v2263
  %2397 = vst.msk [vmem:[#allocation2 + $0x98] sm:$0xff] %vm2378, %v2265
  %2398 = vst [vmem:[#allocation2 + $0xa0] sm:$0xff] %v2269
  %2399 = vst.msk [vmem:[#allocation2 + $0xa8] sm:$0xff] %vm2378, %v2271
  %2400 = vst [vmem:[#allocation2 + $0xb0] sm:$0xff] %v2273
  %2401 = vst.msk [vmem:[#allocation2 + $0xb8] sm:$0xff] %vm2378, %v2275
  %2402 = vst [vmem:[#allocation2 + $0xc0] sm:$0xff] %v2279
  %2403 = vst.msk [vmem:[#allocation2 + $0xc8] sm:$0xff] %vm2378, %v2281
  %2404 = vst [vmem:[#allocation2 + $0xd0] sm:$0xff] %v2283
  %2405 = vst.msk [vmem:[#allocation2 + $0xd8] sm:$0xff] %vm2378, %v2285
  %2406 = vst [vmem:[#allocation2 + $0xe0] sm:$0xff] %v2289
  %2407 = vst.msk [vmem:[#allocation2 + $0xe8] sm:$0xff] %vm2378, %v2291
  %2408 = vst [vmem:[#allocation2 + $0xf0] sm:$0xff] %v2293
  %2409 = vst.msk [vmem:[#allocation2 + $0xf8] sm:$0xff] %vm2378, %v2295
  %2410 = vst [vmem:[#allocation2 + $0x100] sm:$0xff] %v2299
  %2411 = vst.msk [vmem:[#allocation2 + $0x108] sm:$0xff] %vm2378, %v2301
  %2412 = vst [vmem:[#allocation2 + $0x110] sm:$0xff] %v2303
  %2413 = vst.msk [vmem:[#allocation2 + $0x118] sm:$0xff] %vm2378, %v2305
  %2414 = vst [vmem:[#allocation2 + $0x120] sm:$0xff] %v2309
  %2415 = vst.msk [vmem:[#allocation2 + $0x128] sm:$0xff] %vm2378, %v2311
  %2416 = vst [vmem:[#allocation2 + $0x130] sm:$0xff] %v2313
  %2417 = vst.msk [vmem:[#allocation2 + $0x138] sm:$0xff] %vm2378, %v2315
  %2418 = vst [vmem:[#allocation2 + $0x140] sm:$0xff] %v2319
  %2419 = vst.msk [vmem:[#allocation2 + $0x148] sm:$0xff] %vm2378, %v2321
  %2420 = vst [vmem:[#allocation2 + $0x150] sm:$0xff] %v2323
  %2421 = vst.msk [vmem:[#allocation2 + $0x158] sm:$0xff] %vm2378, %v2325
  %2422 = vst [vmem:[#allocation2 + $0x160] sm:$0xff] %v2329
  %2423 = vst.msk [vmem:[#allocation2 + $0x168] sm:$0xff] %vm2378, %v2331
  %2424 = vst [vmem:[#allocation2 + $0x170] sm:$0xff] %v2333
  %2425 = vst.msk [vmem:[#allocation2 + $0x178] sm:$0xff] %vm2378, %v2335
  %2426 = vst [vmem:[#allocation2 + $0x180] sm:$0xff] %v2339
  %2427 = vst.msk [vmem:[#allocation2 + $0x188] sm:$0xff] %vm2378, %v2341
  %2428 = vst [vmem:[#allocation2 + $0x190] sm:$0xff] %v2343
  %2429 = vst.msk [vmem:[#allocation2 + $0x198] sm:$0xff] %vm2378, %v2345
  %2430 = vst [vmem:[#allocation2 + $0x1a0] sm:$0xff] %v2349
  %2431 = vst.msk [vmem:[#allocation2 + $0x1a8] sm:$0xff] %vm2378, %v2351
  %2432 = vst [vmem:[#allocation2 + $0x1b0] sm:$0xff] %v2353
  %2433 = vst.msk [vmem:[#allocation2 + $0x1b8] sm:$0xff] %vm2378, %v2355
  %2434 = vst [vmem:[#allocation2 + $0x1c0] sm:$0xff] %v2359
  %2435 = vst.msk [vmem:[#allocation2 + $0x1c8] sm:$0xff] %vm2378, %v2361
  %2436 = vst [vmem:[#allocation2 + $0x1d0] sm:$0xff] %v2363
  %2437 = vst.msk [vmem:[#allocation2 + $0x1d8] sm:$0xff] %vm2378, %v2365
  %2438 = vst [vmem:[#allocation2 + $0x1e0] sm:$0xff] %v2369
  %2439 = vst.msk [vmem:[#allocation2 + $0x1e8] sm:$0xff] %vm2378, %v2371
  %2440 = vst [vmem:[#allocation2 + $0x1f0] sm:$0xff] %v2373
  %2441 = vst.msk [vmem:[#allocation2 + $0x1f8] sm:$0xff] %vm2378, %v2375
  %s2442 = scalar_lea.vmem %s1, 1024
  %v2443 = vld [vmem:[%s2442] sm:$0xff]
  %v2444 = vld [vmem:[%s2442 + $0x8] sm:$0xff]
  %v2445 = vld [vmem:[%s2442 + $0x10] sm:$0xff]
  %v2446 = vld [vmem:[%s2442 + $0x18] sm:$0xff]
  %v2447 = vld [vmem:[%s2442 + $0x20] sm:$0xff]
  %v2448 = vld [vmem:[%s2442 + $0x28] sm:$0xff]
  %v2449 = vld [vmem:[%s2442 + $0x30] sm:$0xff]
  %v2450 = vld [vmem:[%s2442 + $0x38] sm:$0xff]
  %v2451 = vld [vmem:[%s2442 + $0x40] sm:$0xff]
  %v2452 = vld [vmem:[%s2442 + $0x48] sm:$0xff]
  %v2453 = vld [vmem:[%s2442 + $0x50] sm:$0xff]
  %v2454 = vld [vmem:[%s2442 + $0x58] sm:$0xff]
  %v2455 = vld [vmem:[%s2442 + $0x60] sm:$0xff]
  %v2456 = vld [vmem:[%s2442 + $0x68] sm:$0xff]
  %v2457 = vld [vmem:[%s2442 + $0x70] sm:$0xff]
  %v2458 = vld [vmem:[%s2442 + $0x78] sm:$0xff]
  %v2459 = vld [vmem:[%s2442 + $0x80] sm:$0xff]
  %v2460 = vld [vmem:[%s2442 + $0x88] sm:$0xff]
  %v2461 = vld [vmem:[%s2442 + $0x90] sm:$0xff]
  %v2462 = vld [vmem:[%s2442 + $0x98] sm:$0xff]
  %v2463 = vld [vmem:[%s2442 + $0xa0] sm:$0xff]
  %v2464 = vld [vmem:[%s2442 + $0xa8] sm:$0xff]
  %v2465 = vld [vmem:[%s2442 + $0xb0] sm:$0xff]
  %v2466 = vld [vmem:[%s2442 + $0xb8] sm:$0xff]
  %v2467 = vld [vmem:[%s2442 + $0xc0] sm:$0xff]
  %v2468 = vld [vmem:[%s2442 + $0xc8] sm:$0xff]
  %v2469 = vld [vmem:[%s2442 + $0xd0] sm:$0xff]
  %v2470 = vld [vmem:[%s2442 + $0xd8] sm:$0xff]
  %v2471 = vld [vmem:[%s2442 + $0xe0] sm:$0xff]
  %v2472 = vld [vmem:[%s2442 + $0xe8] sm:$0xff]
  %v2473 = vld [vmem:[%s2442 + $0xf0] sm:$0xff]
  %v2474 = vld [vmem:[%s2442 + $0xf8] sm:$0xff]
  %v2475 = vld [vmem:[%s2442 + $0x100] sm:$0xff]
  %v2476 = vld [vmem:[%s2442 + $0x108] sm:$0xff]
  %v2477 = vld [vmem:[%s2442 + $0x110] sm:$0xff]
  %v2478 = vld [vmem:[%s2442 + $0x118] sm:$0xff]
  %v2479 = vld [vmem:[%s2442 + $0x120] sm:$0xff]
  %v2480 = vld [vmem:[%s2442 + $0x128] sm:$0xff]
  %v2481 = vld [vmem:[%s2442 + $0x130] sm:$0xff]
  %v2482 = vld [vmem:[%s2442 + $0x138] sm:$0xff]
  %v2483 = vld [vmem:[%s2442 + $0x140] sm:$0xff]
  %v2484 = vld [vmem:[%s2442 + $0x148] sm:$0xff]
  %v2485 = vld [vmem:[%s2442 + $0x150] sm:$0xff]
  %v2486 = vld [vmem:[%s2442 + $0x158] sm:$0xff]
  %v2487 = vld [vmem:[%s2442 + $0x160] sm:$0xff]
  %v2488 = vld [vmem:[%s2442 + $0x168] sm:$0xff]
  %v2489 = vld [vmem:[%s2442 + $0x170] sm:$0xff]
  %v2490 = vld [vmem:[%s2442 + $0x178] sm:$0xff]
  %v2491 = vld [vmem:[%s2442 + $0x180] sm:$0xff]
  %v2492 = vld [vmem:[%s2442 + $0x188] sm:$0xff]
  %v2493 = vld [vmem:[%s2442 + $0x190] sm:$0xff]
  %v2494 = vld [vmem:[%s2442 + $0x198] sm:$0xff]
  %v2495 = vld [vmem:[%s2442 + $0x1a0] sm:$0xff]
  %v2496 = vld [vmem:[%s2442 + $0x1a8] sm:$0xff]
  %v2497 = vld [vmem:[%s2442 + $0x1b0] sm:$0xff]
  %v2498 = vld [vmem:[%s2442 + $0x1b8] sm:$0xff]
  %v2499 = vld [vmem:[%s2442 + $0x1c0] sm:$0xff]
  %v2500 = vld [vmem:[%s2442 + $0x1c8] sm:$0xff]
  %v2501 = vld [vmem:[%s2442 + $0x1d0] sm:$0xff]
  %v2502 = vld [vmem:[%s2442 + $0x1d8] sm:$0xff]
  %v2503 = vld [vmem:[%s2442 + $0x1e0] sm:$0xff]
  %v2504 = vld [vmem:[%s2442 + $0x1e8] sm:$0xff]
  %v2505 = vld [vmem:[%s2442 + $0x1f0] sm:$0xff]
  %v2506 = vld [vmem:[%s2442 + $0x1f8] sm:$0xff]
  %v2507 = vld [vmem:[%s2442 + $0x200] sm:$0xff]
  %v2508 = vld [vmem:[%s2442 + $0x208] sm:$0xff]
  %v2509 = vld [vmem:[%s2442 + $0x210] sm:$0xff]
  %v2510 = vld [vmem:[%s2442 + $0x218] sm:$0xff]
  %v2511 = vld [vmem:[%s2442 + $0x220] sm:$0xff]
  %v2512 = vld [vmem:[%s2442 + $0x228] sm:$0xff]
  %v2513 = vld [vmem:[%s2442 + $0x230] sm:$0xff]
  %v2514 = vld [vmem:[%s2442 + $0x238] sm:$0xff]
  %v2515 = vld [vmem:[%s2442 + $0x240] sm:$0xff]
  %v2516 = vld [vmem:[%s2442 + $0x248] sm:$0xff]
  %v2517 = vld [vmem:[%s2442 + $0x250] sm:$0xff]
  %v2518 = vld [vmem:[%s2442 + $0x258] sm:$0xff]
  %v2519 = vld [vmem:[%s2442 + $0x260] sm:$0xff]
  %v2520 = vld [vmem:[%s2442 + $0x268] sm:$0xff]
  %v2521 = vld [vmem:[%s2442 + $0x270] sm:$0xff]
  %v2522 = vld [vmem:[%s2442 + $0x278] sm:$0xff]
  %v2523 = vld [vmem:[%s2442 + $0x280] sm:$0xff]
  %v2524 = vld [vmem:[%s2442 + $0x288] sm:$0xff]
  %v2525 = vld [vmem:[%s2442 + $0x290] sm:$0xff]
  %v2526 = vld [vmem:[%s2442 + $0x298] sm:$0xff]
  %v2527 = vld [vmem:[%s2442 + $0x2a0] sm:$0xff]
  %v2528 = vld [vmem:[%s2442 + $0x2a8] sm:$0xff]
  %v2529 = vld [vmem:[%s2442 + $0x2b0] sm:$0xff]
  %v2530 = vld [vmem:[%s2442 + $0x2b8] sm:$0xff]
  %v2531 = vld [vmem:[%s2442 + $0x2c0] sm:$0xff]
  %v2532 = vld [vmem:[%s2442 + $0x2c8] sm:$0xff]
  %v2533 = vld [vmem:[%s2442 + $0x2d0] sm:$0xff]
  %v2534 = vld [vmem:[%s2442 + $0x2d8] sm:$0xff]
  %v2535 = vld [vmem:[%s2442 + $0x2e0] sm:$0xff]
  %v2536 = vld [vmem:[%s2442 + $0x2e8] sm:$0xff]
  %v2537 = vld [vmem:[%s2442 + $0x2f0] sm:$0xff]
  %v2538 = vld [vmem:[%s2442 + $0x2f8] sm:$0xff]
  %v2539 = vld [vmem:[%s2442 + $0x300] sm:$0xff]
  %v2540 = vld [vmem:[%s2442 + $0x308] sm:$0xff]
  %v2541 = vld [vmem:[%s2442 + $0x310] sm:$0xff]
  %v2542 = vld [vmem:[%s2442 + $0x318] sm:$0xff]
  %v2543 = vld [vmem:[%s2442 + $0x320] sm:$0xff]
  %v2544 = vld [vmem:[%s2442 + $0x328] sm:$0xff]
  %v2545 = vld [vmem:[%s2442 + $0x330] sm:$0xff]
  %v2546 = vld [vmem:[%s2442 + $0x338] sm:$0xff]
  %v2547 = vld [vmem:[%s2442 + $0x340] sm:$0xff]
  %v2548 = vld [vmem:[%s2442 + $0x348] sm:$0xff]
  %v2549 = vld [vmem:[%s2442 + $0x350] sm:$0xff]
  %v2550 = vld [vmem:[%s2442 + $0x358] sm:$0xff]
  %v2551 = vld [vmem:[%s2442 + $0x360] sm:$0xff]
  %v2552 = vld [vmem:[%s2442 + $0x368] sm:$0xff]
  %v2553 = vld [vmem:[%s2442 + $0x370] sm:$0xff]
  %v2554 = vld [vmem:[%s2442 + $0x378] sm:$0xff]
  %v2555 = vld [vmem:[%s2442 + $0x380] sm:$0xff]
  %v2556 = vld [vmem:[%s2442 + $0x388] sm:$0xff]
  %v2557 = vld [vmem:[%s2442 + $0x390] sm:$0xff]
  %v2558 = vld [vmem:[%s2442 + $0x398] sm:$0xff]
  %v2559 = vld [vmem:[%s2442 + $0x3a0] sm:$0xff]
  %v2560 = vld [vmem:[%s2442 + $0x3a8] sm:$0xff]
  %v2561 = vld [vmem:[%s2442 + $0x3b0] sm:$0xff]
  %v2562 = vld [vmem:[%s2442 + $0x3b8] sm:$0xff]
  %v2563 = vld [vmem:[%s2442 + $0x3c0] sm:$0xff]
  %v2564 = vld [vmem:[%s2442 + $0x3c8] sm:$0xff]
  %v2565 = vld [vmem:[%s2442 + $0x3d0] sm:$0xff]
  %v2566 = vld [vmem:[%s2442 + $0x3d8] sm:$0xff]
  %v2567 = vld [vmem:[%s2442 + $0x3e0] sm:$0xff]
  %v2568 = vld [vmem:[%s2442 + $0x3e8] sm:$0xff]
  %v2569 = vld [vmem:[%s2442 + $0x3f0] sm:$0xff]
  %v2570 = vld [vmem:[%s2442 + $0x3f8] sm:$0xff]
  %v2699 = vunpack.c.l.b16 %v2443
  %v2700 = vunpack.c.h.b16 %v2443
  %v2701 = vunpack.c.l.b16 %v2444
  %v2702 = vunpack.c.h.b16 %v2444
  %v2703 = vunpack.c.l.b16 %v2445
  %v2704 = vunpack.c.h.b16 %v2445
  %v2705 = vunpack.c.l.b16 %v2446
  %v2706 = vunpack.c.h.b16 %v2446
  %v2707 = vunpack.c.l.b16 %v2447
  %v2708 = vunpack.c.h.b16 %v2447
  %v2709 = vunpack.c.l.b16 %v2448
  %v2710 = vunpack.c.h.b16 %v2448
  %v2711 = vunpack.c.l.b16 %v2449
  %v2712 = vunpack.c.h.b16 %v2449
  %v2713 = vunpack.c.l.b16 %v2450
  %v2714 = vunpack.c.h.b16 %v2450
  %v2715 = vunpack.c.l.b16 %v2451
  %v2716 = vunpack.c.h.b16 %v2451
  %v2717 = vunpack.c.l.b16 %v2452
  %v2718 = vunpack.c.h.b16 %v2452
  %v2719 = vunpack.c.l.b16 %v2453
  %v2720 = vunpack.c.h.b16 %v2453
  %v2721 = vunpack.c.l.b16 %v2454
  %v2722 = vunpack.c.h.b16 %v2454
  %v2723 = vunpack.c.l.b16 %v2455
  %v2724 = vunpack.c.h.b16 %v2455
  %v2725 = vunpack.c.l.b16 %v2456
  %v2726 = vunpack.c.h.b16 %v2456
  %v2727 = vunpack.c.l.b16 %v2457
  %v2728 = vunpack.c.h.b16 %v2457
  %v2729 = vunpack.c.l.b16 %v2458
  %v2730 = vunpack.c.h.b16 %v2458
  %v2731 = vunpack.c.l.b16 %v2459
  %v2732 = vunpack.c.h.b16 %v2459
  %v2733 = vunpack.c.l.b16 %v2460
  %v2734 = vunpack.c.h.b16 %v2460
  %v2735 = vunpack.c.l.b16 %v2461
  %v2736 = vunpack.c.h.b16 %v2461
  %v2737 = vunpack.c.l.b16 %v2462
  %v2738 = vunpack.c.h.b16 %v2462
  %v2739 = vunpack.c.l.b16 %v2463
  %v2740 = vunpack.c.h.b16 %v2463
  %v2741 = vunpack.c.l.b16 %v2464
  %v2742 = vunpack.c.h.b16 %v2464
  %v2743 = vunpack.c.l.b16 %v2465
  %v2744 = vunpack.c.h.b16 %v2465
  %v2745 = vunpack.c.l.b16 %v2466
  %v2746 = vunpack.c.h.b16 %v2466
  %v2747 = vunpack.c.l.b16 %v2467
  %v2748 = vunpack.c.h.b16 %v2467
  %v2749 = vunpack.c.l.b16 %v2468
  %v2750 = vunpack.c.h.b16 %v2468
  %v2751 = vunpack.c.l.b16 %v2469
  %v2752 = vunpack.c.h.b16 %v2469
  %v2753 = vunpack.c.l.b16 %v2470
  %v2754 = vunpack.c.h.b16 %v2470
  %v2755 = vunpack.c.l.b16 %v2471
  %v2756 = vunpack.c.h.b16 %v2471
  %v2757 = vunpack.c.l.b16 %v2472
  %v2758 = vunpack.c.h.b16 %v2472
  %v2759 = vunpack.c.l.b16 %v2473
  %v2760 = vunpack.c.h.b16 %v2473
  %v2761 = vunpack.c.l.b16 %v2474
  %v2762 = vunpack.c.h.b16 %v2474
  %v2763 = vunpack.c.l.b16 %v2475
  %v2764 = vunpack.c.h.b16 %v2475
  %v2765 = vunpack.c.l.b16 %v2476
  %v2766 = vunpack.c.h.b16 %v2476
  %v2767 = vunpack.c.l.b16 %v2477
  %v2768 = vunpack.c.h.b16 %v2477
  %v2769 = vunpack.c.l.b16 %v2478
  %v2770 = vunpack.c.h.b16 %v2478
  %v2771 = vunpack.c.l.b16 %v2479
  %v2772 = vunpack.c.h.b16 %v2479
  %v2773 = vunpack.c.l.b16 %v2480
  %v2774 = vunpack.c.h.b16 %v2480
  %v2775 = vunpack.c.l.b16 %v2481
  %v2776 = vunpack.c.h.b16 %v2481
  %v2777 = vunpack.c.l.b16 %v2482
  %v2778 = vunpack.c.h.b16 %v2482
  %v2779 = vunpack.c.l.b16 %v2483
  %v2780 = vunpack.c.h.b16 %v2483
  %v2781 = vunpack.c.l.b16 %v2484
  %v2782 = vunpack.c.h.b16 %v2484
  %v2783 = vunpack.c.l.b16 %v2485
  %v2784 = vunpack.c.h.b16 %v2485
  %v2785 = vunpack.c.l.b16 %v2486
  %v2786 = vunpack.c.h.b16 %v2486
  %v2787 = vunpack.c.l.b16 %v2487
  %v2788 = vunpack.c.h.b16 %v2487
  %v2789 = vunpack.c.l.b16 %v2488
  %v2790 = vunpack.c.h.b16 %v2488
  %v2791 = vunpack.c.l.b16 %v2489
  %v2792 = vunpack.c.h.b16 %v2489
  %v2793 = vunpack.c.l.b16 %v2490
  %v2794 = vunpack.c.h.b16 %v2490
  %v2795 = vunpack.c.l.b16 %v2491
  %v2796 = vunpack.c.h.b16 %v2491
  %v2797 = vunpack.c.l.b16 %v2492
  %v2798 = vunpack.c.h.b16 %v2492
  %v2799 = vunpack.c.l.b16 %v2493
  %v2800 = vunpack.c.h.b16 %v2493
  %v2801 = vunpack.c.l.b16 %v2494
  %v2802 = vunpack.c.h.b16 %v2494
  %v2803 = vunpack.c.l.b16 %v2495
  %v2804 = vunpack.c.h.b16 %v2495
  %v2805 = vunpack.c.l.b16 %v2496
  %v2806 = vunpack.c.h.b16 %v2496
  %v2807 = vunpack.c.l.b16 %v2497
  %v2808 = vunpack.c.h.b16 %v2497
  %v2809 = vunpack.c.l.b16 %v2498
  %v2810 = vunpack.c.h.b16 %v2498
  %v2811 = vunpack.c.l.b16 %v2499
  %v2812 = vunpack.c.h.b16 %v2499
  %v2813 = vunpack.c.l.b16 %v2500
  %v2814 = vunpack.c.h.b16 %v2500
  %v2815 = vunpack.c.l.b16 %v2501
  %v2816 = vunpack.c.h.b16 %v2501
  %v2817 = vunpack.c.l.b16 %v2502
  %v2818 = vunpack.c.h.b16 %v2502
  %v2819 = vunpack.c.l.b16 %v2503
  %v2820 = vunpack.c.h.b16 %v2503
  %v2821 = vunpack.c.l.b16 %v2504
  %v2822 = vunpack.c.h.b16 %v2504
  %v2823 = vunpack.c.l.b16 %v2505
  %v2824 = vunpack.c.h.b16 %v2505
  %v2825 = vunpack.c.l.b16 %v2506
  %v2826 = vunpack.c.h.b16 %v2506
  %v2827 = vunpack.c.l.b16 %v2507
  %v2828 = vunpack.c.h.b16 %v2507
  %v2829 = vunpack.c.l.b16 %v2508
  %v2830 = vunpack.c.h.b16 %v2508
  %v2831 = vunpack.c.l.b16 %v2509
  %v2832 = vunpack.c.h.b16 %v2509
  %v2833 = vunpack.c.l.b16 %v2510
  %v2834 = vunpack.c.h.b16 %v2510
  %v2835 = vunpack.c.l.b16 %v2511
  %v2836 = vunpack.c.h.b16 %v2511
  %v2837 = vunpack.c.l.b16 %v2512
  %v2838 = vunpack.c.h.b16 %v2512
  %v2839 = vunpack.c.l.b16 %v2513
  %v2840 = vunpack.c.h.b16 %v2513
  %v2841 = vunpack.c.l.b16 %v2514
  %v2842 = vunpack.c.h.b16 %v2514
  %v2843 = vunpack.c.l.b16 %v2515
  %v2844 = vunpack.c.h.b16 %v2515
  %v2845 = vunpack.c.l.b16 %v2516
  %v2846 = vunpack.c.h.b16 %v2516
  %v2847 = vunpack.c.l.b16 %v2517
  %v2848 = vunpack.c.h.b16 %v2517
  %v2849 = vunpack.c.l.b16 %v2518
  %v2850 = vunpack.c.h.b16 %v2518
  %v2851 = vunpack.c.l.b16 %v2519
  %v2852 = vunpack.c.h.b16 %v2519
  %v2853 = vunpack.c.l.b16 %v2520
  %v2854 = vunpack.c.h.b16 %v2520
  %v2855 = vunpack.c.l.b16 %v2521
  %v2856 = vunpack.c.h.b16 %v2521
  %v2857 = vunpack.c.l.b16 %v2522
  %v2858 = vunpack.c.h.b16 %v2522
  %v2859 = vunpack.c.l.b16 %v2523
  %v2860 = vunpack.c.h.b16 %v2523
  %v2861 = vunpack.c.l.b16 %v2524
  %v2862 = vunpack.c.h.b16 %v2524
  %v2863 = vunpack.c.l.b16 %v2525
  %v2864 = vunpack.c.h.b16 %v2525
  %v2865 = vunpack.c.l.b16 %v2526
  %v2866 = vunpack.c.h.b16 %v2526
  %v2867 = vunpack.c.l.b16 %v2527
  %v2868 = vunpack.c.h.b16 %v2527
  %v2869 = vunpack.c.l.b16 %v2528
  %v2870 = vunpack.c.h.b16 %v2528
  %v2871 = vunpack.c.l.b16 %v2529
  %v2872 = vunpack.c.h.b16 %v2529
  %v2873 = vunpack.c.l.b16 %v2530
  %v2874 = vunpack.c.h.b16 %v2530
  %v2875 = vunpack.c.l.b16 %v2531
  %v2876 = vunpack.c.h.b16 %v2531
  %v2877 = vunpack.c.l.b16 %v2532
  %v2878 = vunpack.c.h.b16 %v2532
  %v2879 = vunpack.c.l.b16 %v2533
  %v2880 = vunpack.c.h.b16 %v2533
  %v2881 = vunpack.c.l.b16 %v2534
  %v2882 = vunpack.c.h.b16 %v2534
  %v2883 = vunpack.c.l.b16 %v2535
  %v2884 = vunpack.c.h.b16 %v2535
  %v2885 = vunpack.c.l.b16 %v2536
  %v2886 = vunpack.c.h.b16 %v2536
  %v2887 = vunpack.c.l.b16 %v2537
  %v2888 = vunpack.c.h.b16 %v2537
  %v2889 = vunpack.c.l.b16 %v2538
  %v2890 = vunpack.c.h.b16 %v2538
  %v2891 = vunpack.c.l.b16 %v2539
  %v2892 = vunpack.c.h.b16 %v2539
  %v2893 = vunpack.c.l.b16 %v2540
  %v2894 = vunpack.c.h.b16 %v2540
  %v2895 = vunpack.c.l.b16 %v2541
  %v2896 = vunpack.c.h.b16 %v2541
  %v2897 = vunpack.c.l.b16 %v2542
  %v2898 = vunpack.c.h.b16 %v2542
  %v2899 = vunpack.c.l.b16 %v2543
  %v2900 = vunpack.c.h.b16 %v2543
  %v2901 = vunpack.c.l.b16 %v2544
  %v2902 = vunpack.c.h.b16 %v2544
  %v2903 = vunpack.c.l.b16 %v2545
  %v2904 = vunpack.c.h.b16 %v2545
  %v2905 = vunpack.c.l.b16 %v2546
  %v2906 = vunpack.c.h.b16 %v2546
  %v2907 = vunpack.c.l.b16 %v2547
  %v2908 = vunpack.c.h.b16 %v2547
  %v2909 = vunpack.c.l.b16 %v2548
  %v2910 = vunpack.c.h.b16 %v2548
  %v2911 = vunpack.c.l.b16 %v2549
  %v2912 = vunpack.c.h.b16 %v2549
  %v2913 = vunpack.c.l.b16 %v2550
  %v2914 = vunpack.c.h.b16 %v2550
  %v2915 = vunpack.c.l.b16 %v2551
  %v2916 = vunpack.c.h.b16 %v2551
  %v2917 = vunpack.c.l.b16 %v2552
  %v2918 = vunpack.c.h.b16 %v2552
  %v2919 = vunpack.c.l.b16 %v2553
  %v2920 = vunpack.c.h.b16 %v2553
  %v2921 = vunpack.c.l.b16 %v2554
  %v2922 = vunpack.c.h.b16 %v2554
  %v2923 = vunpack.c.l.b16 %v2555
  %v2924 = vunpack.c.h.b16 %v2555
  %v2925 = vunpack.c.l.b16 %v2556
  %v2926 = vunpack.c.h.b16 %v2556
  %v2927 = vunpack.c.l.b16 %v2557
  %v2928 = vunpack.c.h.b16 %v2557
  %v2929 = vunpack.c.l.b16 %v2558
  %v2930 = vunpack.c.h.b16 %v2558
  %v2931 = vunpack.c.l.b16 %v2559
  %v2932 = vunpack.c.h.b16 %v2559
  %v2933 = vunpack.c.l.b16 %v2560
  %v2934 = vunpack.c.h.b16 %v2560
  %v2935 = vunpack.c.l.b16 %v2561
  %v2936 = vunpack.c.h.b16 %v2561
  %v2937 = vunpack.c.l.b16 %v2562
  %v2938 = vunpack.c.h.b16 %v2562
  %v2939 = vunpack.c.l.b16 %v2563
  %v2940 = vunpack.c.h.b16 %v2563
  %v2941 = vunpack.c.l.b16 %v2564
  %v2942 = vunpack.c.h.b16 %v2564
  %v2943 = vunpack.c.l.b16 %v2565
  %v2944 = vunpack.c.h.b16 %v2565
  %v2945 = vunpack.c.l.b16 %v2566
  %v2946 = vunpack.c.h.b16 %v2566
  %v2947 = vunpack.c.l.b16 %v2567
  %v2948 = vunpack.c.h.b16 %v2567
  %v2949 = vunpack.c.l.b16 %v2568
  %v2950 = vunpack.c.h.b16 %v2568
  %v2951 = vunpack.c.l.b16 %v2569
  %v2952 = vunpack.c.h.b16 %v2569
  %v2953 = vunpack.c.l.b16 %v2570
  %v2954 = vunpack.c.h.b16 %v2570
  %v2955 = vpack.c.b16 %v2707, %v2699
  %v2956 = vpack.c.b16 %v2708, %v2700
  %v2957 = vpack.c.b16 %v2709, %v2701
  %v2958 = vpack.c.b16 %v2710, %v2702
  %v2959 = vpack.c.b16 %v2711, %v2703
  %v2960 = vpack.c.b16 %v2712, %v2704
  %v2961 = vpack.c.b16 %v2713, %v2705
  %v2962 = vpack.c.b16 %v2714, %v2706
  %v2963 = vpack.c.b16 %v2723, %v2715
  %v2964 = vpack.c.b16 %v2724, %v2716
  %v2965 = vpack.c.b16 %v2725, %v2717
  %v2966 = vpack.c.b16 %v2726, %v2718
  %v2967 = vpack.c.b16 %v2727, %v2719
  %v2968 = vpack.c.b16 %v2728, %v2720
  %v2969 = vpack.c.b16 %v2729, %v2721
  %v2970 = vpack.c.b16 %v2730, %v2722
  %v2971 = vpack.c.b16 %v2739, %v2731
  %v2972 = vpack.c.b16 %v2740, %v2732
  %v2973 = vpack.c.b16 %v2741, %v2733
  %v2974 = vpack.c.b16 %v2742, %v2734
  %v2975 = vpack.c.b16 %v2743, %v2735
  %v2976 = vpack.c.b16 %v2744, %v2736
  %v2977 = vpack.c.b16 %v2745, %v2737
  %v2978 = vpack.c.b16 %v2746, %v2738
  %v2979 = vpack.c.b16 %v2755, %v2747
  %v2980 = vpack.c.b16 %v2756, %v2748
  %v2981 = vpack.c.b16 %v2757, %v2749
  %v2982 = vpack.c.b16 %v2758, %v2750
  %v2983 = vpack.c.b16 %v2759, %v2751
  %v2984 = vpack.c.b16 %v2760, %v2752
  %v2985 = vpack.c.b16 %v2761, %v2753
  %v2986 = vpack.c.b16 %v2762, %v2754
  %v2987 = vpack.c.b16 %v2771, %v2763
  %v2988 = vpack.c.b16 %v2772, %v2764
  %v2989 = vpack.c.b16 %v2773, %v2765
  %v2990 = vpack.c.b16 %v2774, %v2766
  %v2991 = vpack.c.b16 %v2775, %v2767
  %v2992 = vpack.c.b16 %v2776, %v2768
  %v2993 = vpack.c.b16 %v2777, %v2769
  %v2994 = vpack.c.b16 %v2778, %v2770
  %v2995 = vpack.c.b16 %v2787, %v2779
  %v2996 = vpack.c.b16 %v2788, %v2780
  %v2997 = vpack.c.b16 %v2789, %v2781
  %v2998 = vpack.c.b16 %v2790, %v2782
  %v2999 = vpack.c.b16 %v2791, %v2783
  %v3000 = vpack.c.b16 %v2792, %v2784
  %v3001 = vpack.c.b16 %v2793, %v2785
  %v3002 = vpack.c.b16 %v2794, %v2786
  %v3003 = vpack.c.b16 %v2803, %v2795
  %v3004 = vpack.c.b16 %v2804, %v2796
  %v3005 = vpack.c.b16 %v2805, %v2797
  %v3006 = vpack.c.b16 %v2806, %v2798
  %v3007 = vpack.c.b16 %v2807, %v2799
  %v3008 = vpack.c.b16 %v2808, %v2800
  %v3009 = vpack.c.b16 %v2809, %v2801
  %v3010 = vpack.c.b16 %v2810, %v2802
  %v3011 = vpack.c.b16 %v2819, %v2811
  %v3012 = vpack.c.b16 %v2820, %v2812
  %v3013 = vpack.c.b16 %v2821, %v2813
  %v3014 = vpack.c.b16 %v2822, %v2814
  %v3015 = vpack.c.b16 %v2823, %v2815
  %v3016 = vpack.c.b16 %v2824, %v2816
  %v3017 = vpack.c.b16 %v2825, %v2817
  %v3018 = vpack.c.b16 %v2826, %v2818
  %v3019 = vpack.c.b16 %v2835, %v2827
  %v3020 = vpack.c.b16 %v2836, %v2828
  %v3021 = vpack.c.b16 %v2837, %v2829
  %v3022 = vpack.c.b16 %v2838, %v2830
  %v3023 = vpack.c.b16 %v2839, %v2831
  %v3024 = vpack.c.b16 %v2840, %v2832
  %v3025 = vpack.c.b16 %v2841, %v2833
  %v3026 = vpack.c.b16 %v2842, %v2834
  %v3027 = vpack.c.b16 %v2851, %v2843
  %v3028 = vpack.c.b16 %v2852, %v2844
  %v3029 = vpack.c.b16 %v2853, %v2845
  %v3030 = vpack.c.b16 %v2854, %v2846
  %v3031 = vpack.c.b16 %v2855, %v2847
  %v3032 = vpack.c.b16 %v2856, %v2848
  %v3033 = vpack.c.b16 %v2857, %v2849
  %v3034 = vpack.c.b16 %v2858, %v2850
  %v3035 = vpack.c.b16 %v2867, %v2859
  %v3036 = vpack.c.b16 %v2868, %v2860
  %v3037 = vpack.c.b16 %v2869, %v2861
  %v3038 = vpack.c.b16 %v2870, %v2862
  %v3039 = vpack.c.b16 %v2871, %v2863
  %v3040 = vpack.c.b16 %v2872, %v2864
  %v3041 = vpack.c.b16 %v2873, %v2865
  %v3042 = vpack.c.b16 %v2874, %v2866
  %v3043 = vpack.c.b16 %v2883, %v2875
  %v3044 = vpack.c.b16 %v2884, %v2876
  %v3045 = vpack.c.b16 %v2885, %v2877
  %v3046 = vpack.c.b16 %v2886, %v2878
  %v3047 = vpack.c.b16 %v2887, %v2879
  %v3048 = vpack.c.b16 %v2888, %v2880
  %v3049 = vpack.c.b16 %v2889, %v2881
  %v3050 = vpack.c.b16 %v2890, %v2882
  %v3051 = vpack.c.b16 %v2899, %v2891
  %v3052 = vpack.c.b16 %v2900, %v2892
  %v3053 = vpack.c.b16 %v2901, %v2893
  %v3054 = vpack.c.b16 %v2902, %v2894
  %v3055 = vpack.c.b16 %v2903, %v2895
  %v3056 = vpack.c.b16 %v2904, %v2896
  %v3057 = vpack.c.b16 %v2905, %v2897
  %v3058 = vpack.c.b16 %v2906, %v2898
  %v3059 = vpack.c.b16 %v2915, %v2907
  %v3060 = vpack.c.b16 %v2916, %v2908
  %v3061 = vpack.c.b16 %v2917, %v2909
  %v3062 = vpack.c.b16 %v2918, %v2910
  %v3063 = vpack.c.b16 %v2919, %v2911
  %v3064 = vpack.c.b16 %v2920, %v2912
  %v3065 = vpack.c.b16 %v2921, %v2913
  %v3066 = vpack.c.b16 %v2922, %v2914
  %v3067 = vpack.c.b16 %v2931, %v2923
  %v3068 = vpack.c.b16 %v2932, %v2924
  %v3069 = vpack.c.b16 %v2933, %v2925
  %v3070 = vpack.c.b16 %v2934, %v2926
  %v3071 = vpack.c.b16 %v2935, %v2927
  %v3072 = vpack.c.b16 %v2936, %v2928
  %v3073 = vpack.c.b16 %v2937, %v2929
  %v3074 = vpack.c.b16 %v2938, %v2930
  %v3075 = vpack.c.b16 %v2947, %v2939
  %v3076 = vpack.c.b16 %v2948, %v2940
  %v3077 = vpack.c.b16 %v2949, %v2941
  %v3078 = vpack.c.b16 %v2950, %v2942
  %v3079 = vpack.c.b16 %v2951, %v2943
  %v3080 = vpack.c.b16 %v2952, %v2944
  %v3081 = vpack.c.b16 %v2953, %v2945
  %v3082 = vpack.c.b16 %v2954, %v2946
  %v3196 = vsel %vm1549, %v2962, 0
  %v3199 = vsel %vm1549, %v2970, 0
  %v3202 = vsel %vm1549, %v2978, 0
  %v3205 = vsel %vm1549, %v2986, 0
  %v3208 = vsel %vm1549, %v2994, 0
  %v3211 = vsel %vm1549, %v3002, 0
  %v3214 = vsel %vm1549, %v3010, 0
  %v3217 = vsel %vm1549, %v3018, 0
  %v3220 = vsel %vm1549, %v3026, 0
  %v3223 = vsel %vm1549, %v3034, 0
  %v3226 = vsel %vm1549, %v3042, 0
  %v3229 = vsel %vm1549, %v3050, 0
  %v3232 = vsel %vm1549, %v3058, 0
  %v3235 = vsel %vm1549, %v3066, 0
  %v3238 = vsel %vm1549, %v3074, 0
  %v3241 = vsel %vm1549, %v3082, 0
  %3243 = vmatprep.subr.bf16.mxu0 %v1300
  %3244 = vmatpush1.bf16.msra.mxu0 %v1299
  %3245 = vmatprep.subr.bf16.mxu0 %v1302
  %3246 = vmatpush1.bf16.msra.mxu0 %v1301
  %3247 = vmatprep.subr.bf16.mxu0 %v1304
  %3248 = vmatpush1.bf16.msra.mxu0 %v1303
  %3249 = vmatprep.subr.bf16.mxu0 %v1306
  %3250 = vmatpush1.bf16.msra.mxu0 %v1305
  %3251 = vmatprep.subr.bf16.mxu0 %v1308
  %3252 = vmatpush1.bf16.msra.mxu0 %v1307
  %3253 = vmatprep.subr.bf16.mxu0 %v1310
  %3254 = vmatpush1.bf16.msra.mxu0 %v1309
  %3255 = vmatprep.subr.bf16.mxu0 %v1312
  %3256 = vmatpush1.bf16.msra.mxu0 %v1311
  %3257 = vmatprep.subr.bf16.mxu0 %v1314
  %3258 = vmatpush1.bf16.msra.mxu0 %v1313
  %3259 = vmatprep.subr.bf16.mxu0 %v1316
  %3260 = vmatpush1.bf16.msra.mxu0 %v1315
  %3261 = vmatprep.subr.bf16.mxu0 %v1318
  %3262 = vmatpush1.bf16.msra.mxu0 %v1317
  %3263 = vmatprep.subr.bf16.mxu0 %v1320
  %3264 = vmatpush1.bf16.msra.mxu0 %v1319
  %3265 = vmatprep.subr.bf16.mxu0 %v1322
  %3266 = vmatpush1.bf16.msra.mxu0 %v1321
  %3267 = vmatprep.subr.bf16.mxu0 %v1324
  %3268 = vmatpush1.bf16.msra.mxu0 %v1323
  %3269 = vmatprep.subr.bf16.mxu0 %v1326
  %3270 = vmatpush1.bf16.msra.mxu0 %v1325
  %3271 = vmatprep.subr.bf16.mxu0 %v1328
  %3272 = vmatpush1.bf16.msra.mxu0 %v1327
  %3273 = vmatprep.subr.bf16.mxu0 %v1330
  %3274 = vmatpush1.bf16.msra.mxu0 %v1329
  %3275 = vmatprep.mubr.bf16.mxu0 %v2956
  %3276 = vmatmul.mubr.bf16.gmra.mrb[0].mxu0 %v2955
  %v3277 = vpop.f32.mrb[0].mxu0
  %v3278 = vadd.f32 0.0, %v3277
  %v3279 = vpop.f32.mrb[0].mxu0
  %v3280 = vadd.f32 0.0, %v3279
  %v3281 = vpop.f32.mrb[0].mxu0
  %v3282 = vadd.f32 0.0, %v3281
  %v3283 = vpop.f32.mrb[0].mxu0
  %v3284 = vadd.f32 0.0, %v3283
  %3285 = vmatprep.mubr.bf16.mxu0 %v2964
  %3286 = vmatmul.mubr.bf16.gmra.mrb[0].mxu0 %v2963
  %v3287 = vpop.f32.mrb[0].mxu0
  %v3288 = vadd.f32 0.0, %v3287
  %v3289 = vpop.f32.mrb[0].mxu0
  %v3290 = vadd.f32 0.0, %v3289
  %v3291 = vpop.f32.mrb[0].mxu0
  %v3292 = vadd.f32 0.0, %v3291
  %v3293 = vpop.f32.mrb[0].mxu0
  %v3294 = vadd.f32 0.0, %v3293
  %3295 = vmatprep.mubr.bf16.mxu0 %v2972
  %3296 = vmatmul.mubr.bf16.gmra.mrb[0].mxu0 %v2971
  %v3297 = vpop.f32.mrb[0].mxu0
  %v3298 = vadd.f32 0.0, %v3297
  %v3299 = vpop.f32.mrb[0].mxu0
  %v3300 = vadd.f32 0.0, %v3299
  %v3301 = vpop.f32.mrb[0].mxu0
  %v3302 = vadd.f32 0.0, %v3301
  %v3303 = vpop.f32.mrb[0].mxu0
  %v3304 = vadd.f32 0.0, %v3303
  %3305 = vmatprep.mubr.bf16.mxu0 %v2980
  %3306 = vmatmul.mubr.bf16.gmra.mrb[0].mxu0 %v2979
  %v3307 = vpop.f32.mrb[0].mxu0
  %v3308 = vadd.f32 0.0, %v3307
  %v3309 = vpop.f32.mrb[0].mxu0
  %v3310 = vadd.f32 0.0, %v3309
  %v3311 = vpop.f32.mrb[0].mxu0
  %v3312 = vadd.f32 0.0, %v3311
  %v3313 = vpop.f32.mrb[0].mxu0
  %v3314 = vadd.f32 0.0, %v3313
  %3315 = vmatprep.mubr.bf16.mxu0 %v2988
  %3316 = vmatmul.mubr.bf16.gmra.mrb[0].mxu0 %v2987
  %v3317 = vpop.f32.mrb[0].mxu0
  %v3318 = vadd.f32 0.0, %v3317
  %v3319 = vpop.f32.mrb[0].mxu0
  %v3320 = vadd.f32 0.0, %v3319
  %v3321 = vpop.f32.mrb[0].mxu0
  %v3322 = vadd.f32 0.0, %v3321
  %v3323 = vpop.f32.mrb[0].mxu0
  %v3324 = vadd.f32 0.0, %v3323
  %3325 = vmatprep.mubr.bf16.mxu0 %v2996
  %3326 = vmatmul.mubr.bf16.gmra.mrb[0].mxu0 %v2995
  %v3327 = vpop.f32.mrb[0].mxu0
  %v3328 = vadd.f32 0.0, %v3327
  %v3329 = vpop.f32.mrb[0].mxu0
  %v3330 = vadd.f32 0.0, %v3329
  %v3331 = vpop.f32.mrb[0].mxu0
  %v3332 = vadd.f32 0.0, %v3331
  %v3333 = vpop.f32.mrb[0].mxu0
  %v3334 = vadd.f32 0.0, %v3333
  %3335 = vmatprep.mubr.bf16.mxu0 %v3004
  %3336 = vmatmul.mubr.bf16.gmra.mrb[0].mxu0 %v3003
  %v3337 = vpop.f32.mrb[0].mxu0
  %v3338 = vadd.f32 0.0, %v3337
  %v3339 = vpop.f32.mrb[0].mxu0
  %v3340 = vadd.f32 0.0, %v3339
  %v3341 = vpop.f32.mrb[0].mxu0
  %v3342 = vadd.f32 0.0, %v3341
  %v3343 = vpop.f32.mrb[0].mxu0
  %v3344 = vadd.f32 0.0, %v3343
  %3345 = vmatprep.mubr.bf16.mxu0 %v3012
  %3346 = vmatmul.mubr.bf16.gmra.mrb[0].mxu0 %v3011
  %v3347 = vpop.f32.mrb[0].mxu0
  %v3348 = vadd.f32 0.0, %v3347
  %v3349 = vpop.f32.mrb[0].mxu0
  %v3350 = vadd.f32 0.0, %v3349
  %v3351 = vpop.f32.mrb[0].mxu0
  %v3352 = vadd.f32 0.0, %v3351
  %v3353 = vpop.f32.mrb[0].mxu0
  %v3354 = vadd.f32 0.0, %v3353
  %3355 = vmatprep.mubr.bf16.mxu0 %v3020
  %3356 = vmatmul.mubr.bf16.gmra.mrb[0].mxu0 %v3019
  %v3357 = vpop.f32.mrb[0].mxu0
  %v3358 = vadd.f32 0.0, %v3357
  %v3359 = vpop.f32.mrb[0].mxu0
  %v3360 = vadd.f32 0.0, %v3359
  %v3361 = vpop.f32.mrb[0].mxu0
  %v3362 = vadd.f32 0.0, %v3361
  %v3363 = vpop.f32.mrb[0].mxu0
  %v3364 = vadd.f32 0.0, %v3363
  %3365 = vmatprep.mubr.bf16.mxu0 %v3028
  %3366 = vmatmul.mubr.bf16.gmra.mrb[0].mxu0 %v3027
  %v3367 = vpop.f32.mrb[0].mxu0
  %v3368 = vadd.f32 0.0, %v3367
  %v3369 = vpop.f32.mrb[0].mxu0
  %v3370 = vadd.f32 0.0, %v3369
  %v3371 = vpop.f32.mrb[0].mxu0
  %v3372 = vadd.f32 0.0, %v3371
  %v3373 = vpop.f32.mrb[0].mxu0
  %v3374 = vadd.f32 0.0, %v3373
  %3375 = vmatprep.mubr.bf16.mxu0 %v3036
  %3376 = vmatmul.mubr.bf16.gmra.mrb[0].mxu0 %v3035
  %v3377 = vpop.f32.mrb[0].mxu0
  %v3378 = vadd.f32 0.0, %v3377
  %v3379 = vpop.f32.mrb[0].mxu0
  %v3380 = vadd.f32 0.0, %v3379
  %v3381 = vpop.f32.mrb[0].mxu0
  %v3382 = vadd.f32 0.0, %v3381
  %v3383 = vpop.f32.mrb[0].mxu0
  %v3384 = vadd.f32 0.0, %v3383
  %3385 = vmatprep.mubr.bf16.mxu0 %v3044
  %3386 = vmatmul.mubr.bf16.gmra.mrb[0].mxu0 %v3043
  %v3387 = vpop.f32.mrb[0].mxu0
  %v3388 = vadd.f32 0.0, %v3387
  %v3389 = vpop.f32.mrb[0].mxu0
  %v3390 = vadd.f32 0.0, %v3389
  %v3391 = vpop.f32.mrb[0].mxu0
  %v3392 = vadd.f32 0.0, %v3391
  %v3393 = vpop.f32.mrb[0].mxu0
  %v3394 = vadd.f32 0.0, %v3393
  %3395 = vmatprep.mubr.bf16.mxu0 %v3052
  %3396 = vmatmul.mubr.bf16.gmra.mrb[0].mxu0 %v3051
  %v3397 = vpop.f32.mrb[0].mxu0
  %v3398 = vadd.f32 0.0, %v3397
  %v3399 = vpop.f32.mrb[0].mxu0
  %v3400 = vadd.f32 0.0, %v3399
  %v3401 = vpop.f32.mrb[0].mxu0
  %v3402 = vadd.f32 0.0, %v3401
  %v3403 = vpop.f32.mrb[0].mxu0
  %v3404 = vadd.f32 0.0, %v3403
  %3405 = vmatprep.mubr.bf16.mxu0 %v3060
  %3406 = vmatmul.mubr.bf16.gmra.mrb[0].mxu0 %v3059
  %v3407 = vpop.f32.mrb[0].mxu0
  %v3408 = vadd.f32 0.0, %v3407
  %v3409 = vpop.f32.mrb[0].mxu0
  %v3410 = vadd.f32 0.0, %v3409
  %v3411 = vpop.f32.mrb[0].mxu0
  %v3412 = vadd.f32 0.0, %v3411
  %v3413 = vpop.f32.mrb[0].mxu0
  %v3414 = vadd.f32 0.0, %v3413
  %3415 = vmatprep.mubr.bf16.mxu0 %v3068
  %3416 = vmatmul.mubr.bf16.gmra.mrb[0].mxu0 %v3067
  %v3417 = vpop.f32.mrb[0].mxu0
  %v3418 = vadd.f32 0.0, %v3417
  %v3419 = vpop.f32.mrb[0].mxu0
  %v3420 = vadd.f32 0.0, %v3419
  %v3421 = vpop.f32.mrb[0].mxu0
  %v3422 = vadd.f32 0.0, %v3421
  %v3423 = vpop.f32.mrb[0].mxu0
  %v3424 = vadd.f32 0.0, %v3423
  %3425 = vmatprep.mubr.bf16.mxu0 %v3076
  %3426 = vmatmul.mubr.bf16.gmra.mrb[0].mxu0 %v3075
  %v3427 = vpop.f32.mrb[0].mxu0
  %v3428 = vadd.f32 0.0, %v3427
  %v3429 = vpop.f32.mrb[0].mxu0
  %v3430 = vadd.f32 0.0, %v3429
  %v3431 = vpop.f32.mrb[0].mxu0
  %v3432 = vadd.f32 0.0, %v3431
  %v3433 = vpop.f32.mrb[0].mxu0
  %v3434 = vadd.f32 0.0, %v3433
  %3435 = vdwg.mxu0
  %3436 = vmatprep.subr.bf16.mxu0 %v1332
  %3437 = vmatpush1.bf16.msra.mxu0 %v1331
  %3438 = vmatprep.subr.bf16.mxu0 %v1334
  %3439 = vmatpush1.bf16.msra.mxu0 %v1333
  %3440 = vmatprep.subr.bf16.mxu0 %v1336
  %3441 = vmatpush1.bf16.msra.mxu0 %v1335
  %3442 = vmatprep.subr.bf16.mxu0 %v1338
  %3443 = vmatpush1.bf16.msra.mxu0 %v1337
  %3444 = vmatprep.subr.bf16.mxu0 %v1340
  %3445 = vmatpush1.bf16.msra.mxu0 %v1339
  %3446 = vmatprep.subr.bf16.mxu0 %v1342
  %3447 = vmatpush1.bf16.msra.mxu0 %v1341
  %3448 = vmatprep.subr.bf16.mxu0 %v1344
  %3449 = vmatpush1.bf16.msra.mxu0 %v1343
  %3450 = vmatprep.subr.bf16.mxu0 %v1346
  %3451 = vmatpush1.bf16.msra.mxu0 %v1345
  %3452 = vmatprep.subr.bf16.mxu0 %v1348
  %3453 = vmatpush1.bf16.msra.mxu0 %v1347
  %3454 = vmatprep.subr.bf16.mxu0 %v1350
  %3455 = vmatpush1.bf16.msra.mxu0 %v1349
  %3456 = vmatprep.subr.bf16.mxu0 %v1352
  %3457 = vmatpush1.bf16.msra.mxu0 %v1351
  %3458 = vmatprep.subr.bf16.mxu0 %v1354
  %3459 = vmatpush1.bf16.msra.mxu0 %v1353
  %3460 = vmatprep.subr.bf16.mxu0 %v1356
  %3461 = vmatpush1.bf16.msra.mxu0 %v1355
  %3462 = vmatprep.subr.bf16.mxu0 %v1358
  %3463 = vmatpush1.bf16.msra.mxu0 %v1357
  %3464 = vmatprep.subr.bf16.mxu0 %v1360
  %3465 = vmatpush1.bf16.msra.mxu0 %v1359
  %3466 = vmatprep.subr.bf16.mxu0 %v1362
  %3467 = vmatpush1.bf16.msra.mxu0 %v1361
  %3468 = vmatprep.mubr.bf16.mxu0 %v2958
  %3469 = vmatmul.mubr.bf16.gmra.mrb[0].mxu0 %v2957
  %v3470 = vpop.f32.mrb[0].mxu0
  %v3471 = vadd.f32 %v3278, %v3470
  %v3472 = vpop.f32.mrb[0].mxu0
  %v3473 = vadd.f32 %v3280, %v3472
  %v3474 = vpop.f32.mrb[0].mxu0
  %v3475 = vadd.f32 %v3282, %v3474
  %v3476 = vpop.f32.mrb[0].mxu0
  %v3477 = vadd.f32 %v3284, %v3476
  %3478 = vmatprep.mubr.bf16.mxu0 %v2966
  %3479 = vmatmul.mubr.bf16.gmra.mrb[0].mxu0 %v2965
  %v3480 = vpop.f32.mrb[0].mxu0
  %v3481 = vadd.f32 %v3288, %v3480
  %v3482 = vpop.f32.mrb[0].mxu0
  %v3483 = vadd.f32 %v3290, %v3482
  %v3484 = vpop.f32.mrb[0].mxu0
  %v3485 = vadd.f32 %v3292, %v3484
  %v3486 = vpop.f32.mrb[0].mxu0
  %v3487 = vadd.f32 %v3294, %v3486
  %3488 = vmatprep.mubr.bf16.mxu0 %v2974
  %3489 = vmatmul.mubr.bf16.gmra.mrb[0].mxu0 %v2973
  %v3490 = vpop.f32.mrb[0].mxu0
  %v3491 = vadd.f32 %v3298, %v3490
  %v3492 = vpop.f32.mrb[0].mxu0
  %v3493 = vadd.f32 %v3300, %v3492
  %v3494 = vpop.f32.mrb[0].mxu0
  %v3495 = vadd.f32 %v3302, %v3494
  %v3496 = vpop.f32.mrb[0].mxu0
  %v3497 = vadd.f32 %v3304, %v3496
  %3498 = vmatprep.mubr.bf16.mxu0 %v2982
  %3499 = vmatmul.mubr.bf16.gmra.mrb[0].mxu0 %v2981
  %v3500 = vpop.f32.mrb[0].mxu0
  %v3501 = vadd.f32 %v3308, %v3500
  %v3502 = vpop.f32.mrb[0].mxu0
  %v3503 = vadd.f32 %v3310, %v3502
  %v3504 = vpop.f32.mrb[0].mxu0
  %v3505 = vadd.f32 %v3312, %v3504
  %v3506 = vpop.f32.mrb[0].mxu0
  %v3507 = vadd.f32 %v3314, %v3506
  %3508 = vmatprep.mubr.bf16.mxu0 %v2990
  %3509 = vmatmul.mubr.bf16.gmra.mrb[0].mxu0 %v2989
  %v3510 = vpop.f32.mrb[0].mxu0
  %v3511 = vadd.f32 %v3318, %v3510
  %v3512 = vpop.f32.mrb[0].mxu0
  %v3513 = vadd.f32 %v3320, %v3512
  %v3514 = vpop.f32.mrb[0].mxu0
  %v3515 = vadd.f32 %v3322, %v3514
  %v3516 = vpop.f32.mrb[0].mxu0
  %v3517 = vadd.f32 %v3324, %v3516
  %3518 = vmatprep.mubr.bf16.mxu0 %v2998
  %3519 = vmatmul.mubr.bf16.gmra.mrb[0].mxu0 %v2997
  %v3520 = vpop.f32.mrb[0].mxu0
  %v3521 = vadd.f32 %v3328, %v3520
  %v3522 = vpop.f32.mrb[0].mxu0
  %v3523 = vadd.f32 %v3330, %v3522
  %v3524 = vpop.f32.mrb[0].mxu0
  %v3525 = vadd.f32 %v3332, %v3524
  %v3526 = vpop.f32.mrb[0].mxu0
  %v3527 = vadd.f32 %v3334, %v3526
  %3528 = vmatprep.mubr.bf16.mxu0 %v3006
  %3529 = vmatmul.mubr.bf16.gmra.mrb[0].mxu0 %v3005
  %v3530 = vpop.f32.mrb[0].mxu0
  %v3531 = vadd.f32 %v3338, %v3530
  %v3532 = vpop.f32.mrb[0].mxu0
  %v3533 = vadd.f32 %v3340, %v3532
  %v3534 = vpop.f32.mrb[0].mxu0
  %v3535 = vadd.f32 %v3342, %v3534
  %v3536 = vpop.f32.mrb[0].mxu0
  %v3537 = vadd.f32 %v3344, %v3536
  %3538 = vmatprep.mubr.bf16.mxu0 %v3014
  %3539 = vmatmul.mubr.bf16.gmra.mrb[0].mxu0 %v3013
  %v3540 = vpop.f32.mrb[0].mxu0
  %v3541 = vadd.f32 %v3348, %v3540
  %v3542 = vpop.f32.mrb[0].mxu0
  %v3543 = vadd.f32 %v3350, %v3542
  %v3544 = vpop.f32.mrb[0].mxu0
  %v3545 = vadd.f32 %v3352, %v3544
  %v3546 = vpop.f32.mrb[0].mxu0
  %v3547 = vadd.f32 %v3354, %v3546
  %3548 = vmatprep.mubr.bf16.mxu0 %v3022
  %3549 = vmatmul.mubr.bf16.gmra.mrb[0].mxu0 %v3021
  %v3550 = vpop.f32.mrb[0].mxu0
  %v3551 = vadd.f32 %v3358, %v3550
  %v3552 = vpop.f32.mrb[0].mxu0
  %v3553 = vadd.f32 %v3360, %v3552
  %v3554 = vpop.f32.mrb[0].mxu0
  %v3555 = vadd.f32 %v3362, %v3554
  %v3556 = vpop.f32.mrb[0].mxu0
  %v3557 = vadd.f32 %v3364, %v3556
  %3558 = vmatprep.mubr.bf16.mxu0 %v3030
  %3559 = vmatmul.mubr.bf16.gmra.mrb[0].mxu0 %v3029
  %v3560 = vpop.f32.mrb[0].mxu0
  %v3561 = vadd.f32 %v3368, %v3560
  %v3562 = vpop.f32.mrb[0].mxu0
  %v3563 = vadd.f32 %v3370, %v3562
  %v3564 = vpop.f32.mrb[0].mxu0
  %v3565 = vadd.f32 %v3372, %v3564
  %v3566 = vpop.f32.mrb[0].mxu0
  %v3567 = vadd.f32 %v3374, %v3566
  %3568 = vmatprep.mubr.bf16.mxu0 %v3038
  %3569 = vmatmul.mubr.bf16.gmra.mrb[0].mxu0 %v3037
  %v3570 = vpop.f32.mrb[0].mxu0
  %v3571 = vadd.f32 %v3378, %v3570
  %v3572 = vpop.f32.mrb[0].mxu0
  %v3573 = vadd.f32 %v3380, %v3572
  %v3574 = vpop.f32.mrb[0].mxu0
  %v3575 = vadd.f32 %v3382, %v3574
  %v3576 = vpop.f32.mrb[0].mxu0
  %v3577 = vadd.f32 %v3384, %v3576
  %3578 = vmatprep.mubr.bf16.mxu0 %v3046
  %3579 = vmatmul.mubr.bf16.gmra.mrb[0].mxu0 %v3045
  %v3580 = vpop.f32.mrb[0].mxu0
  %v3581 = vadd.f32 %v3388, %v3580
  %v3582 = vpop.f32.mrb[0].mxu0
  %v3583 = vadd.f32 %v3390, %v3582
  %v3584 = vpop.f32.mrb[0].mxu0
  %v3585 = vadd.f32 %v3392, %v3584
  %v3586 = vpop.f32.mrb[0].mxu0
  %v3587 = vadd.f32 %v3394, %v3586
  %3588 = vmatprep.mubr.bf16.mxu0 %v3054
  %3589 = vmatmul.mubr.bf16.gmra.mrb[0].mxu0 %v3053
  %v3590 = vpop.f32.mrb[0].mxu0
  %v3591 = vadd.f32 %v3398, %v3590
  %v3592 = vpop.f32.mrb[0].mxu0
  %v3593 = vadd.f32 %v3400, %v3592
  %v3594 = vpop.f32.mrb[0].mxu0
  %v3595 = vadd.f32 %v3402, %v3594
  %v3596 = vpop.f32.mrb[0].mxu0
  %v3597 = vadd.f32 %v3404, %v3596
  %3598 = vmatprep.mubr.bf16.mxu0 %v3062
  %3599 = vmatmul.mubr.bf16.gmra.mrb[0].mxu0 %v3061
  %v3600 = vpop.f32.mrb[0].mxu0
  %v3601 = vadd.f32 %v3408, %v3600
  %v3602 = vpop.f32.mrb[0].mxu0
  %v3603 = vadd.f32 %v3410, %v3602
  %v3604 = vpop.f32.mrb[0].mxu0
  %v3605 = vadd.f32 %v3412, %v3604
  %v3606 = vpop.f32.mrb[0].mxu0
  %v3607 = vadd.f32 %v3414, %v3606
  %3608 = vmatprep.mubr.bf16.mxu0 %v3070
  %3609 = vmatmul.mubr.bf16.gmra.mrb[0].mxu0 %v3069
  %v3610 = vpop.f32.mrb[0].mxu0
  %v3611 = vadd.f32 %v3418, %v3610
  %v3612 = vpop.f32.mrb[0].mxu0
  %v3613 = vadd.f32 %v3420, %v3612
  %v3614 = vpop.f32.mrb[0].mxu0
  %v3615 = vadd.f32 %v3422, %v3614
  %v3616 = vpop.f32.mrb[0].mxu0
  %v3617 = vadd.f32 %v3424, %v3616
  %3618 = vmatprep.mubr.bf16.mxu0 %v3078
  %3619 = vmatmul.mubr.bf16.gmra.mrb[0].mxu0 %v3077
  %v3620 = vpop.f32.mrb[0].mxu0
  %v3621 = vadd.f32 %v3428, %v3620
  %v3622 = vpop.f32.mrb[0].mxu0
  %v3623 = vadd.f32 %v3430, %v3622
  %v3624 = vpop.f32.mrb[0].mxu0
  %v3625 = vadd.f32 %v3432, %v3624
  %v3626 = vpop.f32.mrb[0].mxu0
  %v3627 = vadd.f32 %v3434, %v3626
  %3628 = vdwg.mxu0
  %3629 = vmatprep.subr.bf16.mxu0 %v1364
  %3630 = vmatpush1.bf16.msra.mxu0 %v1363
  %3631 = vmatprep.subr.bf16.mxu0 %v1366
  %3632 = vmatpush1.bf16.msra.mxu0 %v1365
  %3633 = vmatprep.subr.bf16.mxu0 %v1368
  %3634 = vmatpush1.bf16.msra.mxu0 %v1367
  %3635 = vmatprep.subr.bf16.mxu0 %v1370
  %3636 = vmatpush1.bf16.msra.mxu0 %v1369
  %3637 = vmatprep.subr.bf16.mxu0 %v1372
  %3638 = vmatpush1.bf16.msra.mxu0 %v1371
  %3639 = vmatprep.subr.bf16.mxu0 %v1374
  %3640 = vmatpush1.bf16.msra.mxu0 %v1373
  %3641 = vmatprep.subr.bf16.mxu0 %v1376
  %3642 = vmatpush1.bf16.msra.mxu0 %v1375
  %3643 = vmatprep.subr.bf16.mxu0 %v1378
  %3644 = vmatpush1.bf16.msra.mxu0 %v1377
  %3645 = vmatprep.subr.bf16.mxu0 %v1380
  %3646 = vmatpush1.bf16.msra.mxu0 %v1379
  %3647 = vmatprep.subr.bf16.mxu0 %v1382
  %3648 = vmatpush1.bf16.msra.mxu0 %v1381
  %3649 = vmatprep.subr.bf16.mxu0 %v1384
  %3650 = vmatpush1.bf16.msra.mxu0 %v1383
  %3651 = vmatprep.subr.bf16.mxu0 %v1386
  %3652 = vmatpush1.bf16.msra.mxu0 %v1385
  %3653 = vmatprep.subr.bf16.mxu0 %v1388
  %3654 = vmatpush1.bf16.msra.mxu0 %v1387
  %3655 = vmatprep.subr.bf16.mxu0 %v1390
  %3656 = vmatpush1.bf16.msra.mxu0 %v1389
  %3657 = vmatprep.subr.bf16.mxu0 %v1392
  %3658 = vmatpush1.bf16.msra.mxu0 %v1391
  %3659 = vmatprep.subr.bf16.mxu0 %v1394
  %3660 = vmatpush1.bf16.msra.mxu0 %v1393
  %3661 = vmatprep.mubr.bf16.mxu0 %v2960
  %3662 = vmatmul.mubr.bf16.gmra.mrb[0].mxu0 %v2959
  %v3663 = vpop.f32.mrb[0].mxu0
  %v3664 = vadd.f32 %v3471, %v3663
  %v3665 = vpop.f32.mrb[0].mxu0
  %v3666 = vadd.f32 %v3473, %v3665
  %v3667 = vpop.f32.mrb[0].mxu0
  %v3668 = vadd.f32 %v3475, %v3667
  %v3669 = vpop.f32.mrb[0].mxu0
  %v3670 = vadd.f32 %v3477, %v3669
  %3671 = vmatprep.mubr.bf16.mxu0 %v2968
  %3672 = vmatmul.mubr.bf16.gmra.mrb[0].mxu0 %v2967
  %v3673 = vpop.f32.mrb[0].mxu0
  %v3674 = vadd.f32 %v3481, %v3673
  %v3675 = vpop.f32.mrb[0].mxu0
  %v3676 = vadd.f32 %v3483, %v3675
  %v3677 = vpop.f32.mrb[0].mxu0
  %v3678 = vadd.f32 %v3485, %v3677
  %v3679 = vpop.f32.mrb[0].mxu0
  %v3680 = vadd.f32 %v3487, %v3679
  %3681 = vmatprep.mubr.bf16.mxu0 %v2976
  %3682 = vmatmul.mubr.bf16.gmra.mrb[0].mxu0 %v2975
  %v3683 = vpop.f32.mrb[0].mxu0
  %v3684 = vadd.f32 %v3491, %v3683
  %v3685 = vpop.f32.mrb[0].mxu0
  %v3686 = vadd.f32 %v3493, %v3685
  %v3687 = vpop.f32.mrb[0].mxu0
  %v3688 = vadd.f32 %v3495, %v3687
  %v3689 = vpop.f32.mrb[0].mxu0
  %v3690 = vadd.f32 %v3497, %v3689
  %3691 = vmatprep.mubr.bf16.mxu0 %v2984
  %3692 = vmatmul.mubr.bf16.gmra.mrb[0].mxu0 %v2983
  %v3693 = vpop.f32.mrb[0].mxu0
  %v3694 = vadd.f32 %v3501, %v3693
  %v3695 = vpop.f32.mrb[0].mxu0
  %v3696 = vadd.f32 %v3503, %v3695
  %v3697 = vpop.f32.mrb[0].mxu0
  %v3698 = vadd.f32 %v3505, %v3697
  %v3699 = vpop.f32.mrb[0].mxu0
  %v3700 = vadd.f32 %v3507, %v3699
  %3701 = vmatprep.mubr.bf16.mxu0 %v2992
  %3702 = vmatmul.mubr.bf16.gmra.mrb[0].mxu0 %v2991
  %v3703 = vpop.f32.mrb[0].mxu0
  %v3704 = vadd.f32 %v3511, %v3703
  %v3705 = vpop.f32.mrb[0].mxu0
  %v3706 = vadd.f32 %v3513, %v3705
  %v3707 = vpop.f32.mrb[0].mxu0
  %v3708 = vadd.f32 %v3515, %v3707
  %v3709 = vpop.f32.mrb[0].mxu0
  %v3710 = vadd.f32 %v3517, %v3709
  %3711 = vmatprep.mubr.bf16.mxu0 %v3000
  %3712 = vmatmul.mubr.bf16.gmra.mrb[0].mxu0 %v2999
  %v3713 = vpop.f32.mrb[0].mxu0
  %v3714 = vadd.f32 %v3521, %v3713
  %v3715 = vpop.f32.mrb[0].mxu0
  %v3716 = vadd.f32 %v3523, %v3715
  %v3717 = vpop.f32.mrb[0].mxu0
  %v3718 = vadd.f32 %v3525, %v3717
  %v3719 = vpop.f32.mrb[0].mxu0
  %v3720 = vadd.f32 %v3527, %v3719
  %3721 = vmatprep.mubr.bf16.mxu0 %v3008
  %3722 = vmatmul.mubr.bf16.gmra.mrb[0].mxu0 %v3007
  %v3723 = vpop.f32.mrb[0].mxu0
  %v3724 = vadd.f32 %v3531, %v3723
  %v3725 = vpop.f32.mrb[0].mxu0
  %v3726 = vadd.f32 %v3533, %v3725
  %v3727 = vpop.f32.mrb[0].mxu0
  %v3728 = vadd.f32 %v3535, %v3727
  %v3729 = vpop.f32.mrb[0].mxu0
  %v3730 = vadd.f32 %v3537, %v3729
  %3731 = vmatprep.mubr.bf16.mxu0 %v3016
  %3732 = vmatmul.mubr.bf16.gmra.mrb[0].mxu0 %v3015
  %v3733 = vpop.f32.mrb[0].mxu0
  %v3734 = vadd.f32 %v3541, %v3733
  %v3735 = vpop.f32.mrb[0].mxu0
  %v3736 = vadd.f32 %v3543, %v3735
  %v3737 = vpop.f32.mrb[0].mxu0
  %v3738 = vadd.f32 %v3545, %v3737
  %v3739 = vpop.f32.mrb[0].mxu0
  %v3740 = vadd.f32 %v3547, %v3739
  %3741 = vmatprep.mubr.bf16.mxu0 %v3024
  %3742 = vmatmul.mubr.bf16.gmra.mrb[0].mxu0 %v3023
  %v3743 = vpop.f32.mrb[0].mxu0
  %v3744 = vadd.f32 %v3551, %v3743
  %v3745 = vpop.f32.mrb[0].mxu0
  %v3746 = vadd.f32 %v3553, %v3745
  %v3747 = vpop.f32.mrb[0].mxu0
  %v3748 = vadd.f32 %v3555, %v3747
  %v3749 = vpop.f32.mrb[0].mxu0
  %v3750 = vadd.f32 %v3557, %v3749
  %3751 = vmatprep.mubr.bf16.mxu0 %v3032
  %3752 = vmatmul.mubr.bf16.gmra.mrb[0].mxu0 %v3031
  %v3753 = vpop.f32.mrb[0].mxu0
  %v3754 = vadd.f32 %v3561, %v3753
  %v3755 = vpop.f32.mrb[0].mxu0
  %v3756 = vadd.f32 %v3563, %v3755
  %v3757 = vpop.f32.mrb[0].mxu0
  %v3758 = vadd.f32 %v3565, %v3757
  %v3759 = vpop.f32.mrb[0].mxu0
  %v3760 = vadd.f32 %v3567, %v3759
  %3761 = vmatprep.mubr.bf16.mxu0 %v3040
  %3762 = vmatmul.mubr.bf16.gmra.mrb[0].mxu0 %v3039
  %v3763 = vpop.f32.mrb[0].mxu0
  %v3764 = vadd.f32 %v3571, %v3763
  %v3765 = vpop.f32.mrb[0].mxu0
  %v3766 = vadd.f32 %v3573, %v3765
  %v3767 = vpop.f32.mrb[0].mxu0
  %v3768 = vadd.f32 %v3575, %v3767
  %v3769 = vpop.f32.mrb[0].mxu0
  %v3770 = vadd.f32 %v3577, %v3769
  %3771 = vmatprep.mubr.bf16.mxu0 %v3048
  %3772 = vmatmul.mubr.bf16.gmra.mrb[0].mxu0 %v3047
  %v3773 = vpop.f32.mrb[0].mxu0
  %v3774 = vadd.f32 %v3581, %v3773
  %v3775 = vpop.f32.mrb[0].mxu0
  %v3776 = vadd.f32 %v3583, %v3775
  %v3777 = vpop.f32.mrb[0].mxu0
  %v3778 = vadd.f32 %v3585, %v3777
  %v3779 = vpop.f32.mrb[0].mxu0
  %v3780 = vadd.f32 %v3587, %v3779
  %3781 = vmatprep.mubr.bf16.mxu0 %v3056
  %3782 = vmatmul.mubr.bf16.gmra.mrb[0].mxu0 %v3055
  %v3783 = vpop.f32.mrb[0].mxu0
  %v3784 = vadd.f32 %v3591, %v3783
  %v3785 = vpop.f32.mrb[0].mxu0
  %v3786 = vadd.f32 %v3593, %v3785
  %v3787 = vpop.f32.mrb[0].mxu0
  %v3788 = vadd.f32 %v3595, %v3787
  %v3789 = vpop.f32.mrb[0].mxu0
  %v3790 = vadd.f32 %v3597, %v3789
  %3791 = vmatprep.mubr.bf16.mxu0 %v3064
  %3792 = vmatmul.mubr.bf16.gmra.mrb[0].mxu0 %v3063
  %v3793 = vpop.f32.mrb[0].mxu0
  %v3794 = vadd.f32 %v3601, %v3793
  %v3795 = vpop.f32.mrb[0].mxu0
  %v3796 = vadd.f32 %v3603, %v3795
  %v3797 = vpop.f32.mrb[0].mxu0
  %v3798 = vadd.f32 %v3605, %v3797
  %v3799 = vpop.f32.mrb[0].mxu0
  %v3800 = vadd.f32 %v3607, %v3799
  %3801 = vmatprep.mubr.bf16.mxu0 %v3072
  %3802 = vmatmul.mubr.bf16.gmra.mrb[0].mxu0 %v3071
  %v3803 = vpop.f32.mrb[0].mxu0
  %v3804 = vadd.f32 %v3611, %v3803
  %v3805 = vpop.f32.mrb[0].mxu0
  %v3806 = vadd.f32 %v3613, %v3805
  %v3807 = vpop.f32.mrb[0].mxu0
  %v3808 = vadd.f32 %v3615, %v3807
  %v3809 = vpop.f32.mrb[0].mxu0
  %v3810 = vadd.f32 %v3617, %v3809
  %3811 = vmatprep.mubr.bf16.mxu0 %v3080
  %3812 = vmatmul.mubr.bf16.gmra.mrb[0].mxu0 %v3079
  %v3813 = vpop.f32.mrb[0].mxu0
  %v3814 = vadd.f32 %v3621, %v3813
  %v3815 = vpop.f32.mrb[0].mxu0
  %v3816 = vadd.f32 %v3623, %v3815
  %v3817 = vpop.f32.mrb[0].mxu0
  %v3818 = vadd.f32 %v3625, %v3817
  %v3819 = vpop.f32.mrb[0].mxu0
  %v3820 = vadd.f32 %v3627, %v3819
  %3821 = vdwg.mxu0
  %3822 = vmatprep.subr.bf16.mxu0 %v1396
  %3823 = vmatpush1.bf16.msra.mxu0 %v1395
  %3824 = vmatprep.subr.bf16.mxu0 %v1398
  %3825 = vmatpush1.bf16.msra.mxu0 %v1397
  %3826 = vmatprep.subr.bf16.mxu0 %v1400
  %3827 = vmatpush1.bf16.msra.mxu0 %v1399
  %3828 = vmatprep.subr.bf16.mxu0 %v1402
  %3829 = vmatpush1.bf16.msra.mxu0 %v1401
  %3830 = vmatprep.subr.bf16.mxu0 %v1404
  %3831 = vmatpush1.bf16.msra.mxu0 %v1403
  %3832 = vmatprep.subr.bf16.mxu0 %v1406
  %3833 = vmatpush1.bf16.msra.mxu0 %v1405
  %3834 = vmatprep.subr.bf16.mxu0 %v1408
  %3835 = vmatpush1.bf16.msra.mxu0 %v1407
  %3836 = vmatprep.subr.bf16.mxu0 %v1410
  %3837 = vmatpush1.bf16.msra.mxu0 %v1409
  %3838 = vmatprep.subr.bf16.mxu0 %v1412
  %3839 = vmatpush1.bf16.msra.mxu0 %v1411
  %3840 = vmatprep.subr.bf16.mxu0 %v1414
  %3841 = vmatpush1.bf16.msra.mxu0 %v1413
  %3842 = vmatprep.subr.bf16.mxu0 %v1416
  %3843 = vmatpush1.bf16.msra.mxu0 %v1415
  %3844 = vmatprep.subr.bf16.mxu0 %v1418
  %3845 = vmatpush1.bf16.msra.mxu0 %v1417
  %3846 = vmatprep.subr.bf16.mxu0 %v1420
  %3847 = vmatpush1.bf16.msra.mxu0 %v1419
  %3848 = vmatprep.subr.bf16.mxu0 %v1422
  %3849 = vmatpush1.bf16.msra.mxu0 %v1421
  %3850 = vmatprep.subr.bf16.mxu0 %v1603
  %3851 = vmatpush1.bf16.msra.mxu0 %v1600
  %3852 = vmatprep.subr.bf16.mxu0 0
  %3853 = vmatpush1.bf16.msra.mxu0 0
  %3854 = vmatprep.mubr.bf16.mxu0 %v3196
  %3855 = vmatmul.mubr.bf16.gmra.mrb[0].mxu0 %v2961
  %v3856 = vpop.f32.mrb[0].mxu0
  %v3857 = vadd.f32 %v3664, %v3856
  %v3858 = vpop.f32.mrb[0].mxu0
  %v3859 = vadd.f32 %v3666, %v3858
  %v3860 = vpop.f32.mrb[0].mxu0
  %v3861 = vadd.f32 %v3668, %v3860
  %v3862 = vpop.f32.mrb[0].mxu0
  %v3863 = vadd.f32 %v3670, %v3862
  %3864 = vmatprep.mubr.bf16.mxu0 %v3199
  %3865 = vmatmul.mubr.bf16.gmra.mrb[0].mxu0 %v2969
  %v3866 = vpop.f32.mrb[0].mxu0
  %v3867 = vadd.f32 %v3674, %v3866
  %v3868 = vpop.f32.mrb[0].mxu0
  %v3869 = vadd.f32 %v3676, %v3868
  %v3870 = vpop.f32.mrb[0].mxu0
  %v3871 = vadd.f32 %v3678, %v3870
  %v3872 = vpop.f32.mrb[0].mxu0
  %v3873 = vadd.f32 %v3680, %v3872
  %3874 = vmatprep.mubr.bf16.mxu0 %v3202
  %3875 = vmatmul.mubr.bf16.gmra.mrb[0].mxu0 %v2977
  %v3876 = vpop.f32.mrb[0].mxu0
  %v3877 = vadd.f32 %v3684, %v3876
  %v3878 = vpop.f32.mrb[0].mxu0
  %v3879 = vadd.f32 %v3686, %v3878
  %v3880 = vpop.f32.mrb[0].mxu0
  %v3881 = vadd.f32 %v3688, %v3880
  %v3882 = vpop.f32.mrb[0].mxu0
  %v3883 = vadd.f32 %v3690, %v3882
  %3884 = vmatprep.mubr.bf16.mxu0 %v3205
  %3885 = vmatmul.mubr.bf16.gmra.mrb[0].mxu0 %v2985
  %v3886 = vpop.f32.mrb[0].mxu0
  %v3887 = vadd.f32 %v3694, %v3886
  %v3888 = vpop.f32.mrb[0].mxu0
  %v3889 = vadd.f32 %v3696, %v3888
  %v3890 = vpop.f32.mrb[0].mxu0
  %v3891 = vadd.f32 %v3698, %v3890
  %v3892 = vpop.f32.mrb[0].mxu0
  %v3893 = vadd.f32 %v3700, %v3892
  %3894 = vmatprep.mubr.bf16.mxu0 %v3208
  %3895 = vmatmul.mubr.bf16.gmra.mrb[0].mxu0 %v2993
  %v3896 = vpop.f32.mrb[0].mxu0
  %v3897 = vadd.f32 %v3704, %v3896
  %v3898 = vpop.f32.mrb[0].mxu0
  %v3899 = vadd.f32 %v3706, %v3898
  %v3900 = vpop.f32.mrb[0].mxu0
  %v3901 = vadd.f32 %v3708, %v3900
  %v3902 = vpop.f32.mrb[0].mxu0
  %v3903 = vadd.f32 %v3710, %v3902
  %3904 = vmatprep.mubr.bf16.mxu0 %v3211
  %3905 = vmatmul.mubr.bf16.gmra.mrb[0].mxu0 %v3001
  %v3906 = vpop.f32.mrb[0].mxu0
  %v3907 = vadd.f32 %v3714, %v3906
  %v3908 = vpop.f32.mrb[0].mxu0
  %v3909 = vadd.f32 %v3716, %v3908
  %v3910 = vpop.f32.mrb[0].mxu0
  %v3911 = vadd.f32 %v3718, %v3910
  %v3912 = vpop.f32.mrb[0].mxu0
  %v3913 = vadd.f32 %v3720, %v3912
  %3914 = vmatprep.mubr.bf16.mxu0 %v3214
  %3915 = vmatmul.mubr.bf16.gmra.mrb[0].mxu0 %v3009
  %v3916 = vpop.f32.mrb[0].mxu0
  %v3917 = vadd.f32 %v3724, %v3916
  %v3918 = vpop.f32.mrb[0].mxu0
  %v3919 = vadd.f32 %v3726, %v3918
  %v3920 = vpop.f32.mrb[0].mxu0
  %v3921 = vadd.f32 %v3728, %v3920
  %v3922 = vpop.f32.mrb[0].mxu0
  %v3923 = vadd.f32 %v3730, %v3922
  %3924 = vmatprep.mubr.bf16.mxu0 %v3217
  %3925 = vmatmul.mubr.bf16.gmra.mrb[0].mxu0 %v3017
  %v3926 = vpop.f32.mrb[0].mxu0
  %v3927 = vadd.f32 %v3734, %v3926
  %v3928 = vpop.f32.mrb[0].mxu0
  %v3929 = vadd.f32 %v3736, %v3928
  %v3930 = vpop.f32.mrb[0].mxu0
  %v3931 = vadd.f32 %v3738, %v3930
  %v3932 = vpop.f32.mrb[0].mxu0
  %v3933 = vadd.f32 %v3740, %v3932
  %3934 = vmatprep.mubr.bf16.mxu0 %v3220
  %3935 = vmatmul.mubr.bf16.gmra.mrb[0].mxu0 %v3025
  %v3936 = vpop.f32.mrb[0].mxu0
  %v3937 = vadd.f32 %v3744, %v3936
  %v3938 = vpop.f32.mrb[0].mxu0
  %v3939 = vadd.f32 %v3746, %v3938
  %v3940 = vpop.f32.mrb[0].mxu0
  %v3941 = vadd.f32 %v3748, %v3940
  %v3942 = vpop.f32.mrb[0].mxu0
  %v3943 = vadd.f32 %v3750, %v3942
  %3944 = vmatprep.mubr.bf16.mxu0 %v3223
  %3945 = vmatmul.mubr.bf16.gmra.mrb[0].mxu0 %v3033
  %v3946 = vpop.f32.mrb[0].mxu0
  %v3947 = vadd.f32 %v3754, %v3946
  %v3948 = vpop.f32.mrb[0].mxu0
  %v3949 = vadd.f32 %v3756, %v3948
  %v3950 = vpop.f32.mrb[0].mxu0
  %v3951 = vadd.f32 %v3758, %v3950
  %v3952 = vpop.f32.mrb[0].mxu0
  %v3953 = vadd.f32 %v3760, %v3952
  %3954 = vmatprep.mubr.bf16.mxu0 %v3226
  %3955 = vmatmul.mubr.bf16.gmra.mrb[0].mxu0 %v3041
  %v3956 = vpop.f32.mrb[0].mxu0
  %v3957 = vadd.f32 %v3764, %v3956
  %v3958 = vpop.f32.mrb[0].mxu0
  %v3959 = vadd.f32 %v3766, %v3958
  %v3960 = vpop.f32.mrb[0].mxu0
  %v3961 = vadd.f32 %v3768, %v3960
  %v3962 = vpop.f32.mrb[0].mxu0
  %v3963 = vadd.f32 %v3770, %v3962
  %3964 = vmatprep.mubr.bf16.mxu0 %v3229
  %3965 = vmatmul.mubr.bf16.gmra.mrb[0].mxu0 %v3049
  %v3966 = vpop.f32.mrb[0].mxu0
  %v3967 = vadd.f32 %v3774, %v3966
  %v3968 = vpop.f32.mrb[0].mxu0
  %v3969 = vadd.f32 %v3776, %v3968
  %v3970 = vpop.f32.mrb[0].mxu0
  %v3971 = vadd.f32 %v3778, %v3970
  %v3972 = vpop.f32.mrb[0].mxu0
  %v3973 = vadd.f32 %v3780, %v3972
  %3974 = vmatprep.mubr.bf16.mxu0 %v3232
  %3975 = vmatmul.mubr.bf16.gmra.mrb[0].mxu0 %v3057
  %v3976 = vpop.f32.mrb[0].mxu0
  %v3977 = vadd.f32 %v3784, %v3976
  %v3978 = vpop.f32.mrb[0].mxu0
  %v3979 = vadd.f32 %v3786, %v3978
  %v3980 = vpop.f32.mrb[0].mxu0
  %v3981 = vadd.f32 %v3788, %v3980
  %v3982 = vpop.f32.mrb[0].mxu0
  %v3983 = vadd.f32 %v3790, %v3982
  %3984 = vmatprep.mubr.bf16.mxu0 %v3235
  %3985 = vmatmul.mubr.bf16.gmra.mrb[0].mxu0 %v3065
  %v3986 = vpop.f32.mrb[0].mxu0
  %v3987 = vadd.f32 %v3794, %v3986
  %v3988 = vpop.f32.mrb[0].mxu0
  %v3989 = vadd.f32 %v3796, %v3988
  %v3990 = vpop.f32.mrb[0].mxu0
  %v3991 = vadd.f32 %v3798, %v3990
  %v3992 = vpop.f32.mrb[0].mxu0
  %v3993 = vadd.f32 %v3800, %v3992
  %3994 = vmatprep.mubr.bf16.mxu0 %v3238
  %3995 = vmatmul.mubr.bf16.gmra.mrb[0].mxu0 %v3073
  %v3996 = vpop.f32.mrb[0].mxu0
  %v3997 = vadd.f32 %v3804, %v3996
  %v3998 = vpop.f32.mrb[0].mxu0
  %v3999 = vadd.f32 %v3806, %v3998
  %v4000 = vpop.f32.mrb[0].mxu0
  %v4001 = vadd.f32 %v3808, %v4000
  %v4002 = vpop.f32.mrb[0].mxu0
  %v4003 = vadd.f32 %v3810, %v4002
  %4004 = vmatprep.mubr.bf16.mxu0 %v3241
  %4005 = vmatmul.mubr.bf16.gmra.mrb[0].mxu0 %v3081
  %v4006 = vpop.f32.mrb[0].mxu0
  %v4007 = vadd.f32 %v3814, %v4006
  %v4008 = vpop.f32.mrb[0].mxu0
  %v4009 = vadd.f32 %v3816, %v4008
  %v4010 = vpop.f32.mrb[0].mxu0
  %v4011 = vadd.f32 %v3818, %v4010
  %v4012 = vpop.f32.mrb[0].mxu0
  %v4013 = vadd.f32 %v3820, %v4012
  %4014 = vdwg.mxu0
  %s4015 = scalar_lea.vmem [#allocation2], 512
  %4016 = vst [vmem:[%s4015] sm:$0xff] %v3857
  %4017 = vst.msk [vmem:[%s4015 + $0x8] sm:$0xff] %vm2378, %v3859
  %4018 = vst [vmem:[%s4015 + $0x10] sm:$0xff] %v3861
  %4019 = vst.msk [vmem:[%s4015 + $0x18] sm:$0xff] %vm2378, %v3863
  %4020 = vst [vmem:[%s4015 + $0x20] sm:$0xff] %v3867
  %4021 = vst.msk [vmem:[%s4015 + $0x28] sm:$0xff] %vm2378, %v3869
  %4022 = vst [vmem:[%s4015 + $0x30] sm:$0xff] %v3871
  %4023 = vst.msk [vmem:[%s4015 + $0x38] sm:$0xff] %vm2378, %v3873
  %4024 = vst [vmem:[%s4015 + $0x40] sm:$0xff] %v3877
  %4025 = vst.msk [vmem:[%s4015 + $0x48] sm:$0xff] %vm2378, %v3879
  %4026 = vst [vmem:[%s4015 + $0x50] sm:$0xff] %v3881
  %4027 = vst.msk [vmem:[%s4015 + $0x58] sm:$0xff] %vm2378, %v3883
  %4028 = vst [vmem:[%s4015 + $0x60] sm:$0xff] %v3887
  %4029 = vst.msk [vmem:[%s4015 + $0x68] sm:$0xff] %vm2378, %v3889
  %4030 = vst [vmem:[%s4015 + $0x70] sm:$0xff] %v3891
  %4031 = vst.msk [vmem:[%s4015 + $0x78] sm:$0xff] %vm2378, %v3893
  %4032 = vst [vmem:[%s4015 + $0x80] sm:$0xff] %v3897
  %4033 = vst.msk [vmem:[%s4015 + $0x88] sm:$0xff] %vm2378, %v3899
  %4034 = vst [vmem:[%s4015 + $0x90] sm:$0xff] %v3901
  %4035 = vst.msk [vmem:[%s4015 + $0x98] sm:$0xff] %vm2378, %v3903
  %4036 = vst [vmem:[%s4015 + $0xa0] sm:$0xff] %v3907
  %4037 = vst.msk [vmem:[%s4015 + $0xa8] sm:$0xff] %vm2378, %v3909
  %4038 = vst [vmem:[%s4015 + $0xb0] sm:$0xff] %v3911
  %4039 = vst.msk [vmem:[%s4015 + $0xb8] sm:$0xff] %vm2378, %v3913
  %4040 = vst [vmem:[%s4015 + $0xc0] sm:$0xff] %v3917
  %4041 = vst.msk [vmem:[%s4015 + $0xc8] sm:$0xff] %vm2378, %v3919
  %4042 = vst [vmem:[%s4015 + $0xd0] sm:$0xff] %v3921
  %4043 = vst.msk [vmem:[%s4015 + $0xd8] sm:$0xff] %vm2378, %v3923
  %4044 = vst [vmem:[%s4015 + $0xe0] sm:$0xff] %v3927
  %4045 = vst.msk [vmem:[%s4015 + $0xe8] sm:$0xff] %vm2378, %v3929
  %4046 = vst [vmem:[%s4015 + $0xf0] sm:$0xff] %v3931
  %4047 = vst.msk [vmem:[%s4015 + $0xf8] sm:$0xff] %vm2378, %v3933
  %4048 = vst [vmem:[%s4015 + $0x100] sm:$0xff] %v3937
  %4049 = vst.msk [vmem:[%s4015 + $0x108] sm:$0xff] %vm2378, %v3939
  %4050 = vst [vmem:[%s4015 + $0x110] sm:$0xff] %v3941
  %4051 = vst.msk [vmem:[%s4015 + $0x118] sm:$0xff] %vm2378, %v3943
  %4052 = vst [vmem:[%s4015 + $0x120] sm:$0xff] %v3947
  %4053 = vst.msk [vmem:[%s4015 + $0x128] sm:$0xff] %vm2378, %v3949
  %4054 = vst [vmem:[%s4015 + $0x130] sm:$0xff] %v3951
  %4055 = vst.msk [vmem:[%s4015 + $0x138] sm:$0xff] %vm2378, %v3953
  %4056 = vst [vmem:[%s4015 + $0x140] sm:$0xff] %v3957
  %4057 = vst.msk [vmem:[%s4015 + $0x148] sm:$0xff] %vm2378, %v3959
  %4058 = vst [vmem:[%s4015 + $0x150] sm:$0xff] %v3961
  %4059 = vst.msk [vmem:[%s4015 + $0x158] sm:$0xff] %vm2378, %v3963
  %4060 = vst [vmem:[%s4015 + $0x160] sm:$0xff] %v3967
  %4061 = vst.msk [vmem:[%s4015 + $0x168] sm:$0xff] %vm2378, %v3969
  %4062 = vst [vmem:[%s4015 + $0x170] sm:$0xff] %v3971
  %4063 = vst.msk [vmem:[%s4015 + $0x178] sm:$0xff] %vm2378, %v3973
  %4064 = vst [vmem:[%s4015 + $0x180] sm:$0xff] %v3977
  %4065 = vst.msk [vmem:[%s4015 + $0x188] sm:$0xff] %vm2378, %v3979
  %4066 = vst [vmem:[%s4015 + $0x190] sm:$0xff] %v3981
  %4067 = vst.msk [vmem:[%s4015 + $0x198] sm:$0xff] %vm2378, %v3983
  %4068 = vst [vmem:[%s4015 + $0x1a0] sm:$0xff] %v3987
  %4069 = vst.msk [vmem:[%s4015 + $0x1a8] sm:$0xff] %vm2378, %v3989
  %4070 = vst [vmem:[%s4015 + $0x1b0] sm:$0xff] %v3991
  %4071 = vst.msk [vmem:[%s4015 + $0x1b8] sm:$0xff] %vm2378, %v3993
  %4072 = vst [vmem:[%s4015 + $0x1c0] sm:$0xff] %v3997
  %4073 = vst.msk [vmem:[%s4015 + $0x1c8] sm:$0xff] %vm2378, %v3999
  %4074 = vst [vmem:[%s4015 + $0x1d0] sm:$0xff] %v4001
  %4075 = vst.msk [vmem:[%s4015 + $0x1d8] sm:$0xff] %vm2378, %v4003
  %4076 = vst [vmem:[%s4015 + $0x1e0] sm:$0xff] %v4007
  %4077 = vst.msk [vmem:[%s4015 + $0x1e8] sm:$0xff] %vm2378, %v4009
  %4078 = vst [vmem:[%s4015 + $0x1f0] sm:$0xff] %v4011
  %4079 = vst.msk [vmem:[%s4015 + $0x1f8] sm:$0xff] %vm2378, %v4013
  %v4080 = vld [vmem:[#allocation2] sm:$0xff]
  %v4081 = vld [vmem:[#allocation2 + $0x8] sm:$0xff]
  %v4082 = vld [vmem:[#allocation2 + $0x10] sm:$0xff]
  %v4083 = vld [vmem:[#allocation2 + $0x18] sm:$0xff]
  %v4084 = vld [vmem:[#allocation2 + $0x20] sm:$0xff]
  %v4085 = vld [vmem:[#allocation2 + $0x28] sm:$0xff]
  %v4086 = vld [vmem:[#allocation2 + $0x30] sm:$0xff]
  %v4087 = vld [vmem:[#allocation2 + $0x38] sm:$0xff]
  %v4088 = vld [vmem:[#allocation2 + $0x40] sm:$0xff]
  %v4089 = vld [vmem:[#allocation2 + $0x48] sm:$0xff]
  %v4090 = vld [vmem:[#allocation2 + $0x50] sm:$0xff]
  %v4091 = vld [vmem:[#allocation2 + $0x58] sm:$0xff]
  %v4092 = vld [vmem:[#allocation2 + $0x60] sm:$0xff]
  %v4093 = vld [vmem:[#allocation2 + $0x68] sm:$0xff]
  %v4094 = vld [vmem:[#allocation2 + $0x70] sm:$0xff]
  %v4095 = vld [vmem:[#allocation2 + $0x78] sm:$0xff]
  %4104 = vrot.lane.b32.xlu0 %v4088, 127
  %v4105 = vpop.permute.xlu0 %4104
  %4106 = vrot.lane.b32.xlu0 %v4089, 127
  %v4107 = vpop.permute.xlu0 %4106
  %4108 = vrot.lane.b32.xlu0 %v4090, 127
  %v4109 = vpop.permute.xlu0 %4108
  %4110 = vrot.lane.b32.xlu0 %v4091, 127
  %v4111 = vpop.permute.xlu0 %4110
  %4112 = vrot.lane.b32.xlu0 %v4092, 127
  %v4113 = vpop.permute.xlu0 %4112
  %4114 = vrot.lane.b32.xlu0 %v4093, 127
  %v4115 = vpop.permute.xlu0 %4114
  %4116 = vrot.lane.b32.xlu0 %v4094, 127
  %v4117 = vpop.permute.xlu0 %4116
  %4118 = vrot.lane.b32.xlu0 %v4095, 127
  %v4119 = vpop.permute.xlu0 %4118
  %vm4120 = vcmask 1039360
  %v4121 = vsel %vm4120, %v4105, %v4107
  %v4122 = vsel %vm4120, %v4109, %v4111
  %v4123 = vsel %vm4120, %v4113, %v4115
  %v4124 = vsel %vm4120, %v4117, %v4119
  %v4133 = vadd.f32 %v4080, %v4121
  %v4134 = vadd.f32 %v4081, %v4107
  %v4135 = vadd.f32 %v4082, %v4122
  %v4136 = vadd.f32 %v4083, %v4111
  %v4137 = vadd.f32 %v4084, %v4123
  %v4138 = vadd.f32 %v4085, %v4115
  %v4139 = vadd.f32 %v4086, %v4124
  %v4140 = vadd.f32 %v4087, %v4119
  %v4141 = vld [vmem:[#allocation2 + $0x80] sm:$0xff]
  %v4142 = vld [vmem:[#allocation2 + $0x88] sm:$0xff]
  %v4143 = vld [vmem:[#allocation2 + $0x90] sm:$0xff]
  %v4144 = vld [vmem:[#allocation2 + $0x98] sm:$0xff]
  %v4145 = vld [vmem:[#allocation2 + $0xa0] sm:$0xff]
  %v4146 = vld [vmem:[#allocation2 + $0xa8] sm:$0xff]
  %v4147 = vld [vmem:[#allocation2 + $0xb0] sm:$0xff]
  %v4148 = vld [vmem:[#allocation2 + $0xb8] sm:$0xff]
  %4157 = vrot.lane.b32.xlu0 %v4141, 126
  %v4158 = vpop.permute.xlu0 %4157
  %4159 = vrot.lane.b32.xlu0 %v4142, 126
  %v4160 = vpop.permute.xlu0 %4159
  %4161 = vrot.lane.b32.xlu0 %v4143, 126
  %v4162 = vpop.permute.xlu0 %4161
  %4163 = vrot.lane.b32.xlu0 %v4144, 126
  %v4164 = vpop.permute.xlu0 %4163
  %4165 = vrot.lane.b32.xlu0 %v4145, 126
  %v4166 = vpop.permute.xlu0 %4165
  %4167 = vrot.lane.b32.xlu0 %v4146, 126
  %v4168 = vpop.permute.xlu0 %4167
  %4169 = vrot.lane.b32.xlu0 %v4147, 126
  %v4170 = vpop.permute.xlu0 %4169
  %4171 = vrot.lane.b32.xlu0 %v4148, 126
  %v4172 = vpop.permute.xlu0 %4171
  %vm4173 = vcmask 1031168
  %v4174 = vsel %vm4173, %v4158, %v4160
  %v4175 = vsel %vm4173, %v4162, %v4164
  %v4176 = vsel %vm4173, %v4166, %v4168
  %v4177 = vsel %vm4173, %v4170, %v4172
  %v4186 = vadd.f32 %v4133, %v4174
  %v4187 = vadd.f32 %v4134, %v4160
  %v4188 = vadd.f32 %v4135, %v4175
  %v4189 = vadd.f32 %v4136, %v4164
  %v4190 = vadd.f32 %v4137, %v4176
  %v4191 = vadd.f32 %v4138, %v4168
  %v4192 = vadd.f32 %v4139, %v4177
  %v4193 = vadd.f32 %v4140, %v4172
  %v4194 = vld [vmem:[#allocation2 + $0xc0] sm:$0xff]
  %v4195 = vld [vmem:[#allocation2 + $0xc8] sm:$0xff]
  %v4196 = vld [vmem:[#allocation2 + $0xd0] sm:$0xff]
  %v4197 = vld [vmem:[#allocation2 + $0xd8] sm:$0xff]
  %v4198 = vld [vmem:[#allocation2 + $0xe0] sm:$0xff]
  %v4199 = vld [vmem:[#allocation2 + $0xe8] sm:$0xff]
  %v4200 = vld [vmem:[#allocation2 + $0xf0] sm:$0xff]
  %v4201 = vld [vmem:[#allocation2 + $0xf8] sm:$0xff]
  %4210 = vrot.lane.b32.xlu0 %v4194, 125
  %v4211 = vpop.permute.xlu0 %4210
  %4212 = vrot.lane.b32.xlu0 %v4195, 125
  %v4213 = vpop.permute.xlu0 %4212
  %4214 = vrot.lane.b32.xlu0 %v4196, 125
  %v4215 = vpop.permute.xlu0 %4214
  %4216 = vrot.lane.b32.xlu0 %v4197, 125
  %v4217 = vpop.permute.xlu0 %4216
  %4218 = vrot.lane.b32.xlu0 %v4198, 125
  %v4219 = vpop.permute.xlu0 %4218
  %4220 = vrot.lane.b32.xlu0 %v4199, 125
  %v4221 = vpop.permute.xlu0 %4220
  %4222 = vrot.lane.b32.xlu0 %v4200, 125
  %v4223 = vpop.permute.xlu0 %4222
  %4224 = vrot.lane.b32.xlu0 %v4201, 125
  %v4225 = vpop.permute.xlu0 %4224
  %vm4226 = vcmask 1022976
  %v4227 = vsel %vm4226, %v4211, %v4213
  %v4228 = vsel %vm4226, %v4215, %v4217
  %v4229 = vsel %vm4226, %v4219, %v4221
  %v4230 = vsel %vm4226, %v4223, %v4225
  %v4239 = vadd.f32 %v4186, %v4227
  %v4240 = vadd.f32 %v4187, %v4213
  %v4241 = vadd.f32 %v4188, %v4228
  %v4242 = vadd.f32 %v4189, %v4217
  %v4243 = vadd.f32 %v4190, %v4229
  %v4244 = vadd.f32 %v4191, %v4221
  %v4245 = vadd.f32 %v4192, %v4230
  %v4246 = vadd.f32 %v4193, %v4225
  %v4247 = vld [vmem:[#allocation2 + $0x100] sm:$0xff]
  %v4248 = vld [vmem:[#allocation2 + $0x108] sm:$0xff]
  %v4249 = vld [vmem:[#allocation2 + $0x110] sm:$0xff]
  %v4250 = vld [vmem:[#allocation2 + $0x118] sm:$0xff]
  %v4251 = vld [vmem:[#allocation2 + $0x120] sm:$0xff]
  %v4252 = vld [vmem:[#allocation2 + $0x128] sm:$0xff]
  %v4253 = vld [vmem:[#allocation2 + $0x130] sm:$0xff]
  %v4254 = vld [vmem:[#allocation2 + $0x138] sm:$0xff]
  %4263 = vrot.lane.b32.xlu0 %v4247, 112
  %v4264 = vpop.permute.xlu0 %4263
  %4265 = vrot.lane.b32.xlu0 %v4248, 112
  %v4266 = vpop.permute.xlu0 %4265
  %4267 = vrot.lane.b32.xlu0 %v4249, 112
  %v4268 = vpop.permute.xlu0 %4267
  %4269 = vrot.lane.b32.xlu0 %v4250, 112
  %v4270 = vpop.permute.xlu0 %4269
  %4271 = vrot.lane.b32.xlu0 %v4251, 112
  %v4272 = vpop.permute.xlu0 %4271
  %4273 = vrot.lane.b32.xlu0 %v4252, 112
  %v4274 = vpop.permute.xlu0 %4273
  %4275 = vrot.lane.b32.xlu0 %v4253, 112
  %v4276 = vpop.permute.xlu0 %4275
  %4277 = vrot.lane.b32.xlu0 %v4254, 112
  %v4278 = vpop.permute.xlu0 %4277
  %v4279 = vsel %vm2378, %v4264, %v4266
  %v4280 = vsel %vm2378, %v4268, %v4270
  %v4281 = vsel %vm2378, %v4272, %v4274
  %v4282 = vsel %vm2378, %v4276, %v4278
  %v4291 = vadd.f32 %v4239, %v4279
  %v4292 = vadd.f32 %v4240, %v4266
  %v4293 = vadd.f32 %v4241, %v4280
  %v4294 = vadd.f32 %v4242, %v4270
  %v4295 = vadd.f32 %v4243, %v4281
  %v4296 = vadd.f32 %v4244, %v4274
  %v4297 = vadd.f32 %v4245, %v4282
  %v4298 = vadd.f32 %v4246, %v4278
  %v4299 = vld [vmem:[#allocation2 + $0x140] sm:$0xff]
  %v4300 = vld [vmem:[#allocation2 + $0x148] sm:$0xff]
  %v4301 = vld [vmem:[#allocation2 + $0x150] sm:$0xff]
  %v4302 = vld [vmem:[#allocation2 + $0x158] sm:$0xff]
  %v4303 = vld [vmem:[#allocation2 + $0x160] sm:$0xff]
  %v4304 = vld [vmem:[#allocation2 + $0x168] sm:$0xff]
  %v4305 = vld [vmem:[#allocation2 + $0x170] sm:$0xff]
  %v4306 = vld [vmem:[#allocation2 + $0x178] sm:$0xff]
  %4315 = vrot.lane.b32.xlu0 %v4299, 111
  %v4316 = vpop.permute.xlu0 %4315
  %4317 = vrot.lane.b32.xlu0 %v4300, 111
  %v4318 = vpop.permute.xlu0 %4317
  %4319 = vrot.lane.b32.xlu0 %v4301, 111
  %v4320 = vpop.permute.xlu0 %4319
  %4321 = vrot.lane.b32.xlu0 %v4302, 111
  %v4322 = vpop.permute.xlu0 %4321
  %4323 = vrot.lane.b32.xlu0 %v4303, 111
  %v4324 = vpop.permute.xlu0 %4323
  %4325 = vrot.lane.b32.xlu0 %v4304, 111
  %v4326 = vpop.permute.xlu0 %4325
  %4327 = vrot.lane.b32.xlu0 %v4305, 111
  %v4328 = vpop.permute.xlu0 %4327
  %4329 = vrot.lane.b32.xlu0 %v4306, 111
  %v4330 = vpop.permute.xlu0 %4329
  %vm4331 = vcmask 908288
  %v4332 = vsel %vm4331, %v4316, %v4318
  %v4333 = vsel %vm4331, %v4320, %v4322
  %v4334 = vsel %vm4331, %v4324, %v4326
  %v4335 = vsel %vm4331, %v4328, %v4330
  %v4344 = vadd.f32 %v4291, %v4332
  %v4345 = vadd.f32 %v4292, %v4318
  %v4346 = vadd.f32 %v4293, %v4333
  %v4347 = vadd.f32 %v4294, %v4322
  %v4348 = vadd.f32 %v4295, %v4334
  %v4349 = vadd.f32 %v4296, %v4326
  %v4350 = vadd.f32 %v4297, %v4335
  %v4351 = vadd.f32 %v4298, %v4330
  %v4352 = vld [vmem:[#allocation2 + $0x180] sm:$0xff]
  %v4353 = vld [vmem:[#allocation2 + $0x188] sm:$0xff]
  %v4354 = vld [vmem:[#allocation2 + $0x190] sm:$0xff]
  %v4355 = vld [vmem:[#allocation2 + $0x198] sm:$0xff]
  %v4356 = vld [vmem:[#allocation2 + $0x1a0] sm:$0xff]
  %v4357 = vld [vmem:[#allocation2 + $0x1a8] sm:$0xff]
  %v4358 = vld [vmem:[#allocation2 + $0x1b0] sm:$0xff]
  %v4359 = vld [vmem:[#allocation2 + $0x1b8] sm:$0xff]
  %4368 = vrot.lane.b32.xlu0 %v4352, 110
  %v4369 = vpop.permute.xlu0 %4368
  %4370 = vrot.lane.b32.xlu0 %v4353, 110
  %v4371 = vpop.permute.xlu0 %4370
  %4372 = vrot.lane.b32.xlu0 %v4354, 110
  %v4373 = vpop.permute.xlu0 %4372
  %4374 = vrot.lane.b32.xlu0 %v4355, 110
  %v4375 = vpop.permute.xlu0 %4374
  %4376 = vrot.lane.b32.xlu0 %v4356, 110
  %v4377 = vpop.permute.xlu0 %4376
  %4378 = vrot.lane.b32.xlu0 %v4357, 110
  %v4379 = vpop.permute.xlu0 %4378
  %4380 = vrot.lane.b32.xlu0 %v4358, 110
  %v4381 = vpop.permute.xlu0 %4380
  %4382 = vrot.lane.b32.xlu0 %v4359, 110
  %v4383 = vpop.permute.xlu0 %4382
  %vm4384 = vcmask 900096
  %v4385 = vsel %vm4384, %v4369, %v4371
  %v4386 = vsel %vm4384, %v4373, %v4375
  %v4387 = vsel %vm4384, %v4377, %v4379
  %v4388 = vsel %vm4384, %v4381, %v4383
  %v4397 = vadd.f32 %v4344, %v4385
  %v4398 = vadd.f32 %v4345, %v4371
  %v4399 = vadd.f32 %v4346, %v4386
  %v4400 = vadd.f32 %v4347, %v4375
  %v4401 = vadd.f32 %v4348, %v4387
  %v4402 = vadd.f32 %v4349, %v4379
  %v4403 = vadd.f32 %v4350, %v4388
  %v4404 = vadd.f32 %v4351, %v4383
  %v4405 = vld [vmem:[#allocation2 + $0x1c0] sm:$0xff]
  %v4406 = vld [vmem:[#allocation2 + $0x1c8] sm:$0xff]
  %v4407 = vld [vmem:[#allocation2 + $0x1d0] sm:$0xff]
  %v4408 = vld [vmem:[#allocation2 + $0x1d8] sm:$0xff]
  %v4409 = vld [vmem:[#allocation2 + $0x1e0] sm:$0xff]
  %v4410 = vld [vmem:[#allocation2 + $0x1e8] sm:$0xff]
  %v4411 = vld [vmem:[#allocation2 + $0x1f0] sm:$0xff]
  %v4412 = vld [vmem:[#allocation2 + $0x1f8] sm:$0xff]
  %4421 = vrot.lane.b32.xlu0 %v4405, 109
  %v4422 = vpop.permute.xlu0 %4421
  %4423 = vrot.lane.b32.xlu0 %v4406, 109
  %v4424 = vpop.permute.xlu0 %4423
  %4425 = vrot.lane.b32.xlu0 %v4407, 109
  %v4426 = vpop.permute.xlu0 %4425
  %4427 = vrot.lane.b32.xlu0 %v4408, 109
  %v4428 = vpop.permute.xlu0 %4427
  %4429 = vrot.lane.b32.xlu0 %v4409, 109
  %v4430 = vpop.permute.xlu0 %4429
  %4431 = vrot.lane.b32.xlu0 %v4410, 109
  %v4432 = vpop.permute.xlu0 %4431
  %4433 = vrot.lane.b32.xlu0 %v4411, 109
  %v4434 = vpop.permute.xlu0 %4433
  %4435 = vrot.lane.b32.xlu0 %v4412, 109
  %v4436 = vpop.permute.xlu0 %4435
  %vm4437 = vcmask 891904
  %v4438 = vsel %vm4437, %v4422, %v4424
  %v4439 = vsel %vm4437, %v4426, %v4428
  %v4440 = vsel %vm4437, %v4430, %v4432
  %v4441 = vsel %vm4437, %v4434, %v4436
  %v4450 = vadd.f32 %v4397, %v4438
  %v4451 = vadd.f32 %v4398, %v4424
  %v4452 = vadd.f32 %v4399, %v4439
  %v4453 = vadd.f32 %v4400, %v4428
  %v4454 = vadd.f32 %v4401, %v4440
  %v4455 = vadd.f32 %v4402, %v4432
  %v4456 = vadd.f32 %v4403, %v4441
  %v4457 = vadd.f32 %v4404, %v4436
  %v4458 = vld [vmem:[%s4015] sm:$0xff]
  %v4459 = vld [vmem:[%s4015 + $0x8] sm:$0xff]
  %v4460 = vld [vmem:[%s4015 + $0x10] sm:$0xff]
  %v4461 = vld [vmem:[%s4015 + $0x18] sm:$0xff]
  %v4462 = vld [vmem:[%s4015 + $0x20] sm:$0xff]
  %v4463 = vld [vmem:[%s4015 + $0x28] sm:$0xff]
  %v4464 = vld [vmem:[%s4015 + $0x30] sm:$0xff]
  %v4465 = vld [vmem:[%s4015 + $0x38] sm:$0xff]
  %4474 = vrot.lane.b32.xlu0 %v4458, 96
  %v4475 = vpop.permute.xlu0 %4474
  %4476 = vrot.lane.b32.xlu0 %v4459, 96
  %v4477 = vpop.permute.xlu0 %4476
  %4478 = vrot.lane.b32.xlu0 %v4460, 96
  %v4479 = vpop.permute.xlu0 %4478
  %4480 = vrot.lane.b32.xlu0 %v4461, 96
  %v4481 = vpop.permute.xlu0 %4480
  %4482 = vrot.lane.b32.xlu0 %v4462, 96
  %v4483 = vpop.permute.xlu0 %4482
  %4484 = vrot.lane.b32.xlu0 %v4463, 96
  %v4485 = vpop.permute.xlu0 %4484
  %4486 = vrot.lane.b32.xlu0 %v4464, 96
  %v4487 = vpop.permute.xlu0 %4486
  %4488 = vrot.lane.b32.xlu0 %v4465, 96
  %v4489 = vpop.permute.xlu0 %4488
  %v4490 = vsel %vm28, %v4475, %v4477
  %v4491 = vsel %vm28, %v4479, %v4481
  %v4492 = vsel %vm28, %v4483, %v4485
  %v4493 = vsel %vm28, %v4487, %v4489
  %v4502 = vadd.f32 %v4450, %v4490
  %v4503 = vadd.f32 %v4451, %v4477
  %v4504 = vadd.f32 %v4452, %v4491
  %v4505 = vadd.f32 %v4453, %v4481
  %v4506 = vadd.f32 %v4454, %v4492
  %v4507 = vadd.f32 %v4455, %v4485
  %v4508 = vadd.f32 %v4456, %v4493
  %v4509 = vadd.f32 %v4457, %v4489
  %v4510 = vld [vmem:[%s4015 + $0x40] sm:$0xff]
  %v4511 = vld [vmem:[%s4015 + $0x48] sm:$0xff]
  %v4512 = vld [vmem:[%s4015 + $0x50] sm:$0xff]
  %v4513 = vld [vmem:[%s4015 + $0x58] sm:$0xff]
  %v4514 = vld [vmem:[%s4015 + $0x60] sm:$0xff]
  %v4515 = vld [vmem:[%s4015 + $0x68] sm:$0xff]
  %v4516 = vld [vmem:[%s4015 + $0x70] sm:$0xff]
  %v4517 = vld [vmem:[%s4015 + $0x78] sm:$0xff]
  %4526 = vrot.lane.b32.xlu0 %v4510, 95
  %v4527 = vpop.permute.xlu0 %4526
  %4528 = vrot.lane.b32.xlu0 %v4511, 95
  %v4529 = vpop.permute.xlu0 %4528
  %4530 = vrot.lane.b32.xlu0 %v4512, 95
  %v4531 = vpop.permute.xlu0 %4530
  %4532 = vrot.lane.b32.xlu0 %v4513, 95
  %v4533 = vpop.permute.xlu0 %4532
  %4534 = vrot.lane.b32.xlu0 %v4514, 95
  %v4535 = vpop.permute.xlu0 %4534
  %4536 = vrot.lane.b32.xlu0 %v4515, 95
  %v4537 = vpop.permute.xlu0 %4536
  %4538 = vrot.lane.b32.xlu0 %v4516, 95
  %v4539 = vpop.permute.xlu0 %4538
  %4540 = vrot.lane.b32.xlu0 %v4517, 95
  %v4541 = vpop.permute.xlu0 %4540
  %vm4542 = vcmask 777216
  %v4543 = vsel %vm4542, %v4527, %v4529
  %v4544 = vsel %vm4542, %v4531, %v4533
  %v4545 = vsel %vm4542, %v4535, %v4537
  %v4546 = vsel %vm4542, %v4539, %v4541
  %v4555 = vadd.f32 %v4502, %v4543
  %v4556 = vadd.f32 %v4503, %v4529
  %v4557 = vadd.f32 %v4504, %v4544
  %v4558 = vadd.f32 %v4505, %v4533
  %v4559 = vadd.f32 %v4506, %v4545
  %v4560 = vadd.f32 %v4507, %v4537
  %v4561 = vadd.f32 %v4508, %v4546
  %v4562 = vadd.f32 %v4509, %v4541
  %v4563 = vld [vmem:[%s4015 + $0x80] sm:$0xff]
  %v4564 = vld [vmem:[%s4015 + $0x88] sm:$0xff]
  %v4565 = vld [vmem:[%s4015 + $0x90] sm:$0xff]
  %v4566 = vld [vmem:[%s4015 + $0x98] sm:$0xff]
  %v4567 = vld [vmem:[%s4015 + $0xa0] sm:$0xff]
  %v4568 = vld [vmem:[%s4015 + $0xa8] sm:$0xff]
  %v4569 = vld [vmem:[%s4015 + $0xb0] sm:$0xff]
  %v4570 = vld [vmem:[%s4015 + $0xb8] sm:$0xff]
  %4579 = vrot.lane.b32.xlu0 %v4563, 94
  %v4580 = vpop.permute.xlu0 %4579
  %4581 = vrot.lane.b32.xlu0 %v4564, 94
  %v4582 = vpop.permute.xlu0 %4581
  %4583 = vrot.lane.b32.xlu0 %v4565, 94
  %v4584 = vpop.permute.xlu0 %4583
  %4585 = vrot.lane.b32.xlu0 %v4566, 94
  %v4586 = vpop.permute.xlu0 %4585
  %4587 = vrot.lane.b32.xlu0 %v4567, 94
  %v4588 = vpop.permute.xlu0 %4587
  %4589 = vrot.lane.b32.xlu0 %v4568, 94
  %v4590 = vpop.permute.xlu0 %4589
  %4591 = vrot.lane.b32.xlu0 %v4569, 94
  %v4592 = vpop.permute.xlu0 %4591
  %4593 = vrot.lane.b32.xlu0 %v4570, 94
  %v4594 = vpop.permute.xlu0 %4593
  %vm4595 = vcmask 769024
  %v4596 = vsel %vm4595, %v4580, %v4582
  %v4597 = vsel %vm4595, %v4584, %v4586
  %v4598 = vsel %vm4595, %v4588, %v4590
  %v4599 = vsel %vm4595, %v4592, %v4594
  %v4608 = vadd.f32 %v4555, %v4596
  %v4609 = vadd.f32 %v4556, %v4582
  %v4610 = vadd.f32 %v4557, %v4597
  %v4611 = vadd.f32 %v4558, %v4586
  %v4612 = vadd.f32 %v4559, %v4598
  %v4613 = vadd.f32 %v4560, %v4590
  %v4614 = vadd.f32 %v4561, %v4599
  %v4615 = vadd.f32 %v4562, %v4594
  %v4616 = vld [vmem:[%s4015 + $0xc0] sm:$0xff]
  %v4617 = vld [vmem:[%s4015 + $0xc8] sm:$0xff]
  %v4618 = vld [vmem:[%s4015 + $0xd0] sm:$0xff]
  %v4619 = vld [vmem:[%s4015 + $0xd8] sm:$0xff]
  %v4620 = vld [vmem:[%s4015 + $0xe0] sm:$0xff]
  %v4621 = vld [vmem:[%s4015 + $0xe8] sm:$0xff]
  %v4622 = vld [vmem:[%s4015 + $0xf0] sm:$0xff]
  %v4623 = vld [vmem:[%s4015 + $0xf8] sm:$0xff]
  %4632 = vrot.lane.b32.xlu0 %v4616, 93
  %v4633 = vpop.permute.xlu0 %4632
  %4634 = vrot.lane.b32.xlu0 %v4617, 93
  %v4635 = vpop.permute.xlu0 %4634
  %4636 = vrot.lane.b32.xlu0 %v4618, 93
  %v4637 = vpop.permute.xlu0 %4636
  %4638 = vrot.lane.b32.xlu0 %v4619, 93
  %v4639 = vpop.permute.xlu0 %4638
  %4640 = vrot.lane.b32.xlu0 %v4620, 93
  %v4641 = vpop.permute.xlu0 %4640
  %4642 = vrot.lane.b32.xlu0 %v4621, 93
  %v4643 = vpop.permute.xlu0 %4642
  %4644 = vrot.lane.b32.xlu0 %v4622, 93
  %v4645 = vpop.permute.xlu0 %4644
  %4646 = vrot.lane.b32.xlu0 %v4623, 93
  %v4647 = vpop.permute.xlu0 %4646
  %vm4648 = vcmask 760832
  %v4649 = vsel %vm4648, %v4633, %v4635
  %v4650 = vsel %vm4648, %v4637, %v4639
  %v4651 = vsel %vm4648, %v4641, %v4643
  %v4652 = vsel %vm4648, %v4645, %v4647
  %v4661 = vadd.f32 %v4608, %v4649
  %v4662 = vadd.f32 %v4609, %v4635
  %v4663 = vadd.f32 %v4610, %v4650
  %v4664 = vadd.f32 %v4611, %v4639
  %v4665 = vadd.f32 %v4612, %v4651
  %v4666 = vadd.f32 %v4613, %v4643
  %v4667 = vadd.f32 %v4614, %v4652
  %v4668 = vadd.f32 %v4615, %v4647
  %v4669 = vld [vmem:[%s4015 + $0x100] sm:$0xff]
  %v4670 = vld [vmem:[%s4015 + $0x108] sm:$0xff]
  %v4671 = vld [vmem:[%s4015 + $0x110] sm:$0xff]
  %v4672 = vld [vmem:[%s4015 + $0x118] sm:$0xff]
  %v4673 = vld [vmem:[%s4015 + $0x120] sm:$0xff]
  %v4674 = vld [vmem:[%s4015 + $0x128] sm:$0xff]
  %v4675 = vld [vmem:[%s4015 + $0x130] sm:$0xff]
  %v4676 = vld [vmem:[%s4015 + $0x138] sm:$0xff]
  %4685 = vrot.lane.b32.xlu0 %v4669, 80
  %v4686 = vpop.permute.xlu0 %4685
  %4687 = vrot.lane.b32.xlu0 %v4670, 80
  %v4688 = vpop.permute.xlu0 %4687
  %4689 = vrot.lane.b32.xlu0 %v4671, 80
  %v4690 = vpop.permute.xlu0 %4689
  %4691 = vrot.lane.b32.xlu0 %v4672, 80
  %v4692 = vpop.permute.xlu0 %4691
  %4693 = vrot.lane.b32.xlu0 %v4673, 80
  %v4694 = vpop.permute.xlu0 %4693
  %4695 = vrot.lane.b32.xlu0 %v4674, 80
  %v4696 = vpop.permute.xlu0 %4695
  %4697 = vrot.lane.b32.xlu0 %v4675, 80
  %v4698 = vpop.permute.xlu0 %4697
  %4699 = vrot.lane.b32.xlu0 %v4676, 80
  %v4700 = vpop.permute.xlu0 %4699
  %vm4701 = vcmask 654336
  %v4702 = vsel %vm4701, %v4686, %v4688
  %v4703 = vsel %vm4701, %v4690, %v4692
  %v4704 = vsel %vm4701, %v4694, %v4696
  %v4705 = vsel %vm4701, %v4698, %v4700
  %v4714 = vadd.f32 %v4661, %v4702
  %v4715 = vadd.f32 %v4662, %v4688
  %v4716 = vadd.f32 %v4663, %v4703
  %v4717 = vadd.f32 %v4664, %v4692
  %v4718 = vadd.f32 %v4665, %v4704
  %v4719 = vadd.f32 %v4666, %v4696
  %v4720 = vadd.f32 %v4667, %v4705
  %v4721 = vadd.f32 %v4668, %v4700
  %v4722 = vld [vmem:[%s4015 + $0x140] sm:$0xff]
  %v4723 = vld [vmem:[%s4015 + $0x148] sm:$0xff]
  %v4724 = vld [vmem:[%s4015 + $0x150] sm:$0xff]
  %v4725 = vld [vmem:[%s4015 + $0x158] sm:$0xff]
  %v4726 = vld [vmem:[%s4015 + $0x160] sm:$0xff]
  %v4727 = vld [vmem:[%s4015 + $0x168] sm:$0xff]
  %v4728 = vld [vmem:[%s4015 + $0x170] sm:$0xff]
  %v4729 = vld [vmem:[%s4015 + $0x178] sm:$0xff]
  %4738 = vrot.lane.b32.xlu0 %v4722, 79
  %v4739 = vpop.permute.xlu0 %4738
  %4740 = vrot.lane.b32.xlu0 %v4723, 79
  %v4741 = vpop.permute.xlu0 %4740
  %4742 = vrot.lane.b32.xlu0 %v4724, 79
  %v4743 = vpop.permute.xlu0 %4742
  %4744 = vrot.lane.b32.xlu0 %v4725, 79
  %v4745 = vpop.permute.xlu0 %4744
  %4746 = vrot.lane.b32.xlu0 %v4726, 79
  %v4747 = vpop.permute.xlu0 %4746
  %4748 = vrot.lane.b32.xlu0 %v4727, 79
  %v4749 = vpop.permute.xlu0 %4748
  %4750 = vrot.lane.b32.xlu0 %v4728, 79
  %v4751 = vpop.permute.xlu0 %4750
  %4752 = vrot.lane.b32.xlu0 %v4729, 79
  %v4753 = vpop.permute.xlu0 %4752
  %vm4754 = vcmask 646144
  %v4755 = vsel %vm4754, %v4739, %v4741
  %v4756 = vsel %vm4754, %v4743, %v4745
  %v4757 = vsel %vm4754, %v4747, %v4749
  %v4758 = vsel %vm4754, %v4751, %v4753
  %v4767 = vadd.f32 %v4714, %v4755
  %v4768 = vadd.f32 %v4715, %v4741
  %v4769 = vadd.f32 %v4716, %v4756
  %v4770 = vadd.f32 %v4717, %v4745
  %v4771 = vadd.f32 %v4718, %v4757
  %v4772 = vadd.f32 %v4719, %v4749
  %v4773 = vadd.f32 %v4720, %v4758
  %v4774 = vadd.f32 %v4721, %v4753
  %v4775 = vld [vmem:[%s4015 + $0x180] sm:$0xff]
  %v4776 = vld [vmem:[%s4015 + $0x188] sm:$0xff]
  %v4777 = vld [vmem:[%s4015 + $0x190] sm:$0xff]
  %v4778 = vld [vmem:[%s4015 + $0x198] sm:$0xff]
  %v4779 = vld [vmem:[%s4015 + $0x1a0] sm:$0xff]
  %v4780 = vld [vmem:[%s4015 + $0x1a8] sm:$0xff]
  %v4781 = vld [vmem:[%s4015 + $0x1b0] sm:$0xff]
  %v4782 = vld [vmem:[%s4015 + $0x1b8] sm:$0xff]
  %4791 = vrot.lane.b32.xlu0 %v4775, 78
  %v4792 = vpop.permute.xlu0 %4791
  %4793 = vrot.lane.b32.xlu0 %v4776, 78
  %v4794 = vpop.permute.xlu0 %4793
  %4795 = vrot.lane.b32.xlu0 %v4777, 78
  %v4796 = vpop.permute.xlu0 %4795
  %4797 = vrot.lane.b32.xlu0 %v4778, 78
  %v4798 = vpop.permute.xlu0 %4797
  %4799 = vrot.lane.b32.xlu0 %v4779, 78
  %v4800 = vpop.permute.xlu0 %4799
  %4801 = vrot.lane.b32.xlu0 %v4780, 78
  %v4802 = vpop.permute.xlu0 %4801
  %4803 = vrot.lane.b32.xlu0 %v4781, 78
  %v4804 = vpop.permute.xlu0 %4803
  %4805 = vrot.lane.b32.xlu0 %v4782, 78
  %v4806 = vpop.permute.xlu0 %4805
  %vm4807 = vcmask 637952
  %v4808 = vsel %vm4807, %v4792, %v4794
  %v4809 = vsel %vm4807, %v4796, %v4798
  %v4810 = vsel %vm4807, %v4800, %v4802
  %v4811 = vsel %vm4807, %v4804, %v4806
  %v4820 = vadd.f32 %v4767, %v4808
  %v4821 = vadd.f32 %v4768, %v4794
  %v4822 = vadd.f32 %v4769, %v4809
  %v4823 = vadd.f32 %v4770, %v4798
  %v4824 = vadd.f32 %v4771, %v4810
  %v4825 = vadd.f32 %v4772, %v4802
  %v4826 = vadd.f32 %v4773, %v4811
  %v4827 = vadd.f32 %v4774, %v4806
  %v4828 = vld [vmem:[%s4015 + $0x1c0] sm:$0xff]
  %v4829 = vld [vmem:[%s4015 + $0x1c8] sm:$0xff]
  %v4830 = vld [vmem:[%s4015 + $0x1d0] sm:$0xff]
  %v4831 = vld [vmem:[%s4015 + $0x1d8] sm:$0xff]
  %v4832 = vld [vmem:[%s4015 + $0x1e0] sm:$0xff]
  %v4833 = vld [vmem:[%s4015 + $0x1e8] sm:$0xff]
  %v4834 = vld [vmem:[%s4015 + $0x1f0] sm:$0xff]
  %v4835 = vld [vmem:[%s4015 + $0x1f8] sm:$0xff]
  %4844 = vrot.lane.b32.xlu0 %v4828, 77
  %v4845 = vpop.permute.xlu0 %4844
  %4846 = vrot.lane.b32.xlu0 %v4829, 77
  %v4847 = vpop.permute.xlu0 %4846
  %4848 = vrot.lane.b32.xlu0 %v4830, 77
  %v4849 = vpop.permute.xlu0 %4848
  %4850 = vrot.lane.b32.xlu0 %v4831, 77
  %v4851 = vpop.permute.xlu0 %4850
  %4852 = vrot.lane.b32.xlu0 %v4832, 77
  %v4853 = vpop.permute.xlu0 %4852
  %4854 = vrot.lane.b32.xlu0 %v4833, 77
  %v4855 = vpop.permute.xlu0 %4854
  %4856 = vrot.lane.b32.xlu0 %v4834, 77
  %v4857 = vpop.permute.xlu0 %4856
  %4858 = vrot.lane.b32.xlu0 %v4835, 77
  %v4859 = vpop.permute.xlu0 %4858
  %vm4860 = vcmask 629760
  %v4861 = vsel %vm4860, %v4845, %v4847
  %v4862 = vsel %vm4860, %v4849, %v4851
  %v4863 = vsel %vm4860, %v4853, %v4855
  %v4864 = vsel %vm4860, %v4857, %v4859
  %v4873 = vadd.f32 %v4820, %v4861
  %v4874 = vadd.f32 %v4821, %v4847
  %v4875 = vadd.f32 %v4822, %v4862
  %v4876 = vadd.f32 %v4823, %v4851
  %v4877 = vadd.f32 %v4824, %v4863
  %v4878 = vadd.f32 %v4825, %v4855
  %v4879 = vadd.f32 %v4826, %v4864
  %v4880 = vadd.f32 %v4827, %v4859
  %v4881 = vld [vmem:[%s2] sm:$0xff]
  %v4882 = vld [vmem:[%s2 + $0x8] sm:$0xff]
  %v4883 = vld [vmem:[%s2 + $0x10] sm:$0xff]
  %v4884 = vld [vmem:[%s2 + $0x18] sm:$0xff]
  %4886 = vset.pattern.permute.xlu0 0
  %4887 = vperm.xlu0 %4886, %v4881
  %v4888 = vpop.permute.xlu0 %4887
  %4891 = vset.pattern.permute.xlu0 0
  %4892 = vperm.xlu0 %4891, %v4882
  %v4893 = vpop.permute.xlu0 %4892
  %4896 = vset.pattern.permute.xlu0 0
  %4897 = vperm.xlu0 %4896, %v4883
  %v4898 = vpop.permute.xlu0 %4897
  %4901 = vset.pattern.permute.xlu0 0
  %4902 = vperm.xlu0 %4901, %v4884
  %v4903 = vpop.permute.xlu0 %4902
  %v4905 = vadd.f32 %v4873, %v4888
  %v4906 = vadd.f32 %v4874, %v4888
  %v4907 = vadd.f32 %v4875, %v4893
  %v4908 = vadd.f32 %v4876, %v4893
  %v4909 = vadd.f32 %v4877, %v4898
  %v4910 = vadd.f32 %v4878, %v4898
  %v4911 = vadd.f32 %v4879, %v4903
  %v4912 = vadd.f32 %v4880, %v4903
  %v4913 = vmul.f32 %v4905, %v4905
  %v4914 = vmul.f32 %v4906, %v4906
  %v4915 = vmul.f32 %v4907, %v4907
  %v4916 = vmul.f32 %v4908, %v4908
  %v4917 = vmul.f32 %v4909, %v4909
  %v4918 = vmul.f32 %v4910, %v4910
  %v4919 = vmul.f32 %v4911, %v4911
  %v4920 = vmul.f32 %v4912, %v4912
  %v4921 = vmul.f32 %v4913, %v4905
  %v4922 = vmul.f32 %v4914, %v4906
  %v4923 = vmul.f32 %v4915, %v4907
  %v4924 = vmul.f32 %v4916, %v4908
  %v4925 = vmul.f32 %v4917, %v4909
  %v4926 = vmul.f32 %v4918, %v4910
  %v4927 = vmul.f32 %v4919, %v4911
  %v4928 = vmul.f32 %v4920, %v4912
  %v4929 = vmul.f32 %v4921, 0.044715
  %v4930 = vmul.f32 %v4922, 0.044715
  %v4931 = vmul.f32 %v4923, 0.044715
  %v4932 = vmul.f32 %v4924, 0.044715
  %v4933 = vmul.f32 %v4925, 0.044715
  %v4934 = vmul.f32 %v4926, 0.044715
  %v4935 = vmul.f32 %v4927, 0.044715
  %v4936 = vmul.f32 %v4928, 0.044715
  %v4937 = vadd.f32 %v4905, %v4929
  %v4938 = vadd.f32 %v4906, %v4930
  %v4939 = vadd.f32 %v4907, %v4931
  %v4940 = vadd.f32 %v4908, %v4932
  %v4941 = vadd.f32 %v4909, %v4933
  %v4942 = vadd.f32 %v4910, %v4934
  %v4943 = vadd.f32 %v4911, %v4935
  %v4944 = vadd.f32 %v4912, %v4936
  %v4945 = vmul.f32 %v4937, 0.7978846
  %v4946 = vmul.f32 %v4938, 0.7978846
  %v4947 = vmul.f32 %v4939, 0.7978846
  %v4948 = vmul.f32 %v4940, 0.7978846
  %v4949 = vmul.f32 %v4941, 0.7978846
  %v4950 = vmul.f32 %v4942, 0.7978846
  %v4951 = vmul.f32 %v4943, 0.7978846
  %v4952 = vmul.f32 %v4944, 0.7978846
  %v4953 = vmul.f32 %v4905, 0.5
  %v4954 = vmul.f32 %v4906, 0.5
  %v4955 = vmul.f32 %v4907, 0.5
  %v4956 = vmul.f32 %v4908, 0.5
  %v4957 = vmul.f32 %v4909, 0.5
  %v4958 = vmul.f32 %v4910, 0.5
  %v4959 = vmul.f32 %v4911, 0.5
  %v4960 = vmul.f32 %v4912, 0.5
  %v4961 = vtanh.pop %v4945
  %v4962 = vtanh.pop %v4946
  %v4963 = vtanh.pop %v4947
  %v4964 = vtanh.pop %v4948
  %v4965 = vtanh.pop %v4949
  %v4966 = vtanh.pop %v4950
  %v4967 = vtanh.pop %v4951
  %v4968 = vtanh.pop %v4952
  %v4969 = vadd.f32 %v4961, 1.0
  %v4970 = vadd.f32 %v4962, 1.0
  %v4971 = vadd.f32 %v4963, 1.0
  %v4972 = vadd.f32 %v4964, 1.0
  %v4973 = vadd.f32 %v4965, 1.0
  %v4974 = vadd.f32 %v4966, 1.0
  %v4975 = vadd.f32 %v4967, 1.0
  %v4976 = vadd.f32 %v4968, 1.0
  %v4977 = vmul.f32 %v4953, %v4969
  %v4978 = vmul.f32 %v4954, %v4970
  %v4979 = vmul.f32 %v4955, %v4971
  %v4980 = vmul.f32 %v4956, %v4972
  %v4981 = vmul.f32 %v4957, %v4973
  %v4982 = vmul.f32 %v4958, %v4974
  %v4983 = vmul.f32 %v4959, %v4975
  %v4984 = vmul.f32 %v4960, %v4976
  %v4985 = vmul.f32 %v4977, %v45
  %v4986 = vmul.f32 %v4978, %v46
  %v4987 = vmul.f32 %v4979, %v45
  %v4988 = vmul.f32 %v4980, %v46
  %v4989 = vmul.f32 %v4981, %v45
  %v4990 = vmul.f32 %v4982, %v46
  %v4991 = vmul.f32 %v4983, %v45
  %v4992 = vmul.f32 %v4984, %v46
  %5001 = vrot.lane.b32.xlu0 %v4985, 17
  %v5002 = vpop.permute.xlu0 %5001
  %5003 = vrot.lane.b32.xlu0 %v4986, 17
  %v5004 = vpop.permute.xlu0 %5003
  %5005 = vrot.lane.b32.xlu0 %v4987, 17
  %v5006 = vpop.permute.xlu0 %5005
  %5007 = vrot.lane.b32.xlu0 %v4988, 17
  %v5008 = vpop.permute.xlu0 %5007
  %5009 = vrot.lane.b32.xlu0 %v4989, 17
  %v5010 = vpop.permute.xlu0 %5009
  %5011 = vrot.lane.b32.xlu0 %v4990, 17
  %v5012 = vpop.permute.xlu0 %5011
  %5013 = vrot.lane.b32.xlu0 %v4991, 17
  %v5014 = vpop.permute.xlu0 %5013
  %5015 = vrot.lane.b32.xlu0 %v4992, 17
  %v5016 = vpop.permute.xlu0 %5015
  %vm5017 = vcmask 138240
  %v5018 = vsel %vm5017, %v5002, %v5004
  %v5019 = vsel %vm5017, %v5006, %v5008
  %v5020 = vsel %vm5017, %v5010, %v5012
  %v5021 = vsel %vm5017, %v5014, %v5016
  %vm5030 = vcmask 1047688
  %5031 = vst.msk [vmem:[#allocation4] sm:$0xff] %vm5030, %v5002
  %vm5032 = vcmask 531456
  %5033 = vst.msk [vmem:[#allocation4 + $0x8] sm:$0xff] %vm5032, %v5018
  %5034 = vst.msk [vmem:[#allocation4 + $0x10] sm:$0xff] %vm5030, %v5006
  %5035 = vst.msk [vmem:[#allocation4 + $0x18] sm:$0xff] %vm5032, %v5019
  %5036 = vst.msk [vmem:[#allocation4 + $0x20] sm:$0xff] %vm5030, %v5010
  %5037 = vst.msk [vmem:[#allocation4 + $0x28] sm:$0xff] %vm5032, %v5020
  %5038 = vst.msk [vmem:[#allocation4 + $0x30] sm:$0xff] %vm5030, %v5014
  %5039 = vst.msk [vmem:[#allocation4 + $0x38] sm:$0xff] %vm5032, %v5021
  %v5040 = vld [vmem:[%s3] sm:$0xf]
  %v5041 = vld [vmem:[%s3 + $0x4] sm:$0xf]
  %v5042 = vld [vmem:[%s3 + $0x8] sm:$0xf]
  %v5043 = vld [vmem:[%s3 + $0xc] sm:$0xf]
  %v5044 = vld [vmem:[%s3 + $0x10] sm:$0xf]
  %v5045 = vld [vmem:[%s3 + $0x14] sm:$0xf]
  %v5046 = vld [vmem:[%s3 + $0x18] sm:$0xf]
  %v5047 = vld [vmem:[%s3 + $0x1c] sm:$0xf]
  %v5048 = vld [vmem:[%s3 + $0x20] sm:$0xf]
  %v5049 = vld [vmem:[%s3 + $0x24] sm:$0xf]
  %v5050 = vld [vmem:[%s3 + $0x28] sm:$0xf]
  %v5051 = vld [vmem:[%s3 + $0x2c] sm:$0xf]
  %v5052 = vld [vmem:[%s3 + $0x30] sm:$0xf]
  %v5053 = vld [vmem:[%s3 + $0x34] sm:$0xf]
  %v5054 = vld [vmem:[%s3 + $0x38] sm:$0xf]
  %v5055 = vld [vmem:[%s3 + $0x3c] sm:$0xf]
  %v5056 = vld [vmem:[#allocation4] sm:$0xff]
  %v5057 = vld [vmem:[#allocation4 + $0x8] sm:$0xff]
  %v5058 = vld [vmem:[#allocation4 + $0x10] sm:$0xff]
  %v5059 = vld [vmem:[#allocation4 + $0x18] sm:$0xff]
  %v5060 = vld [vmem:[#allocation4 + $0x20] sm:$0xff]
  %v5061 = vld [vmem:[#allocation4 + $0x28] sm:$0xff]
  %v5062 = vld [vmem:[#allocation4 + $0x30] sm:$0xff]
  %v5063 = vld [vmem:[#allocation4 + $0x38] sm:$0xff]
  %v5064 = vpack.c.bf16 %v5058, %v5056
  %v5065 = vpack.c.bf16 %v5059, %v5057
  %v5066 = vpack.c.bf16 %v5062, %v5060
  %v5067 = vpack.c.bf16 %v5063, %v5061
  %v5084 = vunpack.c.l.b16 %v5040
  %v5085 = vunpack.c.l.b16 %v5041
  %v5086 = vunpack.c.l.b16 %v5042
  %v5087 = vunpack.c.l.b16 %v5043
  %v5088 = vunpack.c.l.b16 %v5044
  %v5089 = vunpack.c.l.b16 %v5045
  %v5090 = vunpack.c.l.b16 %v5046
  %v5091 = vunpack.c.l.b16 %v5047
  %v5092 = vunpack.c.l.b16 %v5048
  %v5093 = vunpack.c.l.b16 %v5049
  %v5094 = vunpack.c.l.b16 %v5050
  %v5095 = vunpack.c.l.b16 %v5051
  %v5096 = vunpack.c.l.b16 %v5052
  %v5097 = vunpack.c.l.b16 %v5053
  %v5098 = vunpack.c.l.b16 %v5054
  %v5099 = vunpack.c.l.b16 %v5055
  %v5100 = vpack.c.b16 %v5085, %v5084
  %v5101 = vpack.c.b16 %v5087, %v5086
  %v5102 = vpack.c.b16 %v5089, %v5088
  %v5103 = vpack.c.b16 %v5091, %v5090
  %v5104 = vpack.c.b16 %v5093, %v5092
  %v5105 = vpack.c.b16 %v5095, %v5094
  %v5106 = vpack.c.b16 %v5097, %v5096
  %v5107 = vpack.c.b16 %v5099, %v5098
  %vm5108 = vcmask 261120
  %v5110 = vsel %vm5108, %v5100, 0
  %v5113 = vsel %vm5108, %v5101, 0
  %v5116 = vsel %vm5108, %v5102, 0
  %v5119 = vsel %vm5108, %v5103, 0
  %v5122 = vsel %vm5108, %v5104, 0
  %v5125 = vsel %vm5108, %v5105, 0
  %v5128 = vsel %vm5108, %v5106, 0
  %v5131 = vsel %vm5108, %v5107, 0
  %5133 = vmatprep.subr.bf16.mxu0 %v5065
  %5134 = vmatpush1.bf16.msra.mxu0 %v5064
  %5135 = vmatprep.subr.bf16.mxu0 %v5067
  %5136 = vmatpush1.bf16.msra.mxu0 %v5066
  %5137 = vmatprep.subr.bf16.mxu0 0
  %5138 = vmatpush1.bf16.msra.mxu0 0
  %5139 = vmatprep.subr.bf16.mxu0 0
  %5140 = vmatpush1.bf16.msra.mxu0 0
  %5141 = vmatprep.subr.bf16.mxu0 0
  %5142 = vmatpush1.bf16.msra.mxu0 0
  %5143 = vmatprep.subr.bf16.mxu0 0
  %5144 = vmatpush1.bf16.msra.mxu0 0
  %5145 = vmatprep.subr.bf16.mxu0 0
  %5146 = vmatpush1.bf16.msra.mxu0 0
  %5147 = vmatprep.subr.bf16.mxu0 0
  %5148 = vmatpush1.bf16.msra.mxu0 0
  %5149 = vmatprep.subr.bf16.mxu0 0
  %5150 = vmatpush1.bf16.msra.mxu0 0
  %5151 = vmatprep.subr.bf16.mxu0 0
  %5152 = vmatpush1.bf16.msra.mxu0 0
  %5153 = vmatprep.subr.bf16.mxu0 0
  %5154 = vmatpush1.bf16.msra.mxu0 0
  %5155 = vmatprep.subr.bf16.mxu0 0
  %5156 = vmatpush1.bf16.msra.mxu0 0
  %5157 = vmatprep.subr.bf16.mxu0 0
  %5158 = vmatpush1.bf16.msra.mxu0 0
  %5159 = vmatprep.subr.bf16.mxu0 0
  %5160 = vmatpush1.bf16.msra.mxu0 0
  %5161 = vmatprep.subr.bf16.mxu0 0
  %5162 = vmatpush1.bf16.msra.mxu0 0
  %5163 = vmatprep.subr.bf16.mxu0 0
  %5164 = vmatpush1.bf16.msra.mxu0 0
  %5165 = vmatprep.mubr.bf16.mxu0 0
  %5166 = vmatmul.mubr.bf16.gmra.mrb[0].mxu0 %v5110
  %v5167 = vpop.f32.mrb[0].mxu0
  %v5168 = vadd.f32 0.0, %v5167
  %v5169 = vpop.f32.mrb[0].mxu0
  %v5170 = vadd.f32 0.0, %v5169
  %v5171 = vpop.f32.mrb[0].mxu0
  %v5172 = vadd.f32 0.0, %v5171
  %v5173 = vpop.f32.mrb[0].mxu0
  %v5174 = vadd.f32 0.0, %v5173
  %5175 = vmatprep.mubr.bf16.mxu0 0
  %5176 = vmatmul.mubr.bf16.gmra.mrb[0].mxu0 %v5113
  %v5177 = vpop.f32.mrb[0].mxu0
  %v5178 = vadd.f32 0.0, %v5177
  %v5179 = vpop.f32.mrb[0].mxu0
  %v5180 = vadd.f32 0.0, %v5179
  %v5181 = vpop.f32.mrb[0].mxu0
  %v5182 = vadd.f32 0.0, %v5181
  %v5183 = vpop.f32.mrb[0].mxu0
  %v5184 = vadd.f32 0.0, %v5183
  %5185 = vmatprep.mubr.bf16.mxu0 0
  %5186 = vmatmul.mubr.bf16.gmra.mrb[0].mxu0 %v5116
  %v5187 = vpop.f32.mrb[0].mxu0
  %v5188 = vadd.f32 0.0, %v5187
  %v5189 = vpop.f32.mrb[0].mxu0
  %v5190 = vadd.f32 0.0, %v5189
  %v5191 = vpop.f32.mrb[0].mxu0
  %v5192 = vadd.f32 0.0, %v5191
  %v5193 = vpop.f32.mrb[0].mxu0
  %v5194 = vadd.f32 0.0, %v5193
  %5195 = vmatprep.mubr.bf16.mxu0 0
  %5196 = vmatmul.mubr.bf16.gmra.mrb[0].mxu0 %v5119
  %v5197 = vpop.f32.mrb[0].mxu0
  %v5198 = vadd.f32 0.0, %v5197
  %v5199 = vpop.f32.mrb[0].mxu0
  %v5200 = vadd.f32 0.0, %v5199
  %v5201 = vpop.f32.mrb[0].mxu0
  %v5202 = vadd.f32 0.0, %v5201
  %v5203 = vpop.f32.mrb[0].mxu0
  %v5204 = vadd.f32 0.0, %v5203
  %5205 = vmatprep.mubr.bf16.mxu0 0
  %5206 = vmatmul.mubr.bf16.gmra.mrb[0].mxu0 %v5122
  %v5207 = vpop.f32.mrb[0].mxu0
  %v5208 = vadd.f32 0.0, %v5207
  %v5209 = vpop.f32.mrb[0].mxu0
  %v5210 = vadd.f32 0.0, %v5209
  %v5211 = vpop.f32.mrb[0].mxu0
  %v5212 = vadd.f32 0.0, %v5211
  %v5213 = vpop.f32.mrb[0].mxu0
  %v5214 = vadd.f32 0.0, %v5213
  %5215 = vmatprep.mubr.bf16.mxu0 0
  %5216 = vmatmul.mubr.bf16.gmra.mrb[0].mxu0 %v5125
  %v5217 = vpop.f32.mrb[0].mxu0
  %v5218 = vadd.f32 0.0, %v5217
  %v5219 = vpop.f32.mrb[0].mxu0
  %v5220 = vadd.f32 0.0, %v5219
  %v5221 = vpop.f32.mrb[0].mxu0
  %v5222 = vadd.f32 0.0, %v5221
  %v5223 = vpop.f32.mrb[0].mxu0
  %v5224 = vadd.f32 0.0, %v5223
  %5225 = vmatprep.mubr.bf16.mxu0 0
  %5226 = vmatmul.mubr.bf16.gmra.mrb[0].mxu0 %v5128
  %v5227 = vpop.f32.mrb[0].mxu0
  %v5228 = vadd.f32 0.0, %v5227
  %v5229 = vpop.f32.mrb[0].mxu0
  %v5230 = vadd.f32 0.0, %v5229
  %v5231 = vpop.f32.mrb[0].mxu0
  %v5232 = vadd.f32 0.0, %v5231
  %v5233 = vpop.f32.mrb[0].mxu0
  %v5234 = vadd.f32 0.0, %v5233
  %5235 = vmatprep.mubr.bf16.mxu0 0
  %5236 = vmatmul.mubr.bf16.gmra.mrb[0].mxu0 %v5131
  %v5237 = vpop.f32.mrb[0].mxu0
  %v5238 = vadd.f32 0.0, %v5237
  %v5239 = vpop.f32.mrb[0].mxu0
  %v5240 = vadd.f32 0.0, %v5239
  %v5241 = vpop.f32.mrb[0].mxu0
  %v5242 = vadd.f32 0.0, %v5241
  %v5243 = vpop.f32.mrb[0].mxu0
  %v5244 = vadd.f32 0.0, %v5243
  %5245 = vdwg.mxu0
  %5246 = vst [vmem:[#allocation3] sm:$0xff] %v5168
  %5247 = vst.msk [vmem:[#allocation3 + $0x8] sm:$0xff] %vm28, %v5170
  %5248 = vst [vmem:[#allocation3 + $0x10] sm:$0xff] %v5172
  %5249 = vst.msk [vmem:[#allocation3 + $0x18] sm:$0xff] %vm28, %v5174
  %5250 = vst [vmem:[#allocation3 + $0x20] sm:$0xff] %v5178
  %5251 = vst.msk [vmem:[#allocation3 + $0x28] sm:$0xff] %vm28, %v5180
  %5252 = vst [vmem:[#allocation3 + $0x30] sm:$0xff] %v5182
  %5253 = vst.msk [vmem:[#allocation3 + $0x38] sm:$0xff] %vm28, %v5184
  %5254 = vst [vmem:[#allocation3 + $0x40] sm:$0xff] %v5188
  %5255 = vst.msk [vmem:[#allocation3 + $0x48] sm:$0xff] %vm28, %v5190
  %5256 = vst [vmem:[#allocation3 + $0x50] sm:$0xff] %v5192
  %5257 = vst.msk [vmem:[#allocation3 + $0x58] sm:$0xff] %vm28, %v5194
  %5258 = vst [vmem:[#allocation3 + $0x60] sm:$0xff] %v5198
  %5259 = vst.msk [vmem:[#allocation3 + $0x68] sm:$0xff] %vm28, %v5200
  %5260 = vst [vmem:[#allocation3 + $0x70] sm:$0xff] %v5202
  %5261 = vst.msk [vmem:[#allocation3 + $0x78] sm:$0xff] %vm28, %v5204
  %5262 = vst [vmem:[#allocation3 + $0x80] sm:$0xff] %v5208
  %5263 = vst.msk [vmem:[#allocation3 + $0x88] sm:$0xff] %vm28, %v5210
  %5264 = vst [vmem:[#allocation3 + $0x90] sm:$0xff] %v5212
  %5265 = vst.msk [vmem:[#allocation3 + $0x98] sm:$0xff] %vm28, %v5214
  %5266 = vst [vmem:[#allocation3 + $0xa0] sm:$0xff] %v5218
  %5267 = vst.msk [vmem:[#allocation3 + $0xa8] sm:$0xff] %vm28, %v5220
  %5268 = vst [vmem:[#allocation3 + $0xb0] sm:$0xff] %v5222
  %5269 = vst.msk [vmem:[#allocation3 + $0xb8] sm:$0xff] %vm28, %v5224
  %5270 = vst [vmem:[#allocation3 + $0xc0] sm:$0xff] %v5228
  %5271 = vst.msk [vmem:[#allocation3 + $0xc8] sm:$0xff] %vm28, %v5230
  %5272 = vst [vmem:[#allocation3 + $0xd0] sm:$0xff] %v5232
  %5273 = vst.msk [vmem:[#allocation3 + $0xd8] sm:$0xff] %vm28, %v5234
  %5274 = vst [vmem:[#allocation3 + $0xe0] sm:$0xff] %v5238
  %5275 = vst.msk [vmem:[#allocation3 + $0xe8] sm:$0xff] %vm28, %v5240
  %5276 = vst [vmem:[#allocation3 + $0xf0] sm:$0xff] %v5242
  %5277 = vst.msk [vmem:[#allocation3 + $0xf8] sm:$0xff] %vm28, %v5244
  %v5278 = vld [vmem:[#allocation3] sm:$0xff]
  %v5279 = vld [vmem:[#allocation3 + $0x8] sm:$0xff]
  %v5280 = vld [vmem:[#allocation3 + $0x10] sm:$0xff]
  %v5281 = vld [vmem:[#allocation3 + $0x18] sm:$0xff]
  %v5282 = vld [vmem:[#allocation3 + $0x20] sm:$0xff]
  %v5283 = vld [vmem:[#allocation3 + $0x28] sm:$0xff]
  %v5284 = vld [vmem:[#allocation3 + $0x30] sm:$0xff]
  %v5285 = vld [vmem:[#allocation3 + $0x38] sm:$0xff]
  %v5286 = vld [vmem:[#allocation3 + $0x40] sm:$0xff]
  %v5287 = vld [vmem:[#allocation3 + $0x48] sm:$0xff]
  %v5288 = vld [vmem:[#allocation3 + $0x50] sm:$0xff]
  %v5289 = vld [vmem:[#allocation3 + $0x58] sm:$0xff]
  %v5290 = vld [vmem:[#allocation3 + $0x60] sm:$0xff]
  %v5291 = vld [vmem:[#allocation3 + $0x68] sm:$0xff]
  %v5292 = vld [vmem:[#allocation3 + $0x70] sm:$0xff]
  %v5293 = vld [vmem:[#allocation3 + $0x78] sm:$0xff]
  %5302 = vrot.lane.b32.xlu0 %v5286, 127
  %v5303 = vpop.permute.xlu0 %5302
  %5304 = vrot.lane.b32.xlu0 %v5287, 127
  %v5305 = vpop.permute.xlu0 %5304
  %5306 = vrot.lane.b32.xlu0 %v5288, 127
  %v5307 = vpop.permute.xlu0 %5306
  %5308 = vrot.lane.b32.xlu0 %v5289, 127
  %v5309 = vpop.permute.xlu0 %5308
  %5310 = vrot.lane.b32.xlu0 %v5290, 127
  %v5311 = vpop.permute.xlu0 %5310
  %5312 = vrot.lane.b32.xlu0 %v5291, 127
  %v5313 = vpop.permute.xlu0 %5312
  %5314 = vrot.lane.b32.xlu0 %v5292, 127
  %v5315 = vpop.permute.xlu0 %5314
  %5316 = vrot.lane.b32.xlu0 %v5293, 127
  %v5317 = vpop.permute.xlu0 %5316
  %v5318 = vsel %vm4120, %v5303, %v5305
  %v5319 = vsel %vm4120, %v5307, %v5309
  %v5320 = vsel %vm4120, %v5311, %v5313
  %v5321 = vsel %vm4120, %v5315, %v5317
  %v5330 = vadd.f32 %v5278, %v5318
  %v5331 = vadd.f32 %v5279, %v5305
  %v5332 = vadd.f32 %v5280, %v5319
  %v5333 = vadd.f32 %v5281, %v5309
  %v5334 = vadd.f32 %v5282, %v5320
  %v5335 = vadd.f32 %v5283, %v5313
  %v5336 = vadd.f32 %v5284, %v5321
  %v5337 = vadd.f32 %v5285, %v5317
  %v5338 = vld [vmem:[#allocation3 + $0x80] sm:$0xff]
  %v5339 = vld [vmem:[#allocation3 + $0x88] sm:$0xff]
  %v5340 = vld [vmem:[#allocation3 + $0x90] sm:$0xff]
  %v5341 = vld [vmem:[#allocation3 + $0x98] sm:$0xff]
  %v5342 = vld [vmem:[#allocation3 + $0xa0] sm:$0xff]
  %v5343 = vld [vmem:[#allocation3 + $0xa8] sm:$0xff]
  %v5344 = vld [vmem:[#allocation3 + $0xb0] sm:$0xff]
  %v5345 = vld [vmem:[#allocation3 + $0xb8] sm:$0xff]
  %5354 = vrot.lane.b32.xlu0 %v5338, 112
  %v5355 = vpop.permute.xlu0 %5354
  %5356 = vrot.lane.b32.xlu0 %v5339, 112
  %v5357 = vpop.permute.xlu0 %5356
  %5358 = vrot.lane.b32.xlu0 %v5340, 112
  %v5359 = vpop.permute.xlu0 %5358
  %5360 = vrot.lane.b32.xlu0 %v5341, 112
  %v5361 = vpop.permute.xlu0 %5360
  %5362 = vrot.lane.b32.xlu0 %v5342, 112
  %v5363 = vpop.permute.xlu0 %5362
  %5364 = vrot.lane.b32.xlu0 %v5343, 112
  %v5365 = vpop.permute.xlu0 %5364
  %5366 = vrot.lane.b32.xlu0 %v5344, 112
  %v5367 = vpop.permute.xlu0 %5366
  %5368 = vrot.lane.b32.xlu0 %v5345, 112
  %v5369 = vpop.permute.xlu0 %5368
  %v5370 = vsel %vm2378, %v5355, %v5357
  %v5371 = vsel %vm2378, %v5359, %v5361
  %v5372 = vsel %vm2378, %v5363, %v5365
  %v5373 = vsel %vm2378, %v5367, %v5369
  %v5382 = vadd.f32 %v5330, %v5370
  %v5383 = vadd.f32 %v5331, %v5357
  %v5384 = vadd.f32 %v5332, %v5371
  %v5385 = vadd.f32 %v5333, %v5361
  %v5386 = vadd.f32 %v5334, %v5372
  %v5387 = vadd.f32 %v5335, %v5365
  %v5388 = vadd.f32 %v5336, %v5373
  %v5389 = vadd.f32 %v5337, %v5369
  %v5390 = vld [vmem:[#allocation3 + $0xc0] sm:$0xff]
  %v5391 = vld [vmem:[#allocation3 + $0xc8] sm:$0xff]
  %v5392 = vld [vmem:[#allocation3 + $0xd0] sm:$0xff]
  %v5393 = vld [vmem:[#allocation3 + $0xd8] sm:$0xff]
  %v5394 = vld [vmem:[#allocation3 + $0xe0] sm:$0xff]
  %v5395 = vld [vmem:[#allocation3 + $0xe8] sm:$0xff]
  %v5396 = vld [vmem:[#allocation3 + $0xf0] sm:$0xff]
  %v5397 = vld [vmem:[#allocation3 + $0xf8] sm:$0xff]
  %5406 = vrot.lane.b32.xlu0 %v5390, 111
  %v5407 = vpop.permute.xlu0 %5406
  %5408 = vrot.lane.b32.xlu0 %v5391, 111
  %v5409 = vpop.permute.xlu0 %5408
  %5410 = vrot.lane.b32.xlu0 %v5392, 111
  %v5411 = vpop.permute.xlu0 %5410
  %5412 = vrot.lane.b32.xlu0 %v5393, 111
  %v5413 = vpop.permute.xlu0 %5412
  %5414 = vrot.lane.b32.xlu0 %v5394, 111
  %v5415 = vpop.permute.xlu0 %5414
  %5416 = vrot.lane.b32.xlu0 %v5395, 111
  %v5417 = vpop.permute.xlu0 %5416
  %5418 = vrot.lane.b32.xlu0 %v5396, 111
  %v5419 = vpop.permute.xlu0 %5418
  %5420 = vrot.lane.b32.xlu0 %v5397, 111
  %v5421 = vpop.permute.xlu0 %5420
  %v5422 = vsel %vm4331, %v5407, %v5409
  %v5423 = vsel %vm4331, %v5411, %v5413
  %v5424 = vsel %vm4331, %v5415, %v5417
  %v5425 = vsel %vm4331, %v5419, %v5421
  %v5434 = vadd.f32 %v5382, %v5422
  %v5435 = vadd.f32 %v5383, %v5409
  %v5436 = vadd.f32 %v5384, %v5423
  %v5437 = vadd.f32 %v5385, %v5413
  %v5438 = vadd.f32 %v5386, %v5424
  %v5439 = vadd.f32 %v5387, %v5417
  %v5440 = vadd.f32 %v5388, %v5425
  %v5441 = vadd.f32 %v5389, %v5421
  %v5442 = vld [vmem:[%s4] sm:$0xff]
  %v5443 = vld [vmem:[%s4 + $0x8] sm:$0xff]
  %v5444 = vld [vmem:[%s4 + $0x10] sm:$0xff]
  %v5445 = vld [vmem:[%s4 + $0x18] sm:$0xff]
  %5447 = vset.pattern.permute.xlu0 0
  %5448 = vperm.xlu0 %5447, %v5442
  %v5449 = vpop.permute.xlu0 %5448
  %5452 = vset.pattern.permute.xlu0 0
  %5453 = vperm.xlu0 %5452, %v5443
  %v5454 = vpop.permute.xlu0 %5453
  %5457 = vset.pattern.permute.xlu0 0
  %5458 = vperm.xlu0 %5457, %v5444
  %v5459 = vpop.permute.xlu0 %5458
  %5462 = vset.pattern.permute.xlu0 0
  %5463 = vperm.xlu0 %5462, %v5445
  %v5464 = vpop.permute.xlu0 %5463
  %v5466 = vadd.f32 %v5434, %v5449
  %v5467 = vadd.f32 %v5435, %v5449
  %v5468 = vadd.f32 %v5436, %v5454
  %v5469 = vadd.f32 %v5437, %v5454
  %v5470 = vadd.f32 %v5438, %v5459
  %v5471 = vadd.f32 %v5439, %v5459
  %v5472 = vadd.f32 %v5440, %v5464
  %v5473 = vadd.f32 %v5441, %v5464
  %v5474 = vmul.f32 %v5466, %v5466
  %v5475 = vmul.f32 %v5467, %v5467
  %v5476 = vmul.f32 %v5468, %v5468
  %v5477 = vmul.f32 %v5469, %v5469
  %v5478 = vmul.f32 %v5470, %v5470
  %v5479 = vmul.f32 %v5471, %v5471
  %v5480 = vmul.f32 %v5472, %v5472
  %v5481 = vmul.f32 %v5473, %v5473
  %v5482 = vmul.f32 %v5474, %v5466
  %v5483 = vmul.f32 %v5475, %v5467
  %v5484 = vmul.f32 %v5476, %v5468
  %v5485 = vmul.f32 %v5477, %v5469
  %v5486 = vmul.f32 %v5478, %v5470
  %v5487 = vmul.f32 %v5479, %v5471
  %v5488 = vmul.f32 %v5480, %v5472
  %v5489 = vmul.f32 %v5481, %v5473
  %v5490 = vmul.f32 %v5482, 0.044715
  %v5491 = vmul.f32 %v5483, 0.044715
  %v5492 = vmul.f32 %v5484, 0.044715
  %v5493 = vmul.f32 %v5485, 0.044715
  %v5494 = vmul.f32 %v5486, 0.044715
  %v5495 = vmul.f32 %v5487, 0.044715
  %v5496 = vmul.f32 %v5488, 0.044715
  %v5497 = vmul.f32 %v5489, 0.044715
  %v5498 = vadd.f32 %v5466, %v5490
  %v5499 = vadd.f32 %v5467, %v5491
  %v5500 = vadd.f32 %v5468, %v5492
  %v5501 = vadd.f32 %v5469, %v5493
  %v5502 = vadd.f32 %v5470, %v5494
  %v5503 = vadd.f32 %v5471, %v5495
  %v5504 = vadd.f32 %v5472, %v5496
  %v5505 = vadd.f32 %v5473, %v5497
  %v5506 = vmul.f32 %v5498, 0.7978846
  %v5507 = vmul.f32 %v5499, 0.7978846
  %v5508 = vmul.f32 %v5500, 0.7978846
  %v5509 = vmul.f32 %v5501, 0.7978846
  %v5510 = vmul.f32 %v5502, 0.7978846
  %v5511 = vmul.f32 %v5503, 0.7978846
  %v5512 = vmul.f32 %v5504, 0.7978846
  %v5513 = vmul.f32 %v5505, 0.7978846
  %v5514 = vmul.f32 %v5466, 0.5
  %v5515 = vmul.f32 %v5467, 0.5
  %v5516 = vmul.f32 %v5468, 0.5
  %v5517 = vmul.f32 %v5469, 0.5
  %v5518 = vmul.f32 %v5470, 0.5
  %v5519 = vmul.f32 %v5471, 0.5
  %v5520 = vmul.f32 %v5472, 0.5
  %v5521 = vmul.f32 %v5473, 0.5
  %v5522 = vtanh.pop %v5506
  %v5523 = vtanh.pop %v5507
  %v5524 = vtanh.pop %v5508
  %v5525 = vtanh.pop %v5509
  %v5526 = vtanh.pop %v5510
  %v5527 = vtanh.pop %v5511
  %v5528 = vtanh.pop %v5512
  %v5529 = vtanh.pop %v5513
  %v5530 = vadd.f32 %v5522, 1.0
  %v5531 = vadd.f32 %v5523, 1.0
  %v5532 = vadd.f32 %v5524, 1.0
  %v5533 = vadd.f32 %v5525, 1.0
  %v5534 = vadd.f32 %v5526, 1.0
  %v5535 = vadd.f32 %v5527, 1.0
  %v5536 = vadd.f32 %v5528, 1.0
  %v5537 = vadd.f32 %v5529, 1.0
  %v5538 = vmul.f32 %v5514, %v5530
  %v5539 = vmul.f32 %v5515, %v5531
  %v5540 = vmul.f32 %v5516, %v5532
  %v5541 = vmul.f32 %v5517, %v5533
  %v5542 = vmul.f32 %v5518, %v5534
  %v5543 = vmul.f32 %v5519, %v5535
  %v5544 = vmul.f32 %v5520, %v5536
  %v5545 = vmul.f32 %v5521, %v5537
  %v5546 = vld [vmem:[%s5] sm:$0xf]
  %v5547 = vld [vmem:[%s5 + $0x4] sm:$0x3]
  %v5548 = vpack.c.bf16 %v5540, %v5538
  %v5549 = vpack.c.bf16 %v5541, %v5539
  %v5550 = vpack.c.bf16 %v5544, %v5542
  %v5551 = vpack.c.bf16 %v5545, %v5543
  %v5552 = vld [vmem:[%s6] sm:$0xff]
  %v5553 = vld [vmem:[%s6 + $0x8] sm:$0xf]
  %5555 = vset.pattern.permute.xlu0 0
  %5556 = vperm.xlu0 %5555, %v5552
  %v5557 = vpop.permute.xlu0 %5556
  %5560 = vset.pattern.permute.xlu0 0
  %5561 = vperm.xlu0 %5560, %v5553
  %v5562 = vpop.permute.xlu0 %5561
  %v5566 = vunpack.c.l.b16 %v5546
  %v5567 = vunpack.c.l.b16 %v5547
  %v5568 = vpack.c.b16 %v5567, %v5566
  %v5570 = vsel %vm5108, %v5568, 0
  %5572 = vmatprep.subr.bf16.mxu0 %v5549
  %5573 = vmatpush1.bf16.msra.mxu0 %v5548
  %5574 = vmatprep.subr.bf16.mxu0 %v5551
  %5575 = vmatpush1.bf16.msra.mxu0 %v5550
  %5576 = vmatprep.subr.bf16.mxu0 0
  %5577 = vmatpush1.bf16.msra.mxu0 0
  %5578 = vmatprep.subr.bf16.mxu0 0
  %5579 = vmatpush1.bf16.msra.mxu0 0
  %5580 = vmatprep.subr.bf16.mxu0 0
  %5581 = vmatpush1.bf16.msra.mxu0 0
  %5582 = vmatprep.subr.bf16.mxu0 0
  %5583 = vmatpush1.bf16.msra.mxu0 0
  %5584 = vmatprep.subr.bf16.mxu0 0
  %5585 = vmatpush1.bf16.msra.mxu0 0
  %5586 = vmatprep.subr.bf16.mxu0 0
  %5587 = vmatpush1.bf16.msra.mxu0 0
  %5588 = vmatprep.subr.bf16.mxu0 0
  %5589 = vmatpush1.bf16.msra.mxu0 0
  %5590 = vmatprep.subr.bf16.mxu0 0
  %5591 = vmatpush1.bf16.msra.mxu0 0
  %5592 = vmatprep.subr.bf16.mxu0 0
  %5593 = vmatpush1.bf16.msra.mxu0 0
  %5594 = vmatprep.subr.bf16.mxu0 0
  %5595 = vmatpush1.bf16.msra.mxu0 0
  %5596 = vmatprep.subr.bf16.mxu0 0
  %5597 = vmatpush1.bf16.msra.mxu0 0
  %5598 = vmatprep.subr.bf16.mxu0 0
  %5599 = vmatpush1.bf16.msra.mxu0 0
  %5600 = vmatprep.subr.bf16.mxu0 0
  %5601 = vmatpush1.bf16.msra.mxu0 0
  %5602 = vmatprep.subr.bf16.mxu0 0
  %5603 = vmatpush1.bf16.msra.mxu0 0
  %5604 = vmatprep.mubr.bf16.mxu0 0
  %5605 = vmatmul.mubr.bf16.gmra.mrb[0].mxu0 %v5570
  %v5606 = vpop.f32.mrb[0].mxu0
  %v5607 = vadd.f32 %v5557, %v5606
  %v5608 = vpop.f32.mrb[0].mxu0
  %v5609 = vadd.f32 %v5557, %v5608
  %v5610 = vpop.f32.mrb[0].mxu0
  %v5611 = vadd.f32 %v5562, %v5610
  %v5612 = vpop.f32.mrb[0].mxu0
  %v5613 = vadd.f32 %v5562, %v5612
  %5614 = vdwg.mxu0
  %5615 = vst [vmem:[%s7] sm:$0xff] %v5607
  %vm5616 = vcmask 523264
  %5617 = vst.msk [vmem:[%s7 + $0x8] sm:$0xff] %vm5616, %v5609
  %5618 = vst [vmem:[%s7 + $0x10] sm:$0xf] %v5611
  %vm5619 = vcmask 519168
  %5620 = vst.msk [vmem:[%s7 + $0x18] sm:$0xf] %vm5619, %v5613
  // Predicated region
  $region30: #{model_forward.1} parent=0 // pred_check
    _
  $region31: #{model_forward.1} parent=0 // pred_check_branch
    %5622 = sbr.rel (0) target = $region33
  $region32: #{model_forward.1} parent=0 // pred_region
    _
  $region33: #{model_forward.1} parent=0 // pred_fallthru
    _
  // Predicated region
  $region34: #{model_forward.1} parent=0 // pred_check
    _
  $region35: #{model_forward.1} parent=0 // pred_check_branch
    %5624 = sbr.rel (0) target = $region37
  $region36: #{model_forward.1} parent=0 // pred_region
    _
  $region37: #{model_forward.1} parent=0 // pred_fallthru
    _

</llo_original>
